<compile_context>
chip_gen: v7x
topology: tpu7x:2x2x1
jax: 0.10.0
libtpu: 0.0.40
codegen_flags: <defaults>
</compile_context>

<pallas_src>
import functools

import jax
import jax.numpy as jnp
import numpy as np
from jax.experimental import pallas as pl
from jax.experimental.pallas import tpu as pltpu

EPS = 1e-5  # nn.LayerNorm default eps


# ----------------------------- math helpers ------------------------------ #

def _layernorm(x, gamma, beta):
    mean = jnp.mean(x, axis=-1, keepdims=True)
    var = jnp.mean((x - mean) ** 2, axis=-1, keepdims=True)
    return (x - mean) * jax.lax.rsqrt(var + EPS) * gamma + beta


# fp32 reference MHA (faithful to the PyTorch module; used only for checking)
def _mha_ref(q_in, k_in, v_in, mask, wq, bq, wk, bk, wv, bv, wo, bo,
             n_heads, d_k):
    q = jnp.dot(q_in, wq) + bq
    k = jnp.dot(k_in, wk) + bk
    v = jnp.dot(v_in, wv) + bv
    scale = 1.0 / float(np.sqrt(d_k))
    head_outs = []
    for h in range(n_heads):
        sl = slice(h * d_k, (h + 1) * d_k)
        qh, kh, vh = q[:, sl], k[:, sl], v[:, sl]
        s = jnp.dot(qh, kh.T) * scale
        if mask is not None:
            s = jnp.where(mask == 0, -1e9, s)
        s = s - jnp.max(s, axis=-1, keepdims=True)
        e = jnp.exp(s)
        p = e / jnp.sum(e, axis=-1, keepdims=True)
        head_outs.append(jnp.dot(p, vh))
    concat = jnp.concatenate(head_outs, axis=-1)
    return jnp.dot(concat, wo) + bo


# ------------------------------ Pallas kernel ----------------------------- #

def decoder_layer_kernel(
    # inputs
    x_ref, mem_ref, bias_ref,
    g1_ref, be1_ref, wq1_ref, bq1_ref, wkv1_ref, bkv1_ref, wo1_ref, bo1_ref,
    g2_ref, be2_ref, wq2_ref, bq2_ref, wkv2_ref, bkv2_ref, wo2_ref, bo2_ref,
    g3_ref, be3_ref, wf1_ref, bf1_ref, wf2_ref, bf2_ref,
    # outputs
    o_ref,
    # scratch (persists across grid steps)
    k1_s, v1_s, k2_s, v2_s,
    *, n_heads, d_k, tq,
):
    bf16 = jnp.bfloat16
    D = n_heads * d_k
    t = pl.program_id(1)
    scale = 1.0 / float(np.sqrt(d_k))

    # --- fill fused K/V scratch once per batch row (query tile t == 0) ---
    @pl.when(t == 0)
    def _():
        # self-attention K/V come from LayerNorm(x) over the FULL sequence
        x_full = x_ref[0]                                       # (S, D) f32
        ln1 = _layernorm(x_full, g1_ref[0], be1_ref[0])
        kv1 = jnp.dot(ln1.astype(bf16), wkv1_ref[...],
                      preferred_element_type=jnp.float32) + bkv1_ref[0]
        k1_s[...] = kv1[:, :D].astype(bf16)
        v1_s[...] = kv1[:, D:].astype(bf16)
        # cross-attention K/V come from (un-normed) encoder memory
        mem = mem_ref[0]                                        # (Sm, D) f32
        kv2 = jnp.dot(mem.astype(bf16), wkv2_ref[...],
                      preferred_element_type=jnp.float32) + bkv2_ref[0]
        k2_s[...] = kv2[:, :D].astype(bf16)
        v2_s[...] = kv2[:, D:].astype(bf16)

    row0 = pl.multiple_of(t * tq, tq)
    x_t = x_ref[0, pl.ds(row0, tq), :]                          # (TQ, D) f32

    def attend(x_in, g_ref, be_ref, wq_ref, bq_ref, k_s, v_s, wo_ref, bo_ref,
               bias):
        ln = _layernorm(x_in, g_ref[0], be_ref[0])
        # fold 1/sqrt(d_k) into q
        q = (jnp.dot(ln.astype(bf16), wq_ref[...],
                     preferred_element_type=jnp.float32) + bq_ref[0]) * scale
        q = q.astype(bf16)                                      # (TQ, D)
        k = k_s[...]                                            # (Skv, D) bf16
        v = v_s[...]                                            # (Skv, D) bf16
        wo = wo_ref[...]                                        # (D, D)  bf16
        acc = jnp.zeros((tq, D), jnp.float32)
        for h in range(n_heads):                                # static unroll
            sl = slice(h * d_k, (h + 1) * d_k)
            s = jax.lax.dot_general(                            # q_h @ k_h^T
                q[:, sl], k[:, sl], (((1,), (1,)), ((), ())),
                preferred_element_type=jnp.float32)             # (TQ, Skv)
            if bias is not None:                                # hoisted mask
                s = s + bias
            s = s - jnp.max(s, axis=-1, keepdims=True)
            e = jnp.exp(s)
            p = e * pl.reciprocal(jnp.sum(e, axis=-1, keepdims=True),
                                  approx=True)
            ctx = jnp.dot(p.astype(bf16), v[:, sl],
                          preferred_element_type=jnp.float32)   # (TQ, d_k)
            # fold the head concat into the output projection
            acc = acc + jnp.dot(ctx.astype(bf16), wo[sl, :],
                                preferred_element_type=jnp.float32)
        return acc + bo_ref[0]

    # sublayer 0: x + self_attn(norm(x), norm(x), norm(x), tgt_mask)
    x_t = x_t + attend(x_t, g1_ref, be1_ref, wq1_ref, bq1_ref,
                       k1_s, v1_s, wo1_ref, bo1_ref, bias_ref[...])
    # sublayer 1: x + src_attn(norm(x), memory, memory)
    x_t = x_t + attend(x_t, g2_ref, be2_ref, wq2_ref, bq2_ref,
                       k2_s, v2_s, wo2_ref, bo2_ref, None)
    # sublayer 2: x + FFN(norm(x))
    ln = _layernorm(x_t, g3_ref[0], be3_ref[0])
    h1 = jnp.maximum(
        jnp.dot(ln.astype(bf16), wf1_ref[...],
                preferred_element_type=jnp.float32) + bf1_ref[0], 0.0)
    ff = jnp.dot(h1.astype(bf16), wf2_ref[...],
                 preferred_element_type=jnp.float32) + bf2_ref[0]
    o_ref[0] = x_t + ff


# -------------------------------- wrapper ---------------------------------- #

def decoder_layer(x, memory, tgt_mask, params, n_heads):
    B, S, D = x.shape
    _, Sm, _ = memory.shape
    d_k = D // n_heads
    F = params["wf1"].shape[1]
    bf16 = jnp.bfloat16

    TQ = min(S, 128)           # query-tile size (multiple of 8; full S if small)
    assert S % TQ == 0
    NT = S // TQ

    p = params
    # fused K|V projection weights ([D, 2D]) and biases ([1, 2D])
    wkv1 = jnp.concatenate([p["wk1"], p["wv1"]], axis=1).astype(bf16)
    bkv1 = jnp.concatenate([p["bk1"], p["bv1"]], axis=1)
    wkv2 = jnp.concatenate([p["wk2"], p["wv2"]], axis=1).astype(bf16)
    bkv2 = jnp.concatenate([p["bk2"], p["bv2"]], axis=1)
    # additive mask bias, computed once (1 = keep -> 0, 0 = masked -> -1e9)
    bias = jnp.where(tgt_mask == 0, -1e9, 0.0).astype(jnp.float32)

    operands = [
        x, memory, bias,
        p["g1"], p["be1"], p["wq1"].astype(bf16), p["bq1"], wkv1, bkv1,
        p["wo1"].astype(bf16), p["bo1"],
        p["g2"], p["be2"], p["wq2"].astype(bf16), p["bq2"], wkv2, bkv2,
        p["wo2"].astype(bf16), p["bo2"],
        p["g3"], p["be3"], p["wf1"].astype(bf16), p["bf1"],
        p["wf2"].astype(bf16), p["bf2"],
    ]

    def full_spec(arr):
        nd = arr.ndim
        return pl.BlockSpec(arr.shape, lambda b, t, _nd=nd: (0,) * _nd)

    in_specs = [
        pl.BlockSpec((1, S, D), lambda b, t: (b, 0, 0)),     # x (full seq)
        pl.BlockSpec((1, Sm, D), lambda b, t: (b, 0, 0)),    # memory
        pl.BlockSpec((TQ, S), lambda b, t: (t, 0)),          # mask bias tile
    ] + [full_spec(a) for a in operands[3:]]

    kernel = functools.partial(decoder_layer_kernel,
                               n_heads=n_heads, d_k=d_k, tq=TQ)

    # advisory cost estimate for the XLA scheduler
    flops_self = 2 * S * D * D + 2 * S * D * 2 * D + 4 * S * S * D + 2 * S * D * D
    flops_cross = 2 * S * D * D + 2 * Sm * D * 2 * D + 4 * S * Sm * D + 2 * S * D * D
    flops_ffn = 4 * S * D * F
    flops = int(B * (flops_self + flops_cross + flops_ffn))
    transcendentals = int(B * (n_heads * (S * S + S * Sm) + 3 * S))
    bytes_accessed = int(
        sum(int(np.prod(a.shape)) * a.dtype.itemsize for a in operands)
        + B * S * D * 4)

    return pl.pallas_call(
        kernel,
        grid=(B, NT),
        in_specs=in_specs,
        out_specs=pl.BlockSpec((1, TQ, D), lambda b, t: (b, t, 0)),
        out_shape=jax.ShapeDtypeStruct((B, S, D), jnp.float32),
        scratch_shapes=[
            pltpu.VMEM((S, D), bf16),   # self-attn K (full seq, per batch row)
            pltpu.VMEM((S, D), bf16),   # self-attn V
            pltpu.VMEM((Sm, D), bf16),  # cross-attn K
            pltpu.VMEM((Sm, D), bf16),  # cross-attn V
        ],
        compiler_params=pltpu.CompilerParams(
            # batch axis parallel (megacore); query-tile axis must stay
            # sequential per core because the K/V scratch is filled at t == 0.
            dimension_semantics=("parallel", "arbitrary"),
            vmem_limit_bytes=32 * 1024 * 1024),
        cost_estimate=pl.CostEstimate(
            flops=flops, transcendentals=transcendentals,
            bytes_accessed=bytes_accessed),
    )(*operands)


# ------------------------------- reference -------------------------------- #

def decoder_layer_ref(x, memory, tgt_mask, params, n_heads):
    B, S, D = x.shape
    d_k = D // n_heads
    p = params
    outs = []
    for b in range(B):
        xb, mb = x[b], memory[b]
        ln = _layernorm(xb, p["g1"][0], p["be1"][0])
        xb = xb + _mha_ref(ln, ln, ln, tgt_mask,
                           p["wq1"], p["bq1"][0], p["wk1"], p["bk1"][0],
                           p["wv1"], p["bv1"][0], p["wo1"], p["bo1"][0],
                           n_heads, d_k)
        ln = _layernorm(xb, p["g2"][0], p["be2"][0])
        xb = xb + _mha_ref(ln, mb, mb, None,
                           p["wq2"], p["bq2"][0], p["wk2"], p["bk2"][0],
                           p["wv2"], p["bv2"][0], p["wo2"], p["bo2"][0],
                           n_heads, d_k)
        ln = _layernorm(xb, p["g3"][0], p["be3"][0])
        h = jnp.maximum(ln @ p["wf1"] + p["bf1"][0], 0.0)
        xb = xb + h @ p["wf2"] + p["bf2"][0]
        outs.append(xb)
    return jnp.stack(outs, axis=0)


# ------------------------------- param init ------------------------------- #

def init_params(key, d_model, d_ff):
    keys = jax.random.split(key, 10)

    def lin(k, din, dout):
        kw, kb = jax.random.split(k)
        w = jax.random.normal(kw, (din, dout), jnp.float32) / np.sqrt(din)
        b = jax.random.normal(kb, (1, dout), jnp.float32) * 0.01
        return w, b

    p = {}
    for i, nm in enumerate(["q1", "k1", "v1", "o1"]):
        p[f"w{nm}"], p[f"b{nm}"] = lin(keys[i], d_model, d_model)
    for i, nm in enumerate(["q2", "k2", "v2", "o2"]):
        p[f"w{nm}"], p[f"b{nm}"] = lin(keys[4 + i], d_model, d_model)
    p["wf1"], p["bf1"] = lin(keys[8], d_model, d_ff)
    p["wf2"], p["bf2"] = lin(keys[9], d_ff, d_model)
    for i in (1, 2, 3):
        p[f"g{i}"] = jnp.ones((1, d_model), jnp.float32)
        p[f"be{i}"] = jnp.zeros((1, d_model), jnp.float32)
    return p


# --------------------------------- main ----------------------------------- #

if __name__ == "__main__":
    B, S, Sm, D, H, D_FF = 2, 8, 8, 32, 4, 64

    key = jax.random.PRNGKey(0)
    kx, km, kp = jax.random.split(key, 3)
    x = jax.random.normal(kx, (B, S, D), jnp.float32)
    memory = jax.random.normal(km, (B, Sm, D), jnp.float32)
    # causal target mask: 1 = keep, 0 = masked
    tgt_mask = jnp.tril(jnp.ones((S, S), jnp.float32))
    params = init_params(kp, D, D_FF)

    out = decoder_layer(x, memory, tgt_mask, params, n_heads=H)
    out = jax.block_until_ready(out)

    ref = decoder_layer_ref(x, memory, tgt_mask, params, n_heads=H)
    assert out.shape == (B, S, D)
    # bf16 matmul inputs + approximate softmax reciprocal -> loosened tolerance
    np.testing.assert_allclose(np.asarray(out), np.asarray(ref),
                               rtol=5e-2, atol=5e-2)
    print("KERNEL_OK")
</pallas_src>

<mosaic_0001>
module attributes {stable_mosaic.version = 11 : i64} {
  func.func @decoder_layer_kernel(%arg0: i32, %arg1: i32, %arg2: memref<1x8x32xf32, #tpu.memory_space<vmem>>, %arg3: memref<1x8x32xf32, #tpu.memory_space<vmem>>, %arg4: memref<8x8xf32, #tpu.memory_space<vmem>>, %arg5: memref<1x32xf32, #tpu.memory_space<vmem>>, %arg6: memref<1x32xf32, #tpu.memory_space<vmem>>, %arg7: memref<32x32xbf16, #tpu.memory_space<vmem>>, %arg8: memref<1x32xf32, #tpu.memory_space<vmem>>, %arg9: memref<32x64xbf16, #tpu.memory_space<vmem>>, %arg10: memref<1x64xf32, #tpu.memory_space<vmem>>, %arg11: memref<32x32xbf16, #tpu.memory_space<vmem>>, %arg12: memref<1x32xf32, #tpu.memory_space<vmem>>, %arg13: memref<1x32xf32, #tpu.memory_space<vmem>>, %arg14: memref<1x32xf32, #tpu.memory_space<vmem>>, %arg15: memref<32x32xbf16, #tpu.memory_space<vmem>>, %arg16: memref<1x32xf32, #tpu.memory_space<vmem>>, %arg17: memref<32x64xbf16, #tpu.memory_space<vmem>>, %arg18: memref<1x64xf32, #tpu.memory_space<vmem>>, %arg19: memref<32x32xbf16, #tpu.memory_space<vmem>>, %arg20: memref<1x32xf32, #tpu.memory_space<vmem>>, %arg21: memref<1x32xf32, #tpu.memory_space<vmem>>, %arg22: memref<1x32xf32, #tpu.memory_space<vmem>>, %arg23: memref<32x64xbf16, #tpu.memory_space<vmem>>, %arg24: memref<1x64xf32, #tpu.memory_space<vmem>>, %arg25: memref<64x32xbf16, #tpu.memory_space<vmem>>, %arg26: memref<1x32xf32, #tpu.memory_space<vmem>>, %arg27: memref<1x8x32xf32, #tpu.memory_space<vmem>>, %arg28: memref<8x32xbf16, #tpu.memory_space<vmem>>, %arg29: memref<8x32xbf16, #tpu.memory_space<vmem>>, %arg30: memref<8x32xbf16, #tpu.memory_space<vmem>>, %arg31: memref<8x32xbf16, #tpu.memory_space<vmem>>) attributes {dimension_semantics = [#tpu.dimension_semantics<parallel>, #tpu.dimension_semantics<arbitrary>], iteration_bounds = array<i64: 2, 1>, scalar_prefetch = 0 : i64, scratch_operands = 4 : i64, tpu.core_type = #tpu.core_type<tc>, window_params = [{transform_indices = @transform_0, window_bounds = array<i64: 1, 8, 32>}, {transform_indices = @transform_1, window_bounds = array<i64: 1, 8, 32>}, {transform_indices = @transform_2, window_bounds = array<i64: 8, 8>}, {pipeline_mode = #tpu.pipeline_mode<synchronous>, transform_indices = @transform_3, window_bounds = array<i64: 1, 32>}, {pipeline_mode = #tpu.pipeline_mode<synchronous>, transform_indices = @transform_4, window_bounds = array<i64: 1, 32>}, {pipeline_mode = #tpu.pipeline_mode<synchronous>, transform_indices = @transform_5, window_bounds = array<i64: 32, 32>}, {pipeline_mode = #tpu.pipeline_mode<synchronous>, transform_indices = @transform_6, window_bounds = array<i64: 1, 32>}, {pipeline_mode = #tpu.pipeline_mode<synchronous>, transform_indices = @transform_7, window_bounds = array<i64: 32, 64>}, {pipeline_mode = #tpu.pipeline_mode<synchronous>, transform_indices = @transform_8, window_bounds = array<i64: 1, 64>}, {pipeline_mode = #tpu.pipeline_mode<synchronous>, transform_indices = @transform_9, window_bounds = array<i64: 32, 32>}, {pipeline_mode = #tpu.pipeline_mode<synchronous>, transform_indices = @transform_10, window_bounds = array<i64: 1, 32>}, {pipeline_mode = #tpu.pipeline_mode<synchronous>, transform_indices = @transform_11, window_bounds = array<i64: 1, 32>}, {pipeline_mode = #tpu.pipeline_mode<synchronous>, transform_indices = @transform_12, window_bounds = array<i64: 1, 32>}, {pipeline_mode = #tpu.pipeline_mode<synchronous>, transform_indices = @transform_13, window_bounds = array<i64: 32, 32>}, {pipeline_mode = #tpu.pipeline_mode<synchronous>, transform_indices = @transform_14, window_bounds = array<i64: 1, 32>}, {pipeline_mode = #tpu.pipeline_mode<synchronous>, transform_indices = @transform_15, window_bounds = array<i64: 32, 64>}, {pipeline_mode = #tpu.pipeline_mode<synchronous>, transform_indices = @transform_16, window_bounds = array<i64: 1, 64>}, {pipeline_mode = #tpu.pipeline_mode<synchronous>, transform_indices = @transform_17, window_bounds = array<i64: 32, 32>}, {pipeline_mode = #tpu.pipeline_mode<synchronous>, transform_indices = @transform_18, window_bounds = array<i64: 1, 32>}, {pipeline_mode = #tpu.pipeline_mode<synchronous>, transform_indices = @transform_19, window_bounds = array<i64: 1, 32>}, {pipeline_mode = #tpu.pipeline_mode<synchronous>, transform_indices = @transform_20, window_bounds = array<i64: 1, 32>}, {pipeline_mode = #tpu.pipeline_mode<synchronous>, transform_indices = @transform_21, window_bounds = array<i64: 32, 64>}, {pipeline_mode = #tpu.pipeline_mode<synchronous>, transform_indices = @transform_22, window_bounds = array<i64: 1, 64>}, {pipeline_mode = #tpu.pipeline_mode<synchronous>, transform_indices = @transform_23, window_bounds = array<i64: 64, 32>}, {pipeline_mode = #tpu.pipeline_mode<synchronous>, transform_indices = @transform_24, window_bounds = array<i64: 1, 32>}, {transform_indices = @transform_25, window_bounds = array<i64: 1, 8, 32>}]} {
    %c0_i32 = arith.constant 0 : i32
    %0 = arith.cmpi eq, %arg1, %c0_i32 : i32
    %1 = arith.extui %0 : i1 to i32
    %c0_i32_0 = arith.constant 0 : i32
    %2 = arith.cmpi ne, %1, %c0_i32_0 : i32
    scf.if %2 {
      %c0_114 = arith.constant 0 : index
      %c0_115 = arith.constant 0 : index
      %c0_116 = arith.constant 0 : index
      %321 = vector.load %arg2[%c0_114, %c0_115, %c0_116] : memref<1x8x32xf32, #tpu.memory_space<vmem>>, vector<1x8x32xf32>
      %322 = vector.shape_cast %321 : vector<1x8x32xf32> to vector<8x32xf32>
      %c0_117 = arith.constant 0 : index
      %c0_118 = arith.constant 0 : index
      %323 = vector.load %arg5[%c0_117, %c0_118] : memref<1x32xf32, #tpu.memory_space<vmem>>, vector<1x32xf32>
      %324 = vector.shape_cast %323 : vector<1x32xf32> to vector<32xf32>
      %c0_119 = arith.constant 0 : index
      %c0_120 = arith.constant 0 : index
      %325 = vector.load %arg6[%c0_119, %c0_120] : memref<1x32xf32, #tpu.memory_space<vmem>>, vector<1x32xf32>
      %326 = vector.shape_cast %325 : vector<1x32xf32> to vector<32xf32>
      %cst_121 = arith.constant dense<0.000000e+00> : vector<8xf32>
      %327 = vector.multi_reduction <add>, %322, %cst_121 [1] : vector<8x32xf32> to vector<8xf32>
      %328 = vector.shape_cast %327 : vector<8xf32> to vector<8x1xf32>
      %cst_122 = arith.constant 3.200000e+01 : f32
      %329 = vector.broadcast %cst_122 : f32 to vector<8x1xf32>
      %330 = arith.divf %328, %329 : vector<8x1xf32>
      %331 = vector.broadcast %330 : vector<8x1xf32> to vector<8x32xf32>
      %332 = arith.subf %322, %331 : vector<8x32xf32>
      %333 = arith.mulf %332, %332 : vector<8x32xf32>
      %cst_123 = arith.constant dense<0.000000e+00> : vector<8xf32>
      %334 = vector.multi_reduction <add>, %333, %cst_123 [1] : vector<8x32xf32> to vector<8xf32>
      %335 = vector.shape_cast %334 : vector<8xf32> to vector<8x1xf32>
      %cst_124 = arith.constant 3.200000e+01 : f32
      %336 = vector.broadcast %cst_124 : f32 to vector<8x1xf32>
      %337 = arith.divf %335, %336 : vector<8x1xf32>
      %338 = vector.broadcast %330 : vector<8x1xf32> to vector<8x32xf32>
      %339 = arith.subf %322, %338 : vector<8x32xf32>
      %cst_125 = arith.constant 9.99999974E-6 : f32
      %340 = vector.broadcast %cst_125 : f32 to vector<8x1xf32>
      %341 = arith.addf %337, %340 : vector<8x1xf32>
      %342 = math.rsqrt %341 : vector<8x1xf32>
      %343 = vector.broadcast %342 : vector<8x1xf32> to vector<8x32xf32>
      %344 = arith.mulf %339, %343 : vector<8x32xf32>
      %345 = vector.shape_cast %324 : vector<32xf32> to vector<1x32xf32>
      %346 = vector.broadcast %345 : vector<1x32xf32> to vector<8x32xf32>
      %347 = arith.mulf %344, %346 : vector<8x32xf32>
      %348 = vector.shape_cast %326 : vector<32xf32> to vector<1x32xf32>
      %349 = vector.broadcast %348 : vector<1x32xf32> to vector<8x32xf32>
      %350 = arith.addf %347, %349 : vector<8x32xf32>
      %351 = arith.truncf %350 : vector<8x32xf32> to vector<8x32xbf16>
      %c0_126 = arith.constant 0 : index
      %c0_127 = arith.constant 0 : index
      %352 = vector.load %arg9[%c0_126, %c0_127] : memref<32x64xbf16, #tpu.memory_space<vmem>>, vector<32x64xbf16>
      %cst_128 = arith.constant dense<0.000000e+00> : vector<8x64xf32>
      %353 = tpu.matmul %351, %352, %cst_128 {dimension_numbers = #tpu.dot_dimension_numbers<[1], [0], [0], [1], [0, 0, 1, 1], [], []>} : vector<8x32xbf16>, vector<32x64xbf16>, vector<8x64xf32> -> vector<8x64xf32>
      %c0_129 = arith.constant 0 : index
      %c0_130 = arith.constant 0 : index
      %354 = vector.load %arg10[%c0_129, %c0_130] : memref<1x64xf32, #tpu.memory_space<vmem>>, vector<1x64xf32>
      %355 = vector.shape_cast %354 : vector<1x64xf32> to vector<64xf32>
      %356 = vector.shape_cast %355 : vector<64xf32> to vector<1x64xf32>
      %357 = vector.broadcast %356 : vector<1x64xf32> to vector<8x64xf32>
      %358 = arith.addf %353, %357 : vector<8x64xf32>
      %359 = vector.extract_strided_slice %358 {offsets = [0, 0], sizes = [8, 32], strides = [1, 1]} : vector<8x64xf32> to vector<8x32xf32>
      %360 = arith.truncf %359 : vector<8x32xf32> to vector<8x32xbf16>
      %c0_131 = arith.constant 0 : index
      %c0_132 = arith.constant 0 : index
      %361 = vector.load %arg28[%c0_131, %c0_132] : memref<8x32xbf16, #tpu.memory_space<vmem>>, vector<8x32xbf16>
      tpu.vector_store %arg28[%c0_131, %c0_132], %360 {strides = array<i32>} : memref<8x32xbf16, #tpu.memory_space<vmem>>, vector<8x32xbf16>,
      %362 = vector.extract_strided_slice %358 {offsets = [0, 32], sizes = [8, 32], strides = [1, 1]} : vector<8x64xf32> to vector<8x32xf32>
      %363 = arith.truncf %362 : vector<8x32xf32> to vector<8x32xbf16>
      %c0_133 = arith.constant 0 : index
      %c0_134 = arith.constant 0 : index
      %364 = vector.load %arg29[%c0_133, %c0_134] : memref<8x32xbf16, #tpu.memory_space<vmem>>, vector<8x32xbf16>
      tpu.vector_store %arg29[%c0_133, %c0_134], %363 {strides = array<i32>} : memref<8x32xbf16, #tpu.memory_space<vmem>>, vector<8x32xbf16>,
      %c0_135 = arith.constant 0 : index
      %c0_136 = arith.constant 0 : index
      %c0_137 = arith.constant 0 : index
      %365 = vector.load %arg3[%c0_135, %c0_136, %c0_137] : memref<1x8x32xf32, #tpu.memory_space<vmem>>, vector<1x8x32xf32>
      %366 = vector.shape_cast %365 : vector<1x8x32xf32> to vector<8x32xf32>
      %367 = arith.truncf %366 : vector<8x32xf32> to vector<8x32xbf16>
      %c0_138 = arith.constant 0 : index
      %c0_139 = arith.constant 0 : index
      %368 = vector.load %arg17[%c0_138, %c0_139] : memref<32x64xbf16, #tpu.memory_space<vmem>>, vector<32x64xbf16>
      %cst_140 = arith.constant dense<0.000000e+00> : vector<8x64xf32>
      %369 = tpu.matmul %367, %368, %cst_140 {dimension_numbers = #tpu.dot_dimension_numbers<[1], [0], [0], [1], [0, 0, 1, 1], [], []>} : vector<8x32xbf16>, vector<32x64xbf16>, vector<8x64xf32> -> vector<8x64xf32>
      %c0_141 = arith.constant 0 : index
      %c0_142 = arith.constant 0 : index
      %370 = vector.load %arg18[%c0_141, %c0_142] : memref<1x64xf32, #tpu.memory_space<vmem>>, vector<1x64xf32>
      %371 = vector.shape_cast %370 : vector<1x64xf32> to vector<64xf32>
      %372 = vector.shape_cast %371 : vector<64xf32> to vector<1x64xf32>
      %373 = vector.broadcast %372 : vector<1x64xf32> to vector<8x64xf32>
      %374 = arith.addf %369, %373 : vector<8x64xf32>
      %375 = vector.extract_strided_slice %374 {offsets = [0, 0], sizes = [8, 32], strides = [1, 1]} : vector<8x64xf32> to vector<8x32xf32>
      %376 = arith.truncf %375 : vector<8x32xf32> to vector<8x32xbf16>
      %c0_143 = arith.constant 0 : index
      %c0_144 = arith.constant 0 : index
      %377 = vector.load %arg30[%c0_143, %c0_144] : memref<8x32xbf16, #tpu.memory_space<vmem>>, vector<8x32xbf16>
      tpu.vector_store %arg30[%c0_143, %c0_144], %376 {strides = array<i32>} : memref<8x32xbf16, #tpu.memory_space<vmem>>, vector<8x32xbf16>,
      %378 = vector.extract_strided_slice %374 {offsets = [0, 32], sizes = [8, 32], strides = [1, 1]} : vector<8x64xf32> to vector<8x32xf32>
      %379 = arith.truncf %378 : vector<8x32xf32> to vector<8x32xbf16>
      %c0_145 = arith.constant 0 : index
      %c0_146 = arith.constant 0 : index
      %380 = vector.load %arg31[%c0_145, %c0_146] : memref<8x32xbf16, #tpu.memory_space<vmem>>, vector<8x32xbf16>
      tpu.vector_store %arg31[%c0_145, %c0_146], %379 {strides = array<i32>} : memref<8x32xbf16, #tpu.memory_space<vmem>>, vector<8x32xbf16>,
    } else {
    }
    %c8_i32 = arith.constant 8 : i32
    %3 = arith.muli %arg1, %c8_i32 : i32
    %4 = tpu.assume_multiple %3, 8 : i32
    %c0 = arith.constant 0 : index
    %5 = arith.index_cast %4 : i32 to index
    %c0_1 = arith.constant 0 : index
    %6 = vector.load %arg2[%c0, %5, %c0_1] : memref<1x8x32xf32, #tpu.memory_space<vmem>>, vector<1x8x32xf32>
    %7 = vector.shape_cast %6 : vector<1x8x32xf32> to vector<8x32xf32>
    %c0_2 = arith.constant 0 : index
    %c0_3 = arith.constant 0 : index
    %8 = vector.load %arg4[%c0_2, %c0_3] : memref<8x8xf32, #tpu.memory_space<vmem>>, vector<8x8xf32>
    %c0_4 = arith.constant 0 : index
    %c0_5 = arith.constant 0 : index
    %9 = vector.load %arg5[%c0_4, %c0_5] : memref<1x32xf32, #tpu.memory_space<vmem>>, vector<1x32xf32>
    %10 = vector.shape_cast %9 : vector<1x32xf32> to vector<32xf32>
    %c0_6 = arith.constant 0 : index
    %c0_7 = arith.constant 0 : index
    %11 = vector.load %arg6[%c0_6, %c0_7] : memref<1x32xf32, #tpu.memory_space<vmem>>, vector<1x32xf32>
    %12 = vector.shape_cast %11 : vector<1x32xf32> to vector<32xf32>
    %cst = arith.constant dense<0.000000e+00> : vector<8xf32>
    %13 = vector.multi_reduction <add>, %7, %cst [1] : vector<8x32xf32> to vector<8xf32>
    %14 = vector.shape_cast %13 : vector<8xf32> to vector<8x1xf32>
    %cst_8 = arith.constant 3.200000e+01 : f32
    %15 = vector.broadcast %cst_8 : f32 to vector<8x1xf32>
    %16 = arith.divf %14, %15 : vector<8x1xf32>
    %17 = vector.broadcast %16 : vector<8x1xf32> to vector<8x32xf32>
    %18 = arith.subf %7, %17 : vector<8x32xf32>
    %19 = arith.mulf %18, %18 : vector<8x32xf32>
    %cst_9 = arith.constant dense<0.000000e+00> : vector<8xf32>
    %20 = vector.multi_reduction <add>, %19, %cst_9 [1] : vector<8x32xf32> to vector<8xf32>
    %21 = vector.shape_cast %20 : vector<8xf32> to vector<8x1xf32>
    %cst_10 = arith.constant 3.200000e+01 : f32
    %22 = vector.broadcast %cst_10 : f32 to vector<8x1xf32>
    %23 = arith.divf %21, %22 : vector<8x1xf32>
    %24 = vector.broadcast %16 : vector<8x1xf32> to vector<8x32xf32>
    %25 = arith.subf %7, %24 : vector<8x32xf32>
    %cst_11 = arith.constant 9.99999974E-6 : f32
    %26 = vector.broadcast %cst_11 : f32 to vector<8x1xf32>
    %27 = arith.addf %23, %26 : vector<8x1xf32>
    %28 = math.rsqrt %27 : vector<8x1xf32>
    %29 = vector.broadcast %28 : vector<8x1xf32> to vector<8x32xf32>
    %30 = arith.mulf %25, %29 : vector<8x32xf32>
    %31 = vector.shape_cast %10 : vector<32xf32> to vector<1x32xf32>
    %32 = vector.broadcast %31 : vector<1x32xf32> to vector<8x32xf32>
    %33 = arith.mulf %30, %32 : vector<8x32xf32>
    %34 = vector.shape_cast %12 : vector<32xf32> to vector<1x32xf32>
    %35 = vector.broadcast %34 : vector<1x32xf32> to vector<8x32xf32>
    %36 = arith.addf %33, %35 : vector<8x32xf32>
    %37 = arith.truncf %36 : vector<8x32xf32> to vector<8x32xbf16>
    %c0_12 = arith.constant 0 : index
    %c0_13 = arith.constant 0 : index
    %38 = vector.load %arg7[%c0_12, %c0_13] : memref<32x32xbf16, #tpu.memory_space<vmem>>, vector<32x32xbf16>
    %cst_14 = arith.constant dense<0.000000e+00> : vector<8x32xf32>
    %39 = tpu.matmul %37, %38, %cst_14 {dimension_numbers = #tpu.dot_dimension_numbers<[1], [0], [0], [1], [0, 0, 1, 1], [], []>} : vector<8x32xbf16>, vector<32x32xbf16>, vector<8x32xf32> -> vector<8x32xf32>
    %c0_15 = arith.constant 0 : index
    %c0_16 = arith.constant 0 : index
    %40 = vector.load %arg8[%c0_15, %c0_16] : memref<1x32xf32, #tpu.memory_space<vmem>>, vector<1x32xf32>
    %41 = vector.shape_cast %40 : vector<1x32xf32> to vector<32xf32>
    %42 = vector.shape_cast %41 : vector<32xf32> to vector<1x32xf32>
    %43 = vector.broadcast %42 : vector<1x32xf32> to vector<8x32xf32>
    %44 = arith.addf %39, %43 : vector<8x32xf32>
    %cst_17 = arith.constant 0.353553385 : f32
    %45 = vector.broadcast %cst_17 : f32 to vector<8x32xf32>
    %46 = arith.mulf %44, %45 : vector<8x32xf32>
    %47 = arith.truncf %46 : vector<8x32xf32> to vector<8x32xbf16>
    %c0_18 = arith.constant 0 : index
    %c0_19 = arith.constant 0 : index
    %48 = vector.load %arg28[%c0_18, %c0_19] : memref<8x32xbf16, #tpu.memory_space<vmem>>, vector<8x32xbf16>
    %c0_20 = arith.constant 0 : index
    %c0_21 = arith.constant 0 : index
    %49 = vector.load %arg29[%c0_20, %c0_21] : memref<8x32xbf16, #tpu.memory_space<vmem>>, vector<8x32xbf16>
    %c0_22 = arith.constant 0 : index
    %c0_23 = arith.constant 0 : index
    %50 = vector.load %arg11[%c0_22, %c0_23] : memref<32x32xbf16, #tpu.memory_space<vmem>>, vector<32x32xbf16>
    %cst_24 = arith.constant 0.000000e+00 : f32
    %51 = vector.broadcast %cst_24 : f32 to vector<8x32xf32>
    %52 = vector.extract_strided_slice %47 {offsets = [0, 0], sizes = [8, 8], strides = [1, 1]} : vector<8x32xbf16> to vector<8x8xbf16>
    %53 = vector.extract_strided_slice %48 {offsets = [0, 0], sizes = [8, 8], strides = [1, 1]} : vector<8x32xbf16> to vector<8x8xbf16>
    %cst_25 = arith.constant dense<0.000000e+00> : vector<8x8xf32>
    %54 = tpu.matmul %52, %53, %cst_25 {dimension_numbers = #tpu.dot_dimension_numbers<[1], [1], [0], [0], [0, 0, 1, 0], [], []>} : vector<8x8xbf16>, vector<8x8xbf16>, vector<8x8xf32> -> vector<8x8xf32>
    %55 = arith.addf %54, %8 : vector<8x8xf32>
    %cst_26 = arith.constant dense<0xFF800000> : vector<8xf32>
    %56 = vector.multi_reduction <maximumf>, %55, %cst_26 [1] : vector<8x8xf32> to vector<8xf32>
    %57 = vector.shape_cast %56 : vector<8xf32> to vector<8x1xf32>
    %58 = vector.broadcast %57 : vector<8x1xf32> to vector<8x8xf32>
    %59 = arith.subf %55, %58 : vector<8x8xf32>
    %60 = math.exp %59 : vector<8x8xf32>
    %cst_27 = arith.constant dense<0.000000e+00> : vector<8xf32>
    %61 = vector.multi_reduction <add>, %60, %cst_27 [1] : vector<8x8xf32> to vector<8xf32>
    %62 = vector.shape_cast %61 : vector<8xf32> to vector<8x1xf32>
    %63 = tpu.reciprocal %62 {approx = true} : vector<8x1xf32> -> vector<8x1xf32>
    %64 = vector.broadcast %63 : vector<8x1xf32> to vector<8x8xf32>
    %65 = arith.mulf %60, %64 : vector<8x8xf32>
    %66 = arith.truncf %65 : vector<8x8xf32> to vector<8x8xbf16>
    %67 = vector.extract_strided_slice %49 {offsets = [0, 0], sizes = [8, 8], strides = [1, 1]} : vector<8x32xbf16> to vector<8x8xbf16>
    %cst_28 = arith.constant dense<0.000000e+00> : vector<8x8xf32>
    %68 = tpu.matmul %66, %67, %cst_28 {dimension_numbers = #tpu.dot_dimension_numbers<[1], [0], [0], [1], [0, 0, 1, 1], [], []>} : vector<8x8xbf16>, vector<8x8xbf16>, vector<8x8xf32> -> vector<8x8xf32>
    %69 = arith.truncf %68 : vector<8x8xf32> to vector<8x8xbf16>
    %70 = vector.extract_strided_slice %50 {offsets = [0, 0], sizes = [8, 32], strides = [1, 1]} : vector<32x32xbf16> to vector<8x32xbf16>
    %cst_29 = arith.constant dense<0.000000e+00> : vector<8x32xf32>
    %71 = tpu.matmul %69, %70, %cst_29 {dimension_numbers = #tpu.dot_dimension_numbers<[1], [0], [0], [1], [0, 0, 1, 1], [], []>} : vector<8x8xbf16>, vector<8x32xbf16>, vector<8x32xf32> -> vector<8x32xf32>
    %72 = arith.addf %51, %71 : vector<8x32xf32>
    %73 = vector.extract_strided_slice %47 {offsets = [0, 8], sizes = [8, 8], strides = [1, 1]} : vector<8x32xbf16> to vector<8x8xbf16>
    %74 = vector.extract_strided_slice %48 {offsets = [0, 8], sizes = [8, 8], strides = [1, 1]} : vector<8x32xbf16> to vector<8x8xbf16>
    %cst_30 = arith.constant dense<0.000000e+00> : vector<8x8xf32>
    %75 = tpu.matmul %73, %74, %cst_30 {dimension_numbers = #tpu.dot_dimension_numbers<[1], [1], [0], [0], [0, 0, 1, 0], [], []>} : vector<8x8xbf16>, vector<8x8xbf16>, vector<8x8xf32> -> vector<8x8xf32>
    %76 = arith.addf %75, %8 : vector<8x8xf32>
    %cst_31 = arith.constant dense<0xFF800000> : vector<8xf32>
    %77 = vector.multi_reduction <maximumf>, %76, %cst_31 [1] : vector<8x8xf32> to vector<8xf32>
    %78 = vector.shape_cast %77 : vector<8xf32> to vector<8x1xf32>
    %79 = vector.broadcast %78 : vector<8x1xf32> to vector<8x8xf32>
    %80 = arith.subf %76, %79 : vector<8x8xf32>
    %81 = math.exp %80 : vector<8x8xf32>
    %cst_32 = arith.constant dense<0.000000e+00> : vector<8xf32>
    %82 = vector.multi_reduction <add>, %81, %cst_32 [1] : vector<8x8xf32> to vector<8xf32>
    %83 = vector.shape_cast %82 : vector<8xf32> to vector<8x1xf32>
    %84 = tpu.reciprocal %83 {approx = true} : vector<8x1xf32> -> vector<8x1xf32>
    %85 = vector.broadcast %84 : vector<8x1xf32> to vector<8x8xf32>
    %86 = arith.mulf %81, %85 : vector<8x8xf32>
    %87 = arith.truncf %86 : vector<8x8xf32> to vector<8x8xbf16>
    %88 = vector.extract_strided_slice %49 {offsets = [0, 8], sizes = [8, 8], strides = [1, 1]} : vector<8x32xbf16> to vector<8x8xbf16>
    %cst_33 = arith.constant dense<0.000000e+00> : vector<8x8xf32>
    %89 = tpu.matmul %87, %88, %cst_33 {dimension_numbers = #tpu.dot_dimension_numbers<[1], [0], [0], [1], [0, 0, 1, 1], [], []>} : vector<8x8xbf16>, vector<8x8xbf16>, vector<8x8xf32> -> vector<8x8xf32>
    %90 = arith.truncf %89 : vector<8x8xf32> to vector<8x8xbf16>
    %91 = vector.extract_strided_slice %50 {offsets = [8, 0], sizes = [8, 32], strides = [1, 1]} : vector<32x32xbf16> to vector<8x32xbf16>
    %cst_34 = arith.constant dense<0.000000e+00> : vector<8x32xf32>
    %92 = tpu.matmul %90, %91, %cst_34 {dimension_numbers = #tpu.dot_dimension_numbers<[1], [0], [0], [1], [0, 0, 1, 1], [], []>} : vector<8x8xbf16>, vector<8x32xbf16>, vector<8x32xf32> -> vector<8x32xf32>
    %93 = arith.addf %72, %92 : vector<8x32xf32>
    %94 = vector.extract_strided_slice %47 {offsets = [0, 16], sizes = [8, 8], strides = [1, 1]} : vector<8x32xbf16> to vector<8x8xbf16>
    %95 = vector.extract_strided_slice %48 {offsets = [0, 16], sizes = [8, 8], strides = [1, 1]} : vector<8x32xbf16> to vector<8x8xbf16>
    %cst_35 = arith.constant dense<0.000000e+00> : vector<8x8xf32>
    %96 = tpu.matmul %94, %95, %cst_35 {dimension_numbers = #tpu.dot_dimension_numbers<[1], [1], [0], [0], [0, 0, 1, 0], [], []>} : vector<8x8xbf16>, vector<8x8xbf16>, vector<8x8xf32> -> vector<8x8xf32>
    %97 = arith.addf %96, %8 : vector<8x8xf32>
    %cst_36 = arith.constant dense<0xFF800000> : vector<8xf32>
    %98 = vector.multi_reduction <maximumf>, %97, %cst_36 [1] : vector<8x8xf32> to vector<8xf32>
    %99 = vector.shape_cast %98 : vector<8xf32> to vector<8x1xf32>
    %100 = vector.broadcast %99 : vector<8x1xf32> to vector<8x8xf32>
    %101 = arith.subf %97, %100 : vector<8x8xf32>
    %102 = math.exp %101 : vector<8x8xf32>
    %cst_37 = arith.constant dense<0.000000e+00> : vector<8xf32>
    %103 = vector.multi_reduction <add>, %102, %cst_37 [1] : vector<8x8xf32> to vector<8xf32>
    %104 = vector.shape_cast %103 : vector<8xf32> to vector<8x1xf32>
    %105 = tpu.reciprocal %104 {approx = true} : vector<8x1xf32> -> vector<8x1xf32>
    %106 = vector.broadcast %105 : vector<8x1xf32> to vector<8x8xf32>
    %107 = arith.mulf %102, %106 : vector<8x8xf32>
    %108 = arith.truncf %107 : vector<8x8xf32> to vector<8x8xbf16>
    %109 = vector.extract_strided_slice %49 {offsets = [0, 16], sizes = [8, 8], strides = [1, 1]} : vector<8x32xbf16> to vector<8x8xbf16>
    %cst_38 = arith.constant dense<0.000000e+00> : vector<8x8xf32>
    %110 = tpu.matmul %108, %109, %cst_38 {dimension_numbers = #tpu.dot_dimension_numbers<[1], [0], [0], [1], [0, 0, 1, 1], [], []>} : vector<8x8xbf16>, vector<8x8xbf16>, vector<8x8xf32> -> vector<8x8xf32>
    %111 = arith.truncf %110 : vector<8x8xf32> to vector<8x8xbf16>
    %112 = vector.extract_strided_slice %50 {offsets = [16, 0], sizes = [8, 32], strides = [1, 1]} : vector<32x32xbf16> to vector<8x32xbf16>
    %cst_39 = arith.constant dense<0.000000e+00> : vector<8x32xf32>
    %113 = tpu.matmul %111, %112, %cst_39 {dimension_numbers = #tpu.dot_dimension_numbers<[1], [0], [0], [1], [0, 0, 1, 1], [], []>} : vector<8x8xbf16>, vector<8x32xbf16>, vector<8x32xf32> -> vector<8x32xf32>
    %114 = arith.addf %93, %113 : vector<8x32xf32>
    %115 = vector.extract_strided_slice %47 {offsets = [0, 24], sizes = [8, 8], strides = [1, 1]} : vector<8x32xbf16> to vector<8x8xbf16>
    %116 = vector.extract_strided_slice %48 {offsets = [0, 24], sizes = [8, 8], strides = [1, 1]} : vector<8x32xbf16> to vector<8x8xbf16>
    %cst_40 = arith.constant dense<0.000000e+00> : vector<8x8xf32>
    %117 = tpu.matmul %115, %116, %cst_40 {dimension_numbers = #tpu.dot_dimension_numbers<[1], [1], [0], [0], [0, 0, 1, 0], [], []>} : vector<8x8xbf16>, vector<8x8xbf16>, vector<8x8xf32> -> vector<8x8xf32>
    %118 = arith.addf %117, %8 : vector<8x8xf32>
    %cst_41 = arith.constant dense<0xFF800000> : vector<8xf32>
    %119 = vector.multi_reduction <maximumf>, %118, %cst_41 [1] : vector<8x8xf32> to vector<8xf32>
    %120 = vector.shape_cast %119 : vector<8xf32> to vector<8x1xf32>
    %121 = vector.broadcast %120 : vector<8x1xf32> to vector<8x8xf32>
    %122 = arith.subf %118, %121 : vector<8x8xf32>
    %123 = math.exp %122 : vector<8x8xf32>
    %cst_42 = arith.constant dense<0.000000e+00> : vector<8xf32>
    %124 = vector.multi_reduction <add>, %123, %cst_42 [1] : vector<8x8xf32> to vector<8xf32>
    %125 = vector.shape_cast %124 : vector<8xf32> to vector<8x1xf32>
    %126 = tpu.reciprocal %125 {approx = true} : vector<8x1xf32> -> vector<8x1xf32>
    %127 = vector.broadcast %126 : vector<8x1xf32> to vector<8x8xf32>
    %128 = arith.mulf %123, %127 : vector<8x8xf32>
    %129 = arith.truncf %128 : vector<8x8xf32> to vector<8x8xbf16>
    %130 = vector.extract_strided_slice %49 {offsets = [0, 24], sizes = [8, 8], strides = [1, 1]} : vector<8x32xbf16> to vector<8x8xbf16>
    %cst_43 = arith.constant dense<0.000000e+00> : vector<8x8xf32>
    %131 = tpu.matmul %129, %130, %cst_43 {dimension_numbers = #tpu.dot_dimension_numbers<[1], [0], [0], [1], [0, 0, 1, 1], [], []>} : vector<8x8xbf16>, vector<8x8xbf16>, vector<8x8xf32> -> vector<8x8xf32>
    %132 = arith.truncf %131 : vector<8x8xf32> to vector<8x8xbf16>
    %133 = vector.extract_strided_slice %50 {offsets = [24, 0], sizes = [8, 32], strides = [1, 1]} : vector<32x32xbf16> to vector<8x32xbf16>
    %cst_44 = arith.constant dense<0.000000e+00> : vector<8x32xf32>
    %134 = tpu.matmul %132, %133, %cst_44 {dimension_numbers = #tpu.dot_dimension_numbers<[1], [0], [0], [1], [0, 0, 1, 1], [], []>} : vector<8x8xbf16>, vector<8x32xbf16>, vector<8x32xf32> -> vector<8x32xf32>
    %135 = arith.addf %114, %134 : vector<8x32xf32>
    %c0_45 = arith.constant 0 : index
    %c0_46 = arith.constant 0 : index
    %136 = vector.load %arg12[%c0_45, %c0_46] : memref<1x32xf32, #tpu.memory_space<vmem>>, vector<1x32xf32>
    %137 = vector.shape_cast %136 : vector<1x32xf32> to vector<32xf32>
    %138 = vector.shape_cast %137 : vector<32xf32> to vector<1x32xf32>
    %139 = vector.broadcast %138 : vector<1x32xf32> to vector<8x32xf32>
    %140 = arith.addf %135, %139 : vector<8x32xf32>
    %141 = arith.addf %7, %140 : vector<8x32xf32>
    %c0_47 = arith.constant 0 : index
    %c0_48 = arith.constant 0 : index
    %142 = vector.load %arg13[%c0_47, %c0_48] : memref<1x32xf32, #tpu.memory_space<vmem>>, vector<1x32xf32>
    %143 = vector.shape_cast %142 : vector<1x32xf32> to vector<32xf32>
    %c0_49 = arith.constant 0 : index
    %c0_50 = arith.constant 0 : index
    %144 = vector.load %arg14[%c0_49, %c0_50] : memref<1x32xf32, #tpu.memory_space<vmem>>, vector<1x32xf32>
    %145 = vector.shape_cast %144 : vector<1x32xf32> to vector<32xf32>
    %cst_51 = arith.constant dense<0.000000e+00> : vector<8xf32>
    %146 = vector.multi_reduction <add>, %141, %cst_51 [1] : vector<8x32xf32> to vector<8xf32>
    %147 = vector.shape_cast %146 : vector<8xf32> to vector<8x1xf32>
    %cst_52 = arith.constant 3.200000e+01 : f32
    %148 = vector.broadcast %cst_52 : f32 to vector<8x1xf32>
    %149 = arith.divf %147, %148 : vector<8x1xf32>
    %150 = vector.broadcast %149 : vector<8x1xf32> to vector<8x32xf32>
    %151 = arith.subf %141, %150 : vector<8x32xf32>
    %152 = arith.mulf %151, %151 : vector<8x32xf32>
    %cst_53 = arith.constant dense<0.000000e+00> : vector<8xf32>
    %153 = vector.multi_reduction <add>, %152, %cst_53 [1] : vector<8x32xf32> to vector<8xf32>
    %154 = vector.shape_cast %153 : vector<8xf32> to vector<8x1xf32>
    %cst_54 = arith.constant 3.200000e+01 : f32
    %155 = vector.broadcast %cst_54 : f32 to vector<8x1xf32>
    %156 = arith.divf %154, %155 : vector<8x1xf32>
    %157 = vector.broadcast %149 : vector<8x1xf32> to vector<8x32xf32>
    %158 = arith.subf %141, %157 : vector<8x32xf32>
    %cst_55 = arith.constant 9.99999974E-6 : f32
    %159 = vector.broadcast %cst_55 : f32 to vector<8x1xf32>
    %160 = arith.addf %156, %159 : vector<8x1xf32>
    %161 = math.rsqrt %160 : vector<8x1xf32>
    %162 = vector.broadcast %161 : vector<8x1xf32> to vector<8x32xf32>
    %163 = arith.mulf %158, %162 : vector<8x32xf32>
    %164 = vector.shape_cast %143 : vector<32xf32> to vector<1x32xf32>
    %165 = vector.broadcast %164 : vector<1x32xf32> to vector<8x32xf32>
    %166 = arith.mulf %163, %165 : vector<8x32xf32>
    %167 = vector.shape_cast %145 : vector<32xf32> to vector<1x32xf32>
    %168 = vector.broadcast %167 : vector<1x32xf32> to vector<8x32xf32>
    %169 = arith.addf %166, %168 : vector<8x32xf32>
    %170 = arith.truncf %169 : vector<8x32xf32> to vector<8x32xbf16>
    %c0_56 = arith.constant 0 : index
    %c0_57 = arith.constant 0 : index
    %171 = vector.load %arg15[%c0_56, %c0_57] : memref<32x32xbf16, #tpu.memory_space<vmem>>, vector<32x32xbf16>
    %cst_58 = arith.constant dense<0.000000e+00> : vector<8x32xf32>
    %172 = tpu.matmul %170, %171, %cst_58 {dimension_numbers = #tpu.dot_dimension_numbers<[1], [0], [0], [1], [0, 0, 1, 1], [], []>} : vector<8x32xbf16>, vector<32x32xbf16>, vector<8x32xf32> -> vector<8x32xf32>
    %c0_59 = arith.constant 0 : index
    %c0_60 = arith.constant 0 : index
    %173 = vector.load %arg16[%c0_59, %c0_60] : memref<1x32xf32, #tpu.memory_space<vmem>>, vector<1x32xf32>
    %174 = vector.shape_cast %173 : vector<1x32xf32> to vector<32xf32>
    %175 = vector.shape_cast %174 : vector<32xf32> to vector<1x32xf32>
    %176 = vector.broadcast %175 : vector<1x32xf32> to vector<8x32xf32>
    %177 = arith.addf %172, %176 : vector<8x32xf32>
    %cst_61 = arith.constant 0.353553385 : f32
    %178 = vector.broadcast %cst_61 : f32 to vector<8x32xf32>
    %179 = arith.mulf %177, %178 : vector<8x32xf32>
    %180 = arith.truncf %179 : vector<8x32xf32> to vector<8x32xbf16>
    %c0_62 = arith.constant 0 : index
    %c0_63 = arith.constant 0 : index
    %181 = vector.load %arg30[%c0_62, %c0_63] : memref<8x32xbf16, #tpu.memory_space<vmem>>, vector<8x32xbf16>
    %c0_64 = arith.constant 0 : index
    %c0_65 = arith.constant 0 : index
    %182 = vector.load %arg31[%c0_64, %c0_65] : memref<8x32xbf16, #tpu.memory_space<vmem>>, vector<8x32xbf16>
    %c0_66 = arith.constant 0 : index
    %c0_67 = arith.constant 0 : index
    %183 = vector.load %arg19[%c0_66, %c0_67] : memref<32x32xbf16, #tpu.memory_space<vmem>>, vector<32x32xbf16>
    %cst_68 = arith.constant 0.000000e+00 : f32
    %184 = vector.broadcast %cst_68 : f32 to vector<8x32xf32>
    %185 = vector.extract_strided_slice %180 {offsets = [0, 0], sizes = [8, 8], strides = [1, 1]} : vector<8x32xbf16> to vector<8x8xbf16>
    %186 = vector.extract_strided_slice %181 {offsets = [0, 0], sizes = [8, 8], strides = [1, 1]} : vector<8x32xbf16> to vector<8x8xbf16>
    %cst_69 = arith.constant dense<0.000000e+00> : vector<8x8xf32>
    %187 = tpu.matmul %185, %186, %cst_69 {dimension_numbers = #tpu.dot_dimension_numbers<[1], [1], [0], [0], [0, 0, 1, 0], [], []>} : vector<8x8xbf16>, vector<8x8xbf16>, vector<8x8xf32> -> vector<8x8xf32>
    %cst_70 = arith.constant dense<0xFF800000> : vector<8xf32>
    %188 = vector.multi_reduction <maximumf>, %187, %cst_70 [1] : vector<8x8xf32> to vector<8xf32>
    %189 = vector.shape_cast %188 : vector<8xf32> to vector<8x1xf32>
    %190 = vector.broadcast %189 : vector<8x1xf32> to vector<8x8xf32>
    %191 = arith.subf %187, %190 : vector<8x8xf32>
    %192 = math.exp %191 : vector<8x8xf32>
    %cst_71 = arith.constant dense<0.000000e+00> : vector<8xf32>
    %193 = vector.multi_reduction <add>, %192, %cst_71 [1] : vector<8x8xf32> to vector<8xf32>
    %194 = vector.shape_cast %193 : vector<8xf32> to vector<8x1xf32>
    %195 = tpu.reciprocal %194 {approx = true} : vector<8x1xf32> -> vector<8x1xf32>
    %196 = vector.broadcast %195 : vector<8x1xf32> to vector<8x8xf32>
    %197 = arith.mulf %192, %196 : vector<8x8xf32>
    %198 = arith.truncf %197 : vector<8x8xf32> to vector<8x8xbf16>
    %199 = vector.extract_strided_slice %182 {offsets = [0, 0], sizes = [8, 8], strides = [1, 1]} : vector<8x32xbf16> to vector<8x8xbf16>
    %cst_72 = arith.constant dense<0.000000e+00> : vector<8x8xf32>
    %200 = tpu.matmul %198, %199, %cst_72 {dimension_numbers = #tpu.dot_dimension_numbers<[1], [0], [0], [1], [0, 0, 1, 1], [], []>} : vector<8x8xbf16>, vector<8x8xbf16>, vector<8x8xf32> -> vector<8x8xf32>
    %201 = arith.truncf %200 : vector<8x8xf32> to vector<8x8xbf16>
    %202 = vector.extract_strided_slice %183 {offsets = [0, 0], sizes = [8, 32], strides = [1, 1]} : vector<32x32xbf16> to vector<8x32xbf16>
    %cst_73 = arith.constant dense<0.000000e+00> : vector<8x32xf32>
    %203 = tpu.matmul %201, %202, %cst_73 {dimension_numbers = #tpu.dot_dimension_numbers<[1], [0], [0], [1], [0, 0, 1, 1], [], []>} : vector<8x8xbf16>, vector<8x32xbf16>, vector<8x32xf32> -> vector<8x32xf32>
    %204 = arith.addf %184, %203 : vector<8x32xf32>
    %205 = vector.extract_strided_slice %180 {offsets = [0, 8], sizes = [8, 8], strides = [1, 1]} : vector<8x32xbf16> to vector<8x8xbf16>
    %206 = vector.extract_strided_slice %181 {offsets = [0, 8], sizes = [8, 8], strides = [1, 1]} : vector<8x32xbf16> to vector<8x8xbf16>
    %cst_74 = arith.constant dense<0.000000e+00> : vector<8x8xf32>
    %207 = tpu.matmul %205, %206, %cst_74 {dimension_numbers = #tpu.dot_dimension_numbers<[1], [1], [0], [0], [0, 0, 1, 0], [], []>} : vector<8x8xbf16>, vector<8x8xbf16>, vector<8x8xf32> -> vector<8x8xf32>
    %cst_75 = arith.constant dense<0xFF800000> : vector<8xf32>
    %208 = vector.multi_reduction <maximumf>, %207, %cst_75 [1] : vector<8x8xf32> to vector<8xf32>
    %209 = vector.shape_cast %208 : vector<8xf32> to vector<8x1xf32>
    %210 = vector.broadcast %209 : vector<8x1xf32> to vector<8x8xf32>
    %211 = arith.subf %207, %210 : vector<8x8xf32>
    %212 = math.exp %211 : vector<8x8xf32>
    %cst_76 = arith.constant dense<0.000000e+00> : vector<8xf32>
    %213 = vector.multi_reduction <add>, %212, %cst_76 [1] : vector<8x8xf32> to vector<8xf32>
    %214 = vector.shape_cast %213 : vector<8xf32> to vector<8x1xf32>
    %215 = tpu.reciprocal %214 {approx = true} : vector<8x1xf32> -> vector<8x1xf32>
    %216 = vector.broadcast %215 : vector<8x1xf32> to vector<8x8xf32>
    %217 = arith.mulf %212, %216 : vector<8x8xf32>
    %218 = arith.truncf %217 : vector<8x8xf32> to vector<8x8xbf16>
    %219 = vector.extract_strided_slice %182 {offsets = [0, 8], sizes = [8, 8], strides = [1, 1]} : vector<8x32xbf16> to vector<8x8xbf16>
    %cst_77 = arith.constant dense<0.000000e+00> : vector<8x8xf32>
    %220 = tpu.matmul %218, %219, %cst_77 {dimension_numbers = #tpu.dot_dimension_numbers<[1], [0], [0], [1], [0, 0, 1, 1], [], []>} : vector<8x8xbf16>, vector<8x8xbf16>, vector<8x8xf32> -> vector<8x8xf32>
    %221 = arith.truncf %220 : vector<8x8xf32> to vector<8x8xbf16>
    %222 = vector.extract_strided_slice %183 {offsets = [8, 0], sizes = [8, 32], strides = [1, 1]} : vector<32x32xbf16> to vector<8x32xbf16>
    %cst_78 = arith.constant dense<0.000000e+00> : vector<8x32xf32>
    %223 = tpu.matmul %221, %222, %cst_78 {dimension_numbers = #tpu.dot_dimension_numbers<[1], [0], [0], [1], [0, 0, 1, 1], [], []>} : vector<8x8xbf16>, vector<8x32xbf16>, vector<8x32xf32> -> vector<8x32xf32>
    %224 = arith.addf %204, %223 : vector<8x32xf32>
    %225 = vector.extract_strided_slice %180 {offsets = [0, 16], sizes = [8, 8], strides = [1, 1]} : vector<8x32xbf16> to vector<8x8xbf16>
    %226 = vector.extract_strided_slice %181 {offsets = [0, 16], sizes = [8, 8], strides = [1, 1]} : vector<8x32xbf16> to vector<8x8xbf16>
    %cst_79 = arith.constant dense<0.000000e+00> : vector<8x8xf32>
    %227 = tpu.matmul %225, %226, %cst_79 {dimension_numbers = #tpu.dot_dimension_numbers<[1], [1], [0], [0], [0, 0, 1, 0], [], []>} : vector<8x8xbf16>, vector<8x8xbf16>, vector<8x8xf32> -> vector<8x8xf32>
    %cst_80 = arith.constant dense<0xFF800000> : vector<8xf32>
    %228 = vector.multi_reduction <maximumf>, %227, %cst_80 [1] : vector<8x8xf32> to vector<8xf32>
    %229 = vector.shape_cast %228 : vector<8xf32> to vector<8x1xf32>
    %230 = vector.broadcast %229 : vector<8x1xf32> to vector<8x8xf32>
    %231 = arith.subf %227, %230 : vector<8x8xf32>
    %232 = math.exp %231 : vector<8x8xf32>
    %cst_81 = arith.constant dense<0.000000e+00> : vector<8xf32>
    %233 = vector.multi_reduction <add>, %232, %cst_81 [1] : vector<8x8xf32> to vector<8xf32>
    %234 = vector.shape_cast %233 : vector<8xf32> to vector<8x1xf32>
    %235 = tpu.reciprocal %234 {approx = true} : vector<8x1xf32> -> vector<8x1xf32>
    %236 = vector.broadcast %235 : vector<8x1xf32> to vector<8x8xf32>
    %237 = arith.mulf %232, %236 : vector<8x8xf32>
    %238 = arith.truncf %237 : vector<8x8xf32> to vector<8x8xbf16>
    %239 = vector.extract_strided_slice %182 {offsets = [0, 16], sizes = [8, 8], strides = [1, 1]} : vector<8x32xbf16> to vector<8x8xbf16>
    %cst_82 = arith.constant dense<0.000000e+00> : vector<8x8xf32>
    %240 = tpu.matmul %238, %239, %cst_82 {dimension_numbers = #tpu.dot_dimension_numbers<[1], [0], [0], [1], [0, 0, 1, 1], [], []>} : vector<8x8xbf16>, vector<8x8xbf16>, vector<8x8xf32> -> vector<8x8xf32>
    %241 = arith.truncf %240 : vector<8x8xf32> to vector<8x8xbf16>
    %242 = vector.extract_strided_slice %183 {offsets = [16, 0], sizes = [8, 32], strides = [1, 1]} : vector<32x32xbf16> to vector<8x32xbf16>
    %cst_83 = arith.constant dense<0.000000e+00> : vector<8x32xf32>
    %243 = tpu.matmul %241, %242, %cst_83 {dimension_numbers = #tpu.dot_dimension_numbers<[1], [0], [0], [1], [0, 0, 1, 1], [], []>} : vector<8x8xbf16>, vector<8x32xbf16>, vector<8x32xf32> -> vector<8x32xf32>
    %244 = arith.addf %224, %243 : vector<8x32xf32>
    %245 = vector.extract_strided_slice %180 {offsets = [0, 24], sizes = [8, 8], strides = [1, 1]} : vector<8x32xbf16> to vector<8x8xbf16>
    %246 = vector.extract_strided_slice %181 {offsets = [0, 24], sizes = [8, 8], strides = [1, 1]} : vector<8x32xbf16> to vector<8x8xbf16>
    %cst_84 = arith.constant dense<0.000000e+00> : vector<8x8xf32>
    %247 = tpu.matmul %245, %246, %cst_84 {dimension_numbers = #tpu.dot_dimension_numbers<[1], [1], [0], [0], [0, 0, 1, 0], [], []>} : vector<8x8xbf16>, vector<8x8xbf16>, vector<8x8xf32> -> vector<8x8xf32>
    %cst_85 = arith.constant dense<0xFF800000> : vector<8xf32>
    %248 = vector.multi_reduction <maximumf>, %247, %cst_85 [1] : vector<8x8xf32> to vector<8xf32>
    %249 = vector.shape_cast %248 : vector<8xf32> to vector<8x1xf32>
    %250 = vector.broadcast %249 : vector<8x1xf32> to vector<8x8xf32>
    %251 = arith.subf %247, %250 : vector<8x8xf32>
    %252 = math.exp %251 : vector<8x8xf32>
    %cst_86 = arith.constant dense<0.000000e+00> : vector<8xf32>
    %253 = vector.multi_reduction <add>, %252, %cst_86 [1] : vector<8x8xf32> to vector<8xf32>
    %254 = vector.shape_cast %253 : vector<8xf32> to vector<8x1xf32>
    %255 = tpu.reciprocal %254 {approx = true} : vector<8x1xf32> -> vector<8x1xf32>
    %256 = vector.broadcast %255 : vector<8x1xf32> to vector<8x8xf32>
    %257 = arith.mulf %252, %256 : vector<8x8xf32>
    %258 = arith.truncf %257 : vector<8x8xf32> to vector<8x8xbf16>
    %259 = vector.extract_strided_slice %182 {offsets = [0, 24], sizes = [8, 8], strides = [1, 1]} : vector<8x32xbf16> to vector<8x8xbf16>
    %cst_87 = arith.constant dense<0.000000e+00> : vector<8x8xf32>
    %260 = tpu.matmul %258, %259, %cst_87 {dimension_numbers = #tpu.dot_dimension_numbers<[1], [0], [0], [1], [0, 0, 1, 1], [], []>} : vector<8x8xbf16>, vector<8x8xbf16>, vector<8x8xf32> -> vector<8x8xf32>
    %261 = arith.truncf %260 : vector<8x8xf32> to vector<8x8xbf16>
    %262 = vector.extract_strided_slice %183 {offsets = [24, 0], sizes = [8, 32], strides = [1, 1]} : vector<32x32xbf16> to vector<8x32xbf16>
    %cst_88 = arith.constant dense<0.000000e+00> : vector<8x32xf32>
    %263 = tpu.matmul %261, %262, %cst_88 {dimension_numbers = #tpu.dot_dimension_numbers<[1], [0], [0], [1], [0, 0, 1, 1], [], []>} : vector<8x8xbf16>, vector<8x32xbf16>, vector<8x32xf32> -> vector<8x32xf32>
    %264 = arith.addf %244, %263 : vector<8x32xf32>
    %c0_89 = arith.constant 0 : index
    %c0_90 = arith.constant 0 : index
    %265 = vector.load %arg20[%c0_89, %c0_90] : memref<1x32xf32, #tpu.memory_space<vmem>>, vector<1x32xf32>
    %266 = vector.shape_cast %265 : vector<1x32xf32> to vector<32xf32>
    %267 = vector.shape_cast %266 : vector<32xf32> to vector<1x32xf32>
    %268 = vector.broadcast %267 : vector<1x32xf32> to vector<8x32xf32>
    %269 = arith.addf %264, %268 : vector<8x32xf32>
    %270 = arith.addf %141, %269 : vector<8x32xf32>
    %c0_91 = arith.constant 0 : index
    %c0_92 = arith.constant 0 : index
    %271 = vector.load %arg21[%c0_91, %c0_92] : memref<1x32xf32, #tpu.memory_space<vmem>>, vector<1x32xf32>
    %272 = vector.shape_cast %271 : vector<1x32xf32> to vector<32xf32>
    %c0_93 = arith.constant 0 : index
    %c0_94 = arith.constant 0 : index
    %273 = vector.load %arg22[%c0_93, %c0_94] : memref<1x32xf32, #tpu.memory_space<vmem>>, vector<1x32xf32>
    %274 = vector.shape_cast %273 : vector<1x32xf32> to vector<32xf32>
    %cst_95 = arith.constant dense<0.000000e+00> : vector<8xf32>
    %275 = vector.multi_reduction <add>, %270, %cst_95 [1] : vector<8x32xf32> to vector<8xf32>
    %276 = vector.shape_cast %275 : vector<8xf32> to vector<8x1xf32>
    %cst_96 = arith.constant 3.200000e+01 : f32
    %277 = vector.broadcast %cst_96 : f32 to vector<8x1xf32>
    %278 = arith.divf %276, %277 : vector<8x1xf32>
    %279 = vector.broadcast %278 : vector<8x1xf32> to vector<8x32xf32>
    %280 = arith.subf %270, %279 : vector<8x32xf32>
    %281 = arith.mulf %280, %280 : vector<8x32xf32>
    %cst_97 = arith.constant dense<0.000000e+00> : vector<8xf32>
    %282 = vector.multi_reduction <add>, %281, %cst_97 [1] : vector<8x32xf32> to vector<8xf32>
    %283 = vector.shape_cast %282 : vector<8xf32> to vector<8x1xf32>
    %cst_98 = arith.constant 3.200000e+01 : f32
    %284 = vector.broadcast %cst_98 : f32 to vector<8x1xf32>
    %285 = arith.divf %283, %284 : vector<8x1xf32>
    %286 = vector.broadcast %278 : vector<8x1xf32> to vector<8x32xf32>
    %287 = arith.subf %270, %286 : vector<8x32xf32>
    %cst_99 = arith.constant 9.99999974E-6 : f32
    %288 = vector.broadcast %cst_99 : f32 to vector<8x1xf32>
    %289 = arith.addf %285, %288 : vector<8x1xf32>
    %290 = math.rsqrt %289 : vector<8x1xf32>
    %291 = vector.broadcast %290 : vector<8x1xf32> to vector<8x32xf32>
    %292 = arith.mulf %287, %291 : vector<8x32xf32>
    %293 = vector.shape_cast %272 : vector<32xf32> to vector<1x32xf32>
    %294 = vector.broadcast %293 : vector<1x32xf32> to vector<8x32xf32>
    %295 = arith.mulf %292, %294 : vector<8x32xf32>
    %296 = vector.shape_cast %274 : vector<32xf32> to vector<1x32xf32>
    %297 = vector.broadcast %296 : vector<1x32xf32> to vector<8x32xf32>
    %298 = arith.addf %295, %297 : vector<8x32xf32>
    %299 = arith.truncf %298 : vector<8x32xf32> to vector<8x32xbf16>
    %c0_100 = arith.constant 0 : index
    %c0_101 = arith.constant 0 : index
    %300 = vector.load %arg23[%c0_100, %c0_101] : memref<32x64xbf16, #tpu.memory_space<vmem>>, vector<32x64xbf16>
    %cst_102 = arith.constant dense<0.000000e+00> : vector<8x64xf32>
    %301 = tpu.matmul %299, %300, %cst_102 {dimension_numbers = #tpu.dot_dimension_numbers<[1], [0], [0], [1], [0, 0, 1, 1], [], []>} : vector<8x32xbf16>, vector<32x64xbf16>, vector<8x64xf32> -> vector<8x64xf32>
    %c0_103 = arith.constant 0 : index
    %c0_104 = arith.constant 0 : index
    %302 = vector.load %arg24[%c0_103, %c0_104] : memref<1x64xf32, #tpu.memory_space<vmem>>, vector<1x64xf32>
    %303 = vector.shape_cast %302 : vector<1x64xf32> to vector<64xf32>
    %304 = vector.shape_cast %303 : vector<64xf32> to vector<1x64xf32>
    %305 = vector.broadcast %304 : vector<1x64xf32> to vector<8x64xf32>
    %306 = arith.addf %301, %305 : vector<8x64xf32>
    %cst_105 = arith.constant 0.000000e+00 : f32
    %307 = vector.broadcast %cst_105 : f32 to vector<8x64xf32>
    %308 = arith.maximumf %306, %307 : vector<8x64xf32>
    %309 = arith.truncf %308 : vector<8x64xf32> to vector<8x64xbf16>
    %c0_106 = arith.constant 0 : index
    %c0_107 = arith.constant 0 : index
    %310 = vector.load %arg25[%c0_106, %c0_107] : memref<64x32xbf16, #tpu.memory_space<vmem>>, vector<64x32xbf16>
    %cst_108 = arith.constant dense<0.000000e+00> : vector<8x32xf32>
    %311 = tpu.matmul %309, %310, %cst_108 {dimension_numbers = #tpu.dot_dimension_numbers<[1], [0], [0], [1], [0, 0, 1, 1], [], []>} : vector<8x64xbf16>, vector<64x32xbf16>, vector<8x32xf32> -> vector<8x32xf32>
    %c0_109 = arith.constant 0 : index
    %c0_110 = arith.constant 0 : index
    %312 = vector.load %arg26[%c0_109, %c0_110] : memref<1x32xf32, #tpu.memory_space<vmem>>, vector<1x32xf32>
    %313 = vector.shape_cast %312 : vector<1x32xf32> to vector<32xf32>
    %314 = vector.shape_cast %313 : vector<32xf32> to vector<1x32xf32>
    %315 = vector.broadcast %314 : vector<1x32xf32> to vector<8x32xf32>
    %316 = arith.addf %311, %315 : vector<8x32xf32>
    %317 = arith.addf %270, %316 : vector<8x32xf32>
    %c0_111 = arith.constant 0 : index
    %c0_112 = arith.constant 0 : index
    %c0_113 = arith.constant 0 : index
    %318 = vector.load %arg27[%c0_111, %c0_112, %c0_113] : memref<1x8x32xf32, #tpu.memory_space<vmem>>, vector<1x8x32xf32>
    %319 = vector.shape_cast %318 : vector<1x8x32xf32> to vector<8x32xf32>
    %320 = vector.shape_cast %317 : vector<8x32xf32> to vector<1x8x32xf32>
    tpu.vector_store %arg27[%c0_111, %c0_112, %c0_113], %320 {strides = array<i32>} : memref<1x8x32xf32, #tpu.memory_space<vmem>>, vector<1x8x32xf32>,
    return
  }
  func.func @transform_0(%arg0: i32, %arg1: i32) -> (i32, i32, i32) {
    %c0_i32 = arith.constant 0 : i32
    %c0_i32_0 = arith.constant 0 : i32
    %c0_i32_1 = arith.constant 0 : i32
    return %arg0, %c0_i32, %c0_i32_0 : i32, i32, i32
  }
  func.func @transform_1(%arg0: i32, %arg1: i32) -> (i32, i32, i32) {
    %c0_i32 = arith.constant 0 : i32
    %c0_i32_0 = arith.constant 0 : i32
    %c0_i32_1 = arith.constant 0 : i32
    return %arg0, %c0_i32, %c0_i32_0 : i32, i32, i32
  }
  func.func @transform_2(%arg0: i32, %arg1: i32) -> (i32, i32) {
    %c0_i32 = arith.constant 0 : i32
    %c0_i32_0 = arith.constant 0 : i32
    return %arg1, %c0_i32 : i32, i32
  }
  func.func @transform_3(%arg0: i32, %arg1: i32) -> (i32, i32) {
    %c0_i32 = arith.constant 0 : i32
    %c0_i32_0 = arith.constant 0 : i32
    %c0_i32_1 = arith.constant 0 : i32
    return %c0_i32, %c0_i32_0 : i32, i32
  }
  func.func @transform_4(%arg0: i32, %arg1: i32) -> (i32, i32) {
    %c0_i32 = arith.constant 0 : i32
    %c0_i32_0 = arith.constant 0 : i32
    %c0_i32_1 = arith.constant 0 : i32
    return %c0_i32, %c0_i32_0 : i32, i32
  }
  func.func @transform_5(%arg0: i32, %arg1: i32) -> (i32, i32) {
    %c0_i32 = arith.constant 0 : i32
    %c0_i32_0 = arith.constant 0 : i32
    %c0_i32_1 = arith.constant 0 : i32
    return %c0_i32, %c0_i32_0 : i32, i32
  }
  func.func @transform_6(%arg0: i32, %arg1: i32) -> (i32, i32) {
    %c0_i32 = arith.constant 0 : i32
    %c0_i32_0 = arith.constant 0 : i32
    %c0_i32_1 = arith.constant 0 : i32
    return %c0_i32, %c0_i32_0 : i32, i32
  }
  func.func @transform_7(%arg0: i32, %arg1: i32) -> (i32, i32) {
    %c0_i32 = arith.constant 0 : i32
    %c0_i32_0 = arith.constant 0 : i32
    %c0_i32_1 = arith.constant 0 : i32
    return %c0_i32, %c0_i32_0 : i32, i32
  }
  func.func @transform_8(%arg0: i32, %arg1: i32) -> (i32, i32) {
    %c0_i32 = arith.constant 0 : i32
    %c0_i32_0 = arith.constant 0 : i32
    %c0_i32_1 = arith.constant 0 : i32
    return %c0_i32, %c0_i32_0 : i32, i32
  }
  func.func @transform_9(%arg0: i32, %arg1: i32) -> (i32, i32) {
    %c0_i32 = arith.constant 0 : i32
    %c0_i32_0 = arith.constant 0 : i32
    %c0_i32_1 = arith.constant 0 : i32
    return %c0_i32, %c0_i32_0 : i32, i32
  }
  func.func @transform_10(%arg0: i32, %arg1: i32) -> (i32, i32) {
    %c0_i32 = arith.constant 0 : i32
    %c0_i32_0 = arith.constant 0 : i32
    %c0_i32_1 = arith.constant 0 : i32
    return %c0_i32, %c0_i32_0 : i32, i32
  }
  func.func @transform_11(%arg0: i32, %arg1: i32) -> (i32, i32) {
    %c0_i32 = arith.constant 0 : i32
    %c0_i32_0 = arith.constant 0 : i32
    %c0_i32_1 = arith.constant 0 : i32
    return %c0_i32, %c0_i32_0 : i32, i32
  }
  func.func @transform_12(%arg0: i32, %arg1: i32) -> (i32, i32) {
    %c0_i32 = arith.constant 0 : i32
    %c0_i32_0 = arith.constant 0 : i32
    %c0_i32_1 = arith.constant 0 : i32
    return %c0_i32, %c0_i32_0 : i32, i32
  }
  func.func @transform_13(%arg0: i32, %arg1: i32) -> (i32, i32) {
    %c0_i32 = arith.constant 0 : i32
    %c0_i32_0 = arith.constant 0 : i32
    %c0_i32_1 = arith.constant 0 : i32
    return %c0_i32, %c0_i32_0 : i32, i32
  }
  func.func @transform_14(%arg0: i32, %arg1: i32) -> (i32, i32) {
    %c0_i32 = arith.constant 0 : i32
    %c0_i32_0 = arith.constant 0 : i32
    %c0_i32_1 = arith.constant 0 : i32
    return %c0_i32, %c0_i32_0 : i32, i32
  }
  func.func @transform_15(%arg0: i32, %arg1: i32) -> (i32, i32) {
    %c0_i32 = arith.constant 0 : i32
    %c0_i32_0 = arith.constant 0 : i32
    %c0_i32_1 = arith.constant 0 : i32
    return %c0_i32, %c0_i32_0 : i32, i32
  }
  func.func @transform_16(%arg0: i32, %arg1: i32) -> (i32, i32) {
    %c0_i32 = arith.constant 0 : i32
    %c0_i32_0 = arith.constant 0 : i32
    %c0_i32_1 = arith.constant 0 : i32
    return %c0_i32, %c0_i32_0 : i32, i32
  }
  func.func @transform_17(%arg0: i32, %arg1: i32) -> (i32, i32) {
    %c0_i32 = arith.constant 0 : i32
    %c0_i32_0 = arith.constant 0 : i32
    %c0_i32_1 = arith.constant 0 : i32
    return %c0_i32, %c0_i32_0 : i32, i32
  }
  func.func @transform_18(%arg0: i32, %arg1: i32) -> (i32, i32) {
    %c0_i32 = arith.constant 0 : i32
    %c0_i32_0 = arith.constant 0 : i32
    %c0_i32_1 = arith.constant 0 : i32
    return %c0_i32, %c0_i32_0 : i32, i32
  }
  func.func @transform_19(%arg0: i32, %arg1: i32) -> (i32, i32) {
    %c0_i32 = arith.constant 0 : i32
    %c0_i32_0 = arith.constant 0 : i32
    %c0_i32_1 = arith.constant 0 : i32
    return %c0_i32, %c0_i32_0 : i32, i32
  }
  func.func @transform_20(%arg0: i32, %arg1: i32) -> (i32, i32) {
    %c0_i32 = arith.constant 0 : i32
    %c0_i32_0 = arith.constant 0 : i32
    %c0_i32_1 = arith.constant 0 : i32
    return %c0_i32, %c0_i32_0 : i32, i32
  }
  func.func @transform_21(%arg0: i32, %arg1: i32) -> (i32, i32) {
    %c0_i32 = arith.constant 0 : i32
    %c0_i32_0 = arith.constant 0 : i32
    %c0_i32_1 = arith.constant 0 : i32
    return %c0_i32, %c0_i32_0 : i32, i32
  }
  func.func @transform_22(%arg0: i32, %arg1: i32) -> (i32, i32) {
    %c0_i32 = arith.constant 0 : i32
    %c0_i32_0 = arith.constant 0 : i32
    %c0_i32_1 = arith.constant 0 : i32
    return %c0_i32, %c0_i32_0 : i32, i32
  }
  func.func @transform_23(%arg0: i32, %arg1: i32) -> (i32, i32) {
    %c0_i32 = arith.constant 0 : i32
    %c0_i32_0 = arith.constant 0 : i32
    %c0_i32_1 = arith.constant 0 : i32
    return %c0_i32, %c0_i32_0 : i32, i32
  }
  func.func @transform_24(%arg0: i32, %arg1: i32) -> (i32, i32) {
    %c0_i32 = arith.constant 0 : i32
    %c0_i32_0 = arith.constant 0 : i32
    %c0_i32_1 = arith.constant 0 : i32
    return %c0_i32, %c0_i32_0 : i32, i32
  }
  func.func @transform_25(%arg0: i32, %arg1: i32) -> (i32, i32, i32) {
    %c0_i32 = arith.constant 0 : i32
    %c0_i32_0 = arith.constant 0 : i32
    return %arg0, %arg1, %c0_i32 : i32, i32, i32
  }
}

</mosaic_0001>

<llo_original>
// kernel: tpu_custom_call.1
$region0: #{tpu_custom_call.1}
  #allocation0 [shape = 'u32[]', space=smem, size = 0x4, offset = 0x4, fixed_abs, tag = 'smem constant byte address 0x4 - core index']
  #allocation1 [shape = 'u32[144,128]{1,0:T(1,128)}', space=vmem, size = 0x12000, scoped, tag = 'internal scratch']
  #allocation2 [shape = 'bf16[8,32]{1,0:T(8,128)(2,1)}', space=vmem, size = 0x800, scoped, tag = 'scratch operand']
  #allocation3 [shape = 'bf16[8,32]{1,0:T(8,128)(2,1)}', space=vmem, size = 0x800, scoped, tag = 'scratch operand']
  #allocation4 [shape = 'bf16[8,32]{1,0:T(8,128)(2,1)}', space=vmem, size = 0x800, scoped, tag = 'scratch operand']
  #allocation5 [shape = 'bf16[8,32]{1,0:T(8,128)(2,1)}', space=vmem, size = 0x800, scoped, tag = 'scratch operand']
  %s0 = inlined_call_operand.vmem [shape: f32[2,8,32], index: 0, kind: input, shape index: {}]
  %s1 = inlined_call_operand.vmem [shape: f32[2,8,32], index: 1, kind: input, shape index: {}]
  %s2 = inlined_call_operand.hbm [shape: f32[8,8], index: 2, kind: input, shape index: {}]
  %s3 = inlined_call_operand.hbm [shape: f32[1,32], index: 3, kind: input, shape index: {}]
  %s4 = inlined_call_operand.hbm [shape: f32[1,32], index: 4, kind: input, shape index: {}]
  %s5 = inlined_call_operand.vmem [shape: bf16[32,32], index: 5, kind: input, shape index: {}]
  %s6 = inlined_call_operand.hbm [shape: f32[1,32], index: 6, kind: input, shape index: {}]
  %s7 = inlined_call_operand.hbm [shape: bf16[32,64], index: 7, kind: input, shape index: {}]
  %s8 = inlined_call_operand.hbm [shape: f32[1,64], index: 8, kind: input, shape index: {}]
  %s9 = inlined_call_operand.vmem [shape: bf16[32,32], index: 9, kind: input, shape index: {}]
  %s10 = inlined_call_operand.hbm [shape: f32[1,32], index: 10, kind: input, shape index: {}]
  %s11 = inlined_call_operand.hbm [shape: f32[1,32], index: 11, kind: input, shape index: {}]
  %s12 = inlined_call_operand.hbm [shape: f32[1,32], index: 12, kind: input, shape index: {}]
  %s13 = inlined_call_operand.vmem [shape: bf16[32,32], index: 13, kind: input, shape index: {}]
  %s14 = inlined_call_operand.hbm [shape: f32[1,32], index: 14, kind: input, shape index: {}]
  %s15 = inlined_call_operand.hbm [shape: bf16[32,64], index: 15, kind: input, shape index: {}]
  %s16 = inlined_call_operand.hbm [shape: f32[1,64], index: 16, kind: input, shape index: {}]
  %s17 = inlined_call_operand.vmem [shape: bf16[32,32], index: 17, kind: input, shape index: {}]
  %s18 = inlined_call_operand.vmem [shape: f32[1,32], index: 18, kind: input, shape index: {}]
  %s19 = inlined_call_operand.vmem [shape: f32[1,32], index: 19, kind: input, shape index: {}]
  %s20 = inlined_call_operand.vmem [shape: f32[1,32], index: 20, kind: input, shape index: {}]
  %s21 = inlined_call_operand.hbm [shape: bf16[32,64], index: 21, kind: input, shape index: {}]
  %s22 = inlined_call_operand.vmem [shape: f32[1,64], index: 22, kind: input, shape index: {}]
  %s23 = inlined_call_operand.vmem [shape: bf16[64,32], index: 23, kind: input, shape index: {}]
  %s24 = inlined_call_operand.vmem [shape: f32[1,32], index: 24, kind: input, shape index: {}]
  %s25 = inlined_call_operand.hbm [shape: f32[2,8,32], index: 25, kind: output, shape index: {}]
  %s26 = sld [smem:[#allocation0]]
  $region189: #{tpu_custom_call.1} parent=0
    _
  %s28 = ssub.s32 1, %s26
  %s29 = scalar_select 0, %s28, %s26
  $region1: #{tpu_custom_call.1} parent=0
    #allocation6 [shape = 'u8[4096]{0}', space=vmem, size = 0x1000, scoped, tag = 'input window, operand 2, single buffered']
    #allocation7 [shape = 's32[2]{0}', space=sflag, size = 0x8, scoped, tag = 'scoped memory for tpu_custom_call.1']
    #allocation8 [shape = 's32[2]{0}', space=sflag, size = 0x8, scoped, tag = 'scoped memory for tpu_custom_call.1']
    #allocation9 [shape = 'u8[512]{0}', space=vmem, size = 0x400, scoped, tag = 'input window, operand 3, single buffered']
    #allocation10 [shape = 's32[1]{0}', space=sflag, size = 0x4, scoped, tag = 'scoped memory for tpu_custom_call.1']
    #allocation11 [shape = 'u8[512]{0}', space=vmem, size = 0x400, scoped, tag = 'input window, operand 4, single buffered']
    #allocation12 [shape = 'u8[512]{0}', space=vmem, size = 0x400, scoped, tag = 'input window, operand 6, single buffered']
    #allocation13 [shape = 's32[1]{0}', space=sflag, size = 0x4, scoped, tag = 'scoped memory for tpu_custom_call.1']
    #allocation14 [shape = 'u8[8192]{0}', space=vmem, size = 0x2000, scoped, tag = 'input window, operand 7, single buffered']
    #allocation15 [shape = 'u8[512]{0}', space=vmem, size = 0x400, scoped, tag = 'input window, operand 8, single buffered']
    #allocation16 [shape = 's32[1]{0}', space=sflag, size = 0x4, scoped, tag = 'scoped memory for tpu_custom_call.1']
    #allocation17 [shape = 'u8[512]{0}', space=vmem, size = 0x400, scoped, tag = 'input window, operand 10, single buffered']
    #allocation18 [shape = 'u8[512]{0}', space=vmem, size = 0x400, scoped, tag = 'input window, operand 11, single buffered']
    #allocation19 [shape = 's32[1]{0}', space=sflag, size = 0x4, scoped, tag = 'scoped memory for tpu_custom_call.1']
    #allocation20 [shape = 'u8[512]{0}', space=vmem, size = 0x400, scoped, tag = 'input window, operand 12, single buffered']
    #allocation21 [shape = 'u8[512]{0}', space=vmem, size = 0x400, scoped, tag = 'input window, operand 14, single buffered']
    #allocation22 [shape = 's32[1]{0}', space=sflag, size = 0x4, scoped, tag = 'scoped memory for tpu_custom_call.1']
    #allocation23 [shape = 'u8[8192]{0}', space=vmem, size = 0x2000, scoped, tag = 'input window, operand 15, single buffered']
    #allocation24 [shape = 'u8[512]{0}', space=vmem, size = 0x400, scoped, tag = 'input window, operand 16, single buffered']
    #allocation25 [shape = 's32[1]{0}', space=sflag, size = 0x4, scoped, tag = 'scoped memory for tpu_custom_call.1']
    #allocation26 [shape = 'u8[8192]{0}', space=vmem, size = 0x2000, scoped, tag = 'input window, operand 21, single buffered']
    #allocation27 [shape = 'u8[8192]{0}', space=vmem, size = 0x2000, scoped, tag = 'output window, operand 0']
    %30 = vsyncpa [#allocation7], 0
    %31 = vsyncpa [#allocation10], 0
    %32 = vsyncpa [#allocation13], 0
    %33 = vsyncpa [#allocation16], 0
    %34 = vsyncpa [#allocation19], 0
    %35 = vsyncpa [#allocation22], 0
    %36 = vsyncpa [#allocation25], 0
    %37 = vsyncpa [#allocation8], 0
    %s38 = scalar_lea.sflag [#allocation8], 1
    %39 = vsyncpa %s38, 0
    loop: start=0, step=1, limit=4
    $region2: #{tpu_custom_call.1} parent=1 // loop_pre_header
      _
    $region3: #{tpu_custom_call.1} parent=1 // loop_header
      %s41 = sphi 0, %s45
      %p42 = scmp.ge.s32.totalorder %s41, 4
      %s48 = sphi 0, %s60
      %s49 = sphi 0, %s56
      %s50 = sphi 0, %s48
      %s51 = sphi 0, %s49
      %s52 = sphi 0, %s50
      %s53 = sphi 0, %s51
      %s63 = sphi 0, %s65
      %s66 = sphi 0, %s63
      %s67 = sphi 0, %s66
      %s83 = sphi 0, %s67
      %s89 = sphi 0, %s91
      %s92 = sphi 0, %s89
      %s93 = sphi 0, %s92
      %s109 = sphi 0, %s93
      %s115 = sphi 0, %s117
      %s118 = sphi 0, %s115
      %s119 = sphi 0, %s118
      %s135 = sphi 0, %s119
      %s139 = sphi 0, %s139
      %s141 = sphi 0, %s139
      %s142 = sphi 0, %s141
      %s156 = sphi 0, %s142
      %s160 = sphi 0, %s160
      %s162 = sphi 0, %s160
      %s163 = sphi 0, %s162
      %s177 = sphi 0, %s163
      %s181 = sphi 0, %s181
      %s183 = sphi 0, %s181
      %s184 = sphi 0, %s183
      %s198 = sphi 0, %s184
      %s202 = sphi 0, %s202
      %s204 = sphi 0, %s202
      %s205 = sphi 0, %s204
      %s219 = sphi 0, %s205
      %s223 = sphi 0, %s223
      %s225 = sphi 0, %s223
      %s226 = sphi 0, %s225
      %s240 = sphi 0, %s226
      %s244 = sphi 0, %s244
      %s246 = sphi 0, %s244
      %s247 = sphi 0, %s246
      %s261 = sphi 0, %s247
      %s265 = sphi 0, %s265
      %s267 = sphi 0, %s265
      %s268 = sphi 0, %s267
      %s282 = sphi 0, %s268
      %s286 = sphi 0, %s286
      %s288 = sphi 0, %s286
      %s289 = sphi 0, %s288
      %s303 = sphi 0, %s289
      %s307 = sphi 0, %s307
      %s309 = sphi 0, %s307
      %s310 = sphi 0, %s309
      %s324 = sphi 0, %s310
      %s328 = sphi 0, %s328
      %s330 = sphi 0, %s328
      %s331 = sphi 0, %s330
      %s345 = sphi 0, %s331
      %s349 = sphi 0, %s349
      %s351 = sphi 0, %s349
      %s352 = sphi 0, %s351
      %s366 = sphi 0, %s352
      %s370 = sphi 0, %s370
      %s372 = sphi 0, %s370
      %s373 = sphi 0, %s372
      %s387 = sphi 0, %s373
      %s391 = sphi 0, %s391
      %s393 = sphi 0, %s391
      %s394 = sphi 0, %s393
      %s408 = sphi 0, %s394
      %s412 = sphi 0, %s412
      %s414 = sphi 0, %s412
      %s415 = sphi 0, %s414
      %s429 = sphi 0, %s415
      %s433 = sphi 0, %s433
      %s435 = sphi 0, %s433
      %s436 = sphi 0, %s435
      %s450 = sphi 0, %s436
      %s454 = sphi 0, %s454
      %s456 = sphi 0, %s454
      %s457 = sphi 0, %s456
      %s471 = sphi 0, %s457
      %s475 = sphi 0, %s475
      %s477 = sphi 0, %s475
      %s478 = sphi 0, %s477
      %s492 = sphi 0, %s478
      %s496 = sphi 0, %s496
      %s498 = sphi 0, %s496
      %s499 = sphi 0, %s498
      %s513 = sphi 0, %s499
      %s517 = sphi 0, %s517
      %s519 = sphi 0, %s517
      %s520 = sphi 0, %s519
      %s534 = sphi 0, %s520
      %s538 = sphi 0, %s538
      %s540 = sphi 0, %s538
      %s541 = sphi 0, %s540
      %s555 = sphi 0, %s541
      %s559 = sphi 0, %s559
      %s561 = sphi 0, %s559
      %s562 = sphi 0, %s561
      %s576 = sphi 0, %s562
      %s580 = sphi 0, %s580
      %s582 = sphi 0, %s580
      %s583 = sphi 0, %s582
      %s597 = sphi 0, %s583
      %s605 = sphi 0, %s607
      %s608 = sphi 0, %s605
      %s609 = sphi 0, %s608
      %s625 = sphi 0, %s609
    $region4: #{tpu_custom_call.1} parent=1 // loop_header_branch
      %44 = sbr.rel (%p42) target = $region8
    $region5: #{tpu_custom_call.1} parent=1 // loop_body
      %s46 = ssub.s32 %s41, 1
      %s47 = ssub.s32 %s41, 2
      %s54 = sadd.s32 1, %s49
      %p55 = scmp.ge.s32.totalorder %s54, 1
      %s56 = scalar_select %p55, 0, %s54
      %s57 = sadd.s32 1, %s48
      %s58 = scalar_select %p55, %s57, %s48
      %p59 = scmp.ge.s32.totalorder %s58, 2
      %s60 = scalar_select %p59, 0, %s58
      %s61 = ssub.s32 %s48, %s60
      %p62 = scmp.eq.s32.totalorder %s61, 0
      %s64 = sadd.s32 %s63, 1
      %s65 = scalar_select %p62, %s63, %s64
      %p68 = pneg %p62
      %p69 = scmp.eq.s32.totalorder %s41, 1
      %p70 = por %p68, %p69
      %p71 = scmp.ne.s32.totalorder %s63, %s66
      %p72 = scmp.eq.s32.totalorder %s41, 0
      %p73 = por %p71, %p72
      %p74 = scmp.ne.s32.totalorder %s63, %s66
      %p75 = scmp.eq.s32.totalorder %s46, 1
      %p76 = por %p74, %p75
      %p77 = scmp.ne.s32.totalorder %s66, %s67
      %p78 = scmp.eq.s32.totalorder %s46, 0
      %p79 = por %p77, %p78
      %p80 = scmp.ne.s32.totalorder %s66, %s67
      %p81 = scmp.eq.s32.totalorder %s47, 1
      %p82 = por %p80, %p81
      %p84 = scmp.ne.s32.totalorder %s67, %s83
      %p85 = scmp.eq.s32.totalorder %s47, 0
      %p86 = por %p84, %p85
      %s87 = ssub.s32 %s48, %s60
      %p88 = scmp.eq.s32.totalorder %s87, 0
      %s90 = sadd.s32 %s89, 1
      %s91 = scalar_select %p88, %s89, %s90
      %p94 = pneg %p88
      %p95 = scmp.eq.s32.totalorder %s41, 1
      %p96 = por %p94, %p95
      %p97 = scmp.ne.s32.totalorder %s89, %s92
      %p98 = scmp.eq.s32.totalorder %s41, 0
      %p99 = por %p97, %p98
      %p100 = scmp.ne.s32.totalorder %s89, %s92
      %p101 = scmp.eq.s32.totalorder %s46, 1
      %p102 = por %p100, %p101
      %p103 = scmp.ne.s32.totalorder %s92, %s93
      %p104 = scmp.eq.s32.totalorder %s46, 0
      %p105 = por %p103, %p104
      %p106 = scmp.ne.s32.totalorder %s92, %s93
      %p107 = scmp.eq.s32.totalorder %s47, 1
      %p108 = por %p106, %p107
      %p110 = scmp.ne.s32.totalorder %s93, %s109
      %p111 = scmp.eq.s32.totalorder %s47, 0
      %p112 = por %p110, %p111
      %s113 = ssub.s32 %s49, %s56
      %p114 = scmp.eq.s32.totalorder %s113, 0
      %s116 = sadd.s32 %s115, 1
      %s117 = scalar_select %p114, %s115, %s116
      %p120 = pneg %p114
      %p121 = scmp.eq.s32.totalorder %s41, 1
      %p122 = por %p120, %p121
      %p123 = scmp.ne.s32.totalorder %s115, %s118
      %p124 = scmp.eq.s32.totalorder %s41, 0
      %p125 = por %p123, %p124
      %p126 = scmp.ne.s32.totalorder %s115, %s118
      %p127 = scmp.eq.s32.totalorder %s46, 1
      %p128 = por %p126, %p127
      %p129 = scmp.ne.s32.totalorder %s118, %s119
      %p130 = scmp.eq.s32.totalorder %s46, 0
      %p131 = por %p129, %p130
      %p132 = scmp.ne.s32.totalorder %s118, %s119
      %p133 = scmp.eq.s32.totalorder %s47, 1
      %p134 = por %p132, %p133
      %p136 = scmp.ne.s32.totalorder %s119, %s135
      %p137 = scmp.eq.s32.totalorder %s47, 0
      %p138 = por %p136, %p137
      %s140 = sadd.s32 %s139, 1
      %p143 = scmp.eq.s32.totalorder %s41, 1
      %p144 = scmp.ne.s32.totalorder %s139, %s141
      %p145 = scmp.eq.s32.totalorder %s41, 0
      %p146 = por %p144, %p145
      %p147 = scmp.ne.s32.totalorder %s139, %s141
      %p148 = scmp.eq.s32.totalorder %s46, 1
      %p149 = por %p147, %p148
      %p150 = scmp.ne.s32.totalorder %s141, %s142
      %p151 = scmp.eq.s32.totalorder %s46, 0
      %p152 = por %p150, %p151
      %p153 = scmp.ne.s32.totalorder %s141, %s142
      %p154 = scmp.eq.s32.totalorder %s47, 1
      %p155 = por %p153, %p154
      %p157 = scmp.ne.s32.totalorder %s142, %s156
      %p158 = scmp.eq.s32.totalorder %s47, 0
      %p159 = por %p157, %p158
      %s161 = sadd.s32 %s160, 1
      %p164 = scmp.eq.s32.totalorder %s41, 1
      %p165 = scmp.ne.s32.totalorder %s160, %s162
      %p166 = scmp.eq.s32.totalorder %s41, 0
      %p167 = por %p165, %p166
      %p168 = scmp.ne.s32.totalorder %s160, %s162
      %p169 = scmp.eq.s32.totalorder %s46, 1
      %p170 = por %p168, %p169
      %p171 = scmp.ne.s32.totalorder %s162, %s163
      %p172 = scmp.eq.s32.totalorder %s46, 0
      %p173 = por %p171, %p172
      %p174 = scmp.ne.s32.totalorder %s162, %s163
      %p175 = scmp.eq.s32.totalorder %s47, 1
      %p176 = por %p174, %p175
      %p178 = scmp.ne.s32.totalorder %s163, %s177
      %p179 = scmp.eq.s32.totalorder %s47, 0
      %p180 = por %p178, %p179
      %s182 = sadd.s32 %s181, 1
      %p185 = scmp.eq.s32.totalorder %s41, 1
      %p186 = scmp.ne.s32.totalorder %s181, %s183
      %p187 = scmp.eq.s32.totalorder %s41, 0
      %p188 = por %p186, %p187
      %p189 = scmp.ne.s32.totalorder %s181, %s183
      %p190 = scmp.eq.s32.totalorder %s46, 1
      %p191 = por %p189, %p190
      %p192 = scmp.ne.s32.totalorder %s183, %s184
      %p193 = scmp.eq.s32.totalorder %s46, 0
      %p194 = por %p192, %p193
      %p195 = scmp.ne.s32.totalorder %s183, %s184
      %p196 = scmp.eq.s32.totalorder %s47, 1
      %p197 = por %p195, %p196
      %p199 = scmp.ne.s32.totalorder %s184, %s198
      %p200 = scmp.eq.s32.totalorder %s47, 0
      %p201 = por %p199, %p200
      %s203 = sadd.s32 %s202, 1
      %p206 = scmp.eq.s32.totalorder %s41, 1
      %p207 = scmp.ne.s32.totalorder %s202, %s204
      %p208 = scmp.eq.s32.totalorder %s41, 0
      %p209 = por %p207, %p208
      %p210 = scmp.ne.s32.totalorder %s202, %s204
      %p211 = scmp.eq.s32.totalorder %s46, 1
      %p212 = por %p210, %p211
      %p213 = scmp.ne.s32.totalorder %s204, %s205
      %p214 = scmp.eq.s32.totalorder %s46, 0
      %p215 = por %p213, %p214
      %p216 = scmp.ne.s32.totalorder %s204, %s205
      %p217 = scmp.eq.s32.totalorder %s47, 1
      %p218 = por %p216, %p217
      %p220 = scmp.ne.s32.totalorder %s205, %s219
      %p221 = scmp.eq.s32.totalorder %s47, 0
      %p222 = por %p220, %p221
      %s224 = sadd.s32 %s223, 1
      %p227 = scmp.eq.s32.totalorder %s41, 1
      %p228 = scmp.ne.s32.totalorder %s223, %s225
      %p229 = scmp.eq.s32.totalorder %s41, 0
      %p230 = por %p228, %p229
      %p231 = scmp.ne.s32.totalorder %s223, %s225
      %p232 = scmp.eq.s32.totalorder %s46, 1
      %p233 = por %p231, %p232
      %p234 = scmp.ne.s32.totalorder %s225, %s226
      %p235 = scmp.eq.s32.totalorder %s46, 0
      %p236 = por %p234, %p235
      %p237 = scmp.ne.s32.totalorder %s225, %s226
      %p238 = scmp.eq.s32.totalorder %s47, 1
      %p239 = por %p237, %p238
      %p241 = scmp.ne.s32.totalorder %s226, %s240
      %p242 = scmp.eq.s32.totalorder %s47, 0
      %p243 = por %p241, %p242
      %s245 = sadd.s32 %s244, 1
      %p248 = scmp.eq.s32.totalorder %s41, 1
      %p249 = scmp.ne.s32.totalorder %s244, %s246
      %p250 = scmp.eq.s32.totalorder %s41, 0
      %p251 = por %p249, %p250
      %p252 = scmp.ne.s32.totalorder %s244, %s246
      %p253 = scmp.eq.s32.totalorder %s46, 1
      %p254 = por %p252, %p253
      %p255 = scmp.ne.s32.totalorder %s246, %s247
      %p256 = scmp.eq.s32.totalorder %s46, 0
      %p257 = por %p255, %p256
      %p258 = scmp.ne.s32.totalorder %s246, %s247
      %p259 = scmp.eq.s32.totalorder %s47, 1
      %p260 = por %p258, %p259
      %p262 = scmp.ne.s32.totalorder %s247, %s261
      %p263 = scmp.eq.s32.totalorder %s47, 0
      %p264 = por %p262, %p263
      %s266 = sadd.s32 %s265, 1
      %p269 = scmp.eq.s32.totalorder %s41, 1
      %p270 = scmp.ne.s32.totalorder %s265, %s267
      %p271 = scmp.eq.s32.totalorder %s41, 0
      %p272 = por %p270, %p271
      %p273 = scmp.ne.s32.totalorder %s265, %s267
      %p274 = scmp.eq.s32.totalorder %s46, 1
      %p275 = por %p273, %p274
      %p276 = scmp.ne.s32.totalorder %s267, %s268
      %p277 = scmp.eq.s32.totalorder %s46, 0
      %p278 = por %p276, %p277
      %p279 = scmp.ne.s32.totalorder %s267, %s268
      %p280 = scmp.eq.s32.totalorder %s47, 1
      %p281 = por %p279, %p280
      %p283 = scmp.ne.s32.totalorder %s268, %s282
      %p284 = scmp.eq.s32.totalorder %s47, 0
      %p285 = por %p283, %p284
      %s287 = sadd.s32 %s286, 1
      %p290 = scmp.eq.s32.totalorder %s41, 1
      %p291 = scmp.ne.s32.totalorder %s286, %s288
      %p292 = scmp.eq.s32.totalorder %s41, 0
      %p293 = por %p291, %p292
      %p294 = scmp.ne.s32.totalorder %s286, %s288
      %p295 = scmp.eq.s32.totalorder %s46, 1
      %p296 = por %p294, %p295
      %p297 = scmp.ne.s32.totalorder %s288, %s289
      %p298 = scmp.eq.s32.totalorder %s46, 0
      %p299 = por %p297, %p298
      %p300 = scmp.ne.s32.totalorder %s288, %s289
      %p301 = scmp.eq.s32.totalorder %s47, 1
      %p302 = por %p300, %p301
      %p304 = scmp.ne.s32.totalorder %s289, %s303
      %p305 = scmp.eq.s32.totalorder %s47, 0
      %p306 = por %p304, %p305
      %s308 = sadd.s32 %s307, 1
      %p311 = scmp.eq.s32.totalorder %s41, 1
      %p312 = scmp.ne.s32.totalorder %s307, %s309
      %p313 = scmp.eq.s32.totalorder %s41, 0
      %p314 = por %p312, %p313
      %p315 = scmp.ne.s32.totalorder %s307, %s309
      %p316 = scmp.eq.s32.totalorder %s46, 1
      %p317 = por %p315, %p316
      %p318 = scmp.ne.s32.totalorder %s309, %s310
      %p319 = scmp.eq.s32.totalorder %s46, 0
      %p320 = por %p318, %p319
      %p321 = scmp.ne.s32.totalorder %s309, %s310
      %p322 = scmp.eq.s32.totalorder %s47, 1
      %p323 = por %p321, %p322
      %p325 = scmp.ne.s32.totalorder %s310, %s324
      %p326 = scmp.eq.s32.totalorder %s47, 0
      %p327 = por %p325, %p326
      %s329 = sadd.s32 %s328, 1
      %p332 = scmp.eq.s32.totalorder %s41, 1
      %p333 = scmp.ne.s32.totalorder %s328, %s330
      %p334 = scmp.eq.s32.totalorder %s41, 0
      %p335 = por %p333, %p334
      %p336 = scmp.ne.s32.totalorder %s328, %s330
      %p337 = scmp.eq.s32.totalorder %s46, 1
      %p338 = por %p336, %p337
      %p339 = scmp.ne.s32.totalorder %s330, %s331
      %p340 = scmp.eq.s32.totalorder %s46, 0
      %p341 = por %p339, %p340
      %p342 = scmp.ne.s32.totalorder %s330, %s331
      %p343 = scmp.eq.s32.totalorder %s47, 1
      %p344 = por %p342, %p343
      %p346 = scmp.ne.s32.totalorder %s331, %s345
      %p347 = scmp.eq.s32.totalorder %s47, 0
      %p348 = por %p346, %p347
      %s350 = sadd.s32 %s349, 1
      %p353 = scmp.eq.s32.totalorder %s41, 1
      %p354 = scmp.ne.s32.totalorder %s349, %s351
      %p355 = scmp.eq.s32.totalorder %s41, 0
      %p356 = por %p354, %p355
      %p357 = scmp.ne.s32.totalorder %s349, %s351
      %p358 = scmp.eq.s32.totalorder %s46, 1
      %p359 = por %p357, %p358
      %p360 = scmp.ne.s32.totalorder %s351, %s352
      %p361 = scmp.eq.s32.totalorder %s46, 0
      %p362 = por %p360, %p361
      %p363 = scmp.ne.s32.totalorder %s351, %s352
      %p364 = scmp.eq.s32.totalorder %s47, 1
      %p365 = por %p363, %p364
      %p367 = scmp.ne.s32.totalorder %s352, %s366
      %p368 = scmp.eq.s32.totalorder %s47, 0
      %p369 = por %p367, %p368
      %s371 = sadd.s32 %s370, 1
      %p374 = scmp.eq.s32.totalorder %s41, 1
      %p375 = scmp.ne.s32.totalorder %s370, %s372
      %p376 = scmp.eq.s32.totalorder %s41, 0
      %p377 = por %p375, %p376
      %p378 = scmp.ne.s32.totalorder %s370, %s372
      %p379 = scmp.eq.s32.totalorder %s46, 1
      %p380 = por %p378, %p379
      %p381 = scmp.ne.s32.totalorder %s372, %s373
      %p382 = scmp.eq.s32.totalorder %s46, 0
      %p383 = por %p381, %p382
      %p384 = scmp.ne.s32.totalorder %s372, %s373
      %p385 = scmp.eq.s32.totalorder %s47, 1
      %p386 = por %p384, %p385
      %p388 = scmp.ne.s32.totalorder %s373, %s387
      %p389 = scmp.eq.s32.totalorder %s47, 0
      %p390 = por %p388, %p389
      %s392 = sadd.s32 %s391, 1
      %p395 = scmp.eq.s32.totalorder %s41, 1
      %p396 = scmp.ne.s32.totalorder %s391, %s393
      %p397 = scmp.eq.s32.totalorder %s41, 0
      %p398 = por %p396, %p397
      %p399 = scmp.ne.s32.totalorder %s391, %s393
      %p400 = scmp.eq.s32.totalorder %s46, 1
      %p401 = por %p399, %p400
      %p402 = scmp.ne.s32.totalorder %s393, %s394
      %p403 = scmp.eq.s32.totalorder %s46, 0
      %p404 = por %p402, %p403
      %p405 = scmp.ne.s32.totalorder %s393, %s394
      %p406 = scmp.eq.s32.totalorder %s47, 1
      %p407 = por %p405, %p406
      %p409 = scmp.ne.s32.totalorder %s394, %s408
      %p410 = scmp.eq.s32.totalorder %s47, 0
      %p411 = por %p409, %p410
      %s413 = sadd.s32 %s412, 1
      %p416 = scmp.eq.s32.totalorder %s41, 1
      %p417 = scmp.ne.s32.totalorder %s412, %s414
      %p418 = scmp.eq.s32.totalorder %s41, 0
      %p419 = por %p417, %p418
      %p420 = scmp.ne.s32.totalorder %s412, %s414
      %p421 = scmp.eq.s32.totalorder %s46, 1
      %p422 = por %p420, %p421
      %p423 = scmp.ne.s32.totalorder %s414, %s415
      %p424 = scmp.eq.s32.totalorder %s46, 0
      %p425 = por %p423, %p424
      %p426 = scmp.ne.s32.totalorder %s414, %s415
      %p427 = scmp.eq.s32.totalorder %s47, 1
      %p428 = por %p426, %p427
      %p430 = scmp.ne.s32.totalorder %s415, %s429
      %p431 = scmp.eq.s32.totalorder %s47, 0
      %p432 = por %p430, %p431
      %s434 = sadd.s32 %s433, 1
      %p437 = scmp.eq.s32.totalorder %s41, 1
      %p438 = scmp.ne.s32.totalorder %s433, %s435
      %p439 = scmp.eq.s32.totalorder %s41, 0
      %p440 = por %p438, %p439
      %p441 = scmp.ne.s32.totalorder %s433, %s435
      %p442 = scmp.eq.s32.totalorder %s46, 1
      %p443 = por %p441, %p442
      %p444 = scmp.ne.s32.totalorder %s435, %s436
      %p445 = scmp.eq.s32.totalorder %s46, 0
      %p446 = por %p444, %p445
      %p447 = scmp.ne.s32.totalorder %s435, %s436
      %p448 = scmp.eq.s32.totalorder %s47, 1
      %p449 = por %p447, %p448
      %p451 = scmp.ne.s32.totalorder %s436, %s450
      %p452 = scmp.eq.s32.totalorder %s47, 0
      %p453 = por %p451, %p452
      %s455 = sadd.s32 %s454, 1
      %p458 = scmp.eq.s32.totalorder %s41, 1
      %p459 = scmp.ne.s32.totalorder %s454, %s456
      %p460 = scmp.eq.s32.totalorder %s41, 0
      %p461 = por %p459, %p460
      %p462 = scmp.ne.s32.totalorder %s454, %s456
      %p463 = scmp.eq.s32.totalorder %s46, 1
      %p464 = por %p462, %p463
      %p465 = scmp.ne.s32.totalorder %s456, %s457
      %p466 = scmp.eq.s32.totalorder %s46, 0
      %p467 = por %p465, %p466
      %p468 = scmp.ne.s32.totalorder %s456, %s457
      %p469 = scmp.eq.s32.totalorder %s47, 1
      %p470 = por %p468, %p469
      %p472 = scmp.ne.s32.totalorder %s457, %s471
      %p473 = scmp.eq.s32.totalorder %s47, 0
      %p474 = por %p472, %p473
      %s476 = sadd.s32 %s475, 1
      %p479 = scmp.eq.s32.totalorder %s41, 1
      %p480 = scmp.ne.s32.totalorder %s475, %s477
      %p481 = scmp.eq.s32.totalorder %s41, 0
      %p482 = por %p480, %p481
      %p483 = scmp.ne.s32.totalorder %s475, %s477
      %p484 = scmp.eq.s32.totalorder %s46, 1
      %p485 = por %p483, %p484
      %p486 = scmp.ne.s32.totalorder %s477, %s478
      %p487 = scmp.eq.s32.totalorder %s46, 0
      %p488 = por %p486, %p487
      %p489 = scmp.ne.s32.totalorder %s477, %s478
      %p490 = scmp.eq.s32.totalorder %s47, 1
      %p491 = por %p489, %p490
      %p493 = scmp.ne.s32.totalorder %s478, %s492
      %p494 = scmp.eq.s32.totalorder %s47, 0
      %p495 = por %p493, %p494
      %s497 = sadd.s32 %s496, 1
      %p500 = scmp.eq.s32.totalorder %s41, 1
      %p501 = scmp.ne.s32.totalorder %s496, %s498
      %p502 = scmp.eq.s32.totalorder %s41, 0
      %p503 = por %p501, %p502
      %p504 = scmp.ne.s32.totalorder %s496, %s498
      %p505 = scmp.eq.s32.totalorder %s46, 1
      %p506 = por %p504, %p505
      %p507 = scmp.ne.s32.totalorder %s498, %s499
      %p508 = scmp.eq.s32.totalorder %s46, 0
      %p509 = por %p507, %p508
      %p510 = scmp.ne.s32.totalorder %s498, %s499
      %p511 = scmp.eq.s32.totalorder %s47, 1
      %p512 = por %p510, %p511
      %p514 = scmp.ne.s32.totalorder %s499, %s513
      %p515 = scmp.eq.s32.totalorder %s47, 0
      %p516 = por %p514, %p515
      %s518 = sadd.s32 %s517, 1
      %p521 = scmp.eq.s32.totalorder %s41, 1
      %p522 = scmp.ne.s32.totalorder %s517, %s519
      %p523 = scmp.eq.s32.totalorder %s41, 0
      %p524 = por %p522, %p523
      %p525 = scmp.ne.s32.totalorder %s517, %s519
      %p526 = scmp.eq.s32.totalorder %s46, 1
      %p527 = por %p525, %p526
      %p528 = scmp.ne.s32.totalorder %s519, %s520
      %p529 = scmp.eq.s32.totalorder %s46, 0
      %p530 = por %p528, %p529
      %p531 = scmp.ne.s32.totalorder %s519, %s520
      %p532 = scmp.eq.s32.totalorder %s47, 1
      %p533 = por %p531, %p532
      %p535 = scmp.ne.s32.totalorder %s520, %s534
      %p536 = scmp.eq.s32.totalorder %s47, 0
      %p537 = por %p535, %p536
      %s539 = sadd.s32 %s538, 1
      %p542 = scmp.eq.s32.totalorder %s41, 1
      %p543 = scmp.ne.s32.totalorder %s538, %s540
      %p544 = scmp.eq.s32.totalorder %s41, 0
      %p545 = por %p543, %p544
      %p546 = scmp.ne.s32.totalorder %s538, %s540
      %p547 = scmp.eq.s32.totalorder %s46, 1
      %p548 = por %p546, %p547
      %p549 = scmp.ne.s32.totalorder %s540, %s541
      %p550 = scmp.eq.s32.totalorder %s46, 0
      %p551 = por %p549, %p550
      %p552 = scmp.ne.s32.totalorder %s540, %s541
      %p553 = scmp.eq.s32.totalorder %s47, 1
      %p554 = por %p552, %p553
      %p556 = scmp.ne.s32.totalorder %s541, %s555
      %p557 = scmp.eq.s32.totalorder %s47, 0
      %p558 = por %p556, %p557
      %s560 = sadd.s32 %s559, 1
      %p563 = scmp.eq.s32.totalorder %s41, 1
      %p564 = scmp.ne.s32.totalorder %s559, %s561
      %p565 = scmp.eq.s32.totalorder %s41, 0
      %p566 = por %p564, %p565
      %p567 = scmp.ne.s32.totalorder %s559, %s561
      %p568 = scmp.eq.s32.totalorder %s46, 1
      %p569 = por %p567, %p568
      %p570 = scmp.ne.s32.totalorder %s561, %s562
      %p571 = scmp.eq.s32.totalorder %s46, 0
      %p572 = por %p570, %p571
      %p573 = scmp.ne.s32.totalorder %s561, %s562
      %p574 = scmp.eq.s32.totalorder %s47, 1
      %p575 = por %p573, %p574
      %p577 = scmp.ne.s32.totalorder %s562, %s576
      %p578 = scmp.eq.s32.totalorder %s47, 0
      %p579 = por %p577, %p578
      %s581 = sadd.s32 %s580, 1
      %p584 = scmp.eq.s32.totalorder %s41, 1
      %p585 = scmp.ne.s32.totalorder %s580, %s582
      %p586 = scmp.eq.s32.totalorder %s41, 0
      %p587 = por %p585, %p586
      %p588 = scmp.ne.s32.totalorder %s580, %s582
      %p589 = scmp.eq.s32.totalorder %s46, 1
      %p590 = por %p588, %p589
      %p591 = scmp.ne.s32.totalorder %s582, %s583
      %p592 = scmp.eq.s32.totalorder %s46, 0
      %p593 = por %p591, %p592
      %p594 = scmp.ne.s32.totalorder %s582, %s583
      %p595 = scmp.eq.s32.totalorder %s47, 1
      %p596 = por %p594, %p595
      %p598 = scmp.ne.s32.totalorder %s583, %s597
      %p599 = scmp.eq.s32.totalorder %s47, 0
      %p600 = por %p598, %p599
      %s601 = ssub.s32 %s48, %s60
      %s602 = ssub.s32 %s49, %s56
      %s603 = sor.u32 %s601, %s602
      %p604 = scmp.eq.s32.totalorder %s603, 0
      %s606 = sadd.s32 %s605, 1
      %s607 = scalar_select %p604, %s605, %s606
      %p610 = pneg %p604
      %p611 = scmp.eq.s32.totalorder %s41, 1
      %p612 = por %p610, %p611
      %p613 = scmp.ne.s32.totalorder %s605, %s608
      %p614 = scmp.eq.s32.totalorder %s41, 0
      %p615 = por %p613, %p614
      %p616 = scmp.ne.s32.totalorder %s605, %s608
      %p617 = scmp.eq.s32.totalorder %s46, 1
      %p618 = por %p616, %p617
      %p619 = scmp.ne.s32.totalorder %s608, %s609
      %p620 = scmp.eq.s32.totalorder %s46, 0
      %p621 = por %p619, %p620
      %p622 = scmp.ne.s32.totalorder %s608, %s609
      %p623 = scmp.eq.s32.totalorder %s47, 1
      %p624 = por %p622, %p623
      %p626 = scmp.ne.s32.totalorder %s609, %s625
      %p627 = scmp.eq.s32.totalorder %s47, 0
      %p628 = por %p626, %p627
      %p629 = scmp.le.s32.totalorder 1, %s41
      %p630 = scmp.lt.s32.totalorder %s41, 3
      %p631 = pnand %p629, %p630
      %p632 = pneg %p631
      // Predicated region
      $region9: #{tpu_custom_call.1} parent=5 // pred_check
        _
      $region10: #{tpu_custom_call.1} parent=5 // pred_check_branch
        %634 = sbr.rel (%p631) target = $region12
      $region11: #{tpu_custom_call.1} parent=5 // pred_region
        %s635 = ssub.s32 %s41, 1
        // Predicated region
        $region13: #{tpu_custom_call.1} parent=11 // pred_check
          %p636 = pneg %p131
        $region14: #{tpu_custom_call.1} parent=11 // pred_check_branch
          %638 = sbr.rel (%p636) target = $region16
        $region15: #{tpu_custom_call.1} parent=11 // pred_region
          %s640 = ssub.s32 128, 128
          %641 = vsyncadd [#allocation7], %s640
          %s642 = smul.addr %s51, 128
          %s643 = scalar_lea.hbm %s2, %s642
          %s645 = sshll.u32 [#allocation6], 4
          %s646 = int_to_ptr.vmem [resolvable:$true] %s645
          %648 = dma.hbm_to_vmem [thread:$0]  %s643, 128, %s646, [#allocation7]
        $region16: #{tpu_custom_call.1} parent=11 // pred_fallthru
          _
        // Predicated region
        $region17: #{tpu_custom_call.1} parent=11 // pred_check
          %p649 = pneg %p152
        $region18: #{tpu_custom_call.1} parent=11 // pred_check_branch
          %651 = sbr.rel (%p649) target = $region20
        $region19: #{tpu_custom_call.1} parent=11 // pred_region
          %s653 = ssub.s32 16, 16
          %654 = vsyncadd [#allocation10], %s653
          %s656 = sshll.u32 [#allocation9], 4
          %s657 = int_to_ptr.vmem [resolvable:$true] %s656
          %659 = dma.hbm_to_vmem [thread:$0]  %s3, 16, %s657, [#allocation10]
        $region20: #{tpu_custom_call.1} parent=11 // pred_fallthru
          _
        // Predicated region
        $region21: #{tpu_custom_call.1} parent=11 // pred_check
          %p660 = pneg %p173
        $region22: #{tpu_custom_call.1} parent=11 // pred_check_branch
          %662 = sbr.rel (%p660) target = $region24
        $region23: #{tpu_custom_call.1} parent=11 // pred_region
          %s664 = ssub.s32 16, 16
          %665 = vsyncadd [#allocation10], %s664
          %s667 = sshll.u32 [#allocation11], 4
          %s668 = int_to_ptr.vmem [resolvable:$true] %s667
          %670 = dma.hbm_to_vmem [thread:$0]  %s4, 16, %s668, [#allocation10]
        $region24: #{tpu_custom_call.1} parent=11 // pred_fallthru
          _
        // Predicated region
        $region25: #{tpu_custom_call.1} parent=11 // pred_check
          %p671 = pneg %p194
        $region26: #{tpu_custom_call.1} parent=11 // pred_check_branch
          %673 = sbr.rel (%p671) target = $region28
        $region27: #{tpu_custom_call.1} parent=11 // pred_region
          _
        $region28: #{tpu_custom_call.1} parent=11 // pred_fallthru
          _
        // Predicated region
        $region29: #{tpu_custom_call.1} parent=11 // pred_check
          %p674 = pneg %p215
        $region30: #{tpu_custom_call.1} parent=11 // pred_check_branch
          %676 = sbr.rel (%p674) target = $region32
        $region31: #{tpu_custom_call.1} parent=11 // pred_region
          %s678 = ssub.s32 16, 16
          %679 = vsyncadd [#allocation13], %s678
          %s681 = sshll.u32 [#allocation12], 4
          %s682 = int_to_ptr.vmem [resolvable:$true] %s681
          %684 = dma.hbm_to_vmem [thread:$0]  %s6, 16, %s682, [#allocation13]
        $region32: #{tpu_custom_call.1} parent=11 // pred_fallthru
          _
        // Predicated region
        $region33: #{tpu_custom_call.1} parent=11 // pred_check
          %p685 = pneg %p236
        $region34: #{tpu_custom_call.1} parent=11 // pred_check_branch
          %687 = sbr.rel (%p685) target = $region36
        $region35: #{tpu_custom_call.1} parent=11 // pred_region
          %s689 = ssub.s32 256, 256
          %690 = vsyncadd [#allocation13], %s689
          %s691 = sshll.u32 [#allocation14], 4
          %s692 = int_to_ptr.vmem [resolvable:$true] %s691
          %697 = dma.hbm_to_vmem [thread:$0]  %s7, 256, %s692, [#allocation13], 64, 64, 4
        $region36: #{tpu_custom_call.1} parent=11 // pred_fallthru
          _
        // Predicated region
        $region37: #{tpu_custom_call.1} parent=11 // pred_check
          %p698 = pneg %p257
        $region38: #{tpu_custom_call.1} parent=11 // pred_check_branch
          %700 = sbr.rel (%p698) target = $region40
        $region39: #{tpu_custom_call.1} parent=11 // pred_region
          %s702 = ssub.s32 16, 16
          %703 = vsyncadd [#allocation16], %s702
          %s705 = sshll.u32 [#allocation15], 4
          %s706 = int_to_ptr.vmem [resolvable:$true] %s705
          %708 = dma.hbm_to_vmem [thread:$0]  %s8, 16, %s706, [#allocation16]
        $region40: #{tpu_custom_call.1} parent=11 // pred_fallthru
          _
        // Predicated region
        $region41: #{tpu_custom_call.1} parent=11 // pred_check
          %p709 = pneg %p278
        $region42: #{tpu_custom_call.1} parent=11 // pred_check_branch
          %711 = sbr.rel (%p709) target = $region44
        $region43: #{tpu_custom_call.1} parent=11 // pred_region
          _
        $region44: #{tpu_custom_call.1} parent=11 // pred_fallthru
          _
        // Predicated region
        $region45: #{tpu_custom_call.1} parent=11 // pred_check
          %p712 = pneg %p299
        $region46: #{tpu_custom_call.1} parent=11 // pred_check_branch
          %714 = sbr.rel (%p712) target = $region48
        $region47: #{tpu_custom_call.1} parent=11 // pred_region
          %s716 = ssub.s32 16, 16
          %717 = vsyncadd [#allocation16], %s716
          %s719 = sshll.u32 [#allocation17], 4
          %s720 = int_to_ptr.vmem [resolvable:$true] %s719
          %722 = dma.hbm_to_vmem [thread:$0]  %s10, 16, %s720, [#allocation16]
        $region48: #{tpu_custom_call.1} parent=11 // pred_fallthru
          _
        // Predicated region
        $region49: #{tpu_custom_call.1} parent=11 // pred_check
          %p723 = pneg %p320
        $region50: #{tpu_custom_call.1} parent=11 // pred_check_branch
          %725 = sbr.rel (%p723) target = $region52
        $region51: #{tpu_custom_call.1} parent=11 // pred_region
          %s727 = ssub.s32 16, 16
          %728 = vsyncadd [#allocation19], %s727
          %s730 = sshll.u32 [#allocation18], 4
          %s731 = int_to_ptr.vmem [resolvable:$true] %s730
          %733 = dma.hbm_to_vmem [thread:$0]  %s11, 16, %s731, [#allocation19]
        $region52: #{tpu_custom_call.1} parent=11 // pred_fallthru
          _
        // Predicated region
        $region53: #{tpu_custom_call.1} parent=11 // pred_check
          %p734 = pneg %p341
        $region54: #{tpu_custom_call.1} parent=11 // pred_check_branch
          %736 = sbr.rel (%p734) target = $region56
        $region55: #{tpu_custom_call.1} parent=11 // pred_region
          %s738 = ssub.s32 16, 16
          %739 = vsyncadd [#allocation19], %s738
          %s741 = sshll.u32 [#allocation20], 4
          %s742 = int_to_ptr.vmem [resolvable:$true] %s741
          %744 = dma.hbm_to_vmem [thread:$0]  %s12, 16, %s742, [#allocation19]
        $region56: #{tpu_custom_call.1} parent=11 // pred_fallthru
          _
        // Predicated region
        $region57: #{tpu_custom_call.1} parent=11 // pred_check
          %p745 = pneg %p362
        $region58: #{tpu_custom_call.1} parent=11 // pred_check_branch
          %747 = sbr.rel (%p745) target = $region60
        $region59: #{tpu_custom_call.1} parent=11 // pred_region
          _
        $region60: #{tpu_custom_call.1} parent=11 // pred_fallthru
          _
        // Predicated region
        $region61: #{tpu_custom_call.1} parent=11 // pred_check
          %p748 = pneg %p383
        $region62: #{tpu_custom_call.1} parent=11 // pred_check_branch
          %750 = sbr.rel (%p748) target = $region64
        $region63: #{tpu_custom_call.1} parent=11 // pred_region
          %s752 = ssub.s32 16, 16
          %753 = vsyncadd [#allocation22], %s752
          %s755 = sshll.u32 [#allocation21], 4
          %s756 = int_to_ptr.vmem [resolvable:$true] %s755
          %758 = dma.hbm_to_vmem [thread:$0]  %s14, 16, %s756, [#allocation22]
        $region64: #{tpu_custom_call.1} parent=11 // pred_fallthru
          _
        // Predicated region
        $region65: #{tpu_custom_call.1} parent=11 // pred_check
          %p759 = pneg %p404
        $region66: #{tpu_custom_call.1} parent=11 // pred_check_branch
          %761 = sbr.rel (%p759) target = $region68
        $region67: #{tpu_custom_call.1} parent=11 // pred_region
          %s763 = ssub.s32 256, 256
          %764 = vsyncadd [#allocation22], %s763
          %s765 = sshll.u32 [#allocation23], 4
          %s766 = int_to_ptr.vmem [resolvable:$true] %s765
          %771 = dma.hbm_to_vmem [thread:$0]  %s15, 256, %s766, [#allocation22], 64, 64, 4
        $region68: #{tpu_custom_call.1} parent=11 // pred_fallthru
          _
        // Predicated region
        $region69: #{tpu_custom_call.1} parent=11 // pred_check
          %p772 = pneg %p425
        $region70: #{tpu_custom_call.1} parent=11 // pred_check_branch
          %774 = sbr.rel (%p772) target = $region72
        $region71: #{tpu_custom_call.1} parent=11 // pred_region
          %s776 = ssub.s32 16, 16
          %777 = vsyncadd [#allocation25], %s776
          %s779 = sshll.u32 [#allocation24], 4
          %s780 = int_to_ptr.vmem [resolvable:$true] %s779
          %782 = dma.hbm_to_vmem [thread:$0]  %s16, 16, %s780, [#allocation25]
        $region72: #{tpu_custom_call.1} parent=11 // pred_fallthru
          _
        // Predicated region
        $region73: #{tpu_custom_call.1} parent=11 // pred_check
          %p783 = pneg %p446
        $region74: #{tpu_custom_call.1} parent=11 // pred_check_branch
          %785 = sbr.rel (%p783) target = $region76
        $region75: #{tpu_custom_call.1} parent=11 // pred_region
          _
        $region76: #{tpu_custom_call.1} parent=11 // pred_fallthru
          _
        // Predicated region
        $region77: #{tpu_custom_call.1} parent=11 // pred_check
          %p786 = pneg %p467
        $region78: #{tpu_custom_call.1} parent=11 // pred_check_branch
          %788 = sbr.rel (%p786) target = $region80
        $region79: #{tpu_custom_call.1} parent=11 // pred_region
          _
        $region80: #{tpu_custom_call.1} parent=11 // pred_fallthru
          _
        // Predicated region
        $region81: #{tpu_custom_call.1} parent=11 // pred_check
          %p789 = pneg %p488
        $region82: #{tpu_custom_call.1} parent=11 // pred_check_branch
          %791 = sbr.rel (%p789) target = $region84
        $region83: #{tpu_custom_call.1} parent=11 // pred_region
          _
        $region84: #{tpu_custom_call.1} parent=11 // pred_fallthru
          _
        // Predicated region
        $region85: #{tpu_custom_call.1} parent=11 // pred_check
          %p792 = pneg %p509
        $region86: #{tpu_custom_call.1} parent=11 // pred_check_branch
          %794 = sbr.rel (%p792) target = $region88
        $region87: #{tpu_custom_call.1} parent=11 // pred_region
          _
        $region88: #{tpu_custom_call.1} parent=11 // pred_fallthru
          _
        // Predicated region
        $region89: #{tpu_custom_call.1} parent=11 // pred_check
          %p795 = pneg %p530
        $region90: #{tpu_custom_call.1} parent=11 // pred_check_branch
          %797 = sbr.rel (%p795) target = $region92
        $region91: #{tpu_custom_call.1} parent=11 // pred_region
          %s799 = ssub.s32 256, 256
          %800 = vsyncadd [#allocation25], %s799
          %s801 = sshll.u32 [#allocation26], 4
          %s802 = int_to_ptr.vmem [resolvable:$true] %s801
          %807 = dma.hbm_to_vmem [thread:$0]  %s21, 256, %s802, [#allocation25], 64, 64, 4
        $region92: #{tpu_custom_call.1} parent=11 // pred_fallthru
          _
        // Predicated region
        $region93: #{tpu_custom_call.1} parent=11 // pred_check
          %p808 = pneg %p551
        $region94: #{tpu_custom_call.1} parent=11 // pred_check_branch
          %810 = sbr.rel (%p808) target = $region96
        $region95: #{tpu_custom_call.1} parent=11 // pred_region
          _
        $region96: #{tpu_custom_call.1} parent=11 // pred_fallthru
          _
        // Predicated region
        $region97: #{tpu_custom_call.1} parent=11 // pred_check
          %p811 = pneg %p572
        $region98: #{tpu_custom_call.1} parent=11 // pred_check_branch
          %813 = sbr.rel (%p811) target = $region100
        $region99: #{tpu_custom_call.1} parent=11 // pred_region
          _
        $region100: #{tpu_custom_call.1} parent=11 // pred_fallthru
          _
        // Predicated region
        $region101: #{tpu_custom_call.1} parent=11 // pred_check
          %p814 = pneg %p593
        $region102: #{tpu_custom_call.1} parent=11 // pred_check_branch
          %816 = sbr.rel (%p814) target = $region104
        $region103: #{tpu_custom_call.1} parent=11 // pred_region
          _
        $region104: #{tpu_custom_call.1} parent=11 // pred_fallthru
          _
      $region12: #{tpu_custom_call.1} parent=5 // pred_fallthru
        _
      %p817 = scmp.lt.s32.totalorder %s41, 2
      // Predicated region
      $region105: #{tpu_custom_call.1} parent=5 // pred_check
        %p818 = pneg %p817
      $region106: #{tpu_custom_call.1} parent=5 // pred_check_branch
        %820 = sbr.rel (%p818) target = $region108
      $region107: #{tpu_custom_call.1} parent=5 // pred_region
        // Predicated region
        $region109: #{tpu_custom_call.1} parent=107 // pred_check
          %p821 = pneg %p73
        $region110: #{tpu_custom_call.1} parent=107 // pred_check_branch
          %823 = sbr.rel (%p821) target = $region112
        $region111: #{tpu_custom_call.1} parent=107 // pred_region
          %p824 = scmp.lt.s32.totalorder %s48, 1
          %s825 = scalar_select %p824, %s48, 1
          %s826 = smul.addr %s825, 8
          %s827 = scalar_lea.vmem %s0, %s826
        $region112: #{tpu_custom_call.1} parent=107 // pred_fallthru
          _
        // Predicated region
        $region113: #{tpu_custom_call.1} parent=107 // pred_check
          %p828 = pneg %p99
        $region114: #{tpu_custom_call.1} parent=107 // pred_check_branch
          %830 = sbr.rel (%p828) target = $region116
        $region115: #{tpu_custom_call.1} parent=107 // pred_region
          %p831 = scmp.lt.s32.totalorder %s48, 1
          %s832 = scalar_select %p831, %s48, 1
          %s833 = smul.addr %s832, 8
          %s834 = scalar_lea.vmem %s1, %s833
        $region116: #{tpu_custom_call.1} parent=107 // pred_fallthru
          _
      $region108: #{tpu_custom_call.1} parent=5 // pred_fallthru
        _
      %p835 = scmp.le.s32.totalorder 1, %s41
      %p836 = scmp.lt.s32.totalorder %s41, 3
      %p837 = pnand %p835, %p836
      %p838 = pneg %p837
      // Predicated region
      $region117: #{tpu_custom_call.1} parent=5 // pred_check
        _
      $region118: #{tpu_custom_call.1} parent=5 // pred_check_branch
        %840 = sbr.rel (%p837) target = $region120
      $region119: #{tpu_custom_call.1} parent=5 // pred_region
        %s841 = ssub.s32 %s41, 1
        // Predicated region
        $region121: #{tpu_custom_call.1} parent=119 // pred_check
          %p842 = pneg %p131
        $region122: #{tpu_custom_call.1} parent=119 // pred_check_branch
          %844 = sbr.rel (%p842) target = $region124
        $region123: #{tpu_custom_call.1} parent=119 // pred_region
          %845 = dma.done [#allocation7], 128
        $region124: #{tpu_custom_call.1} parent=119 // pred_fallthru
          _
        // Predicated region
        $region125: #{tpu_custom_call.1} parent=119 // pred_check
          %p846 = pneg %p152
        $region126: #{tpu_custom_call.1} parent=119 // pred_check_branch
          %848 = sbr.rel (%p846) target = $region128
        $region127: #{tpu_custom_call.1} parent=119 // pred_region
          %849 = dma.done [#allocation10], 16
        $region128: #{tpu_custom_call.1} parent=119 // pred_fallthru
          _
        // Predicated region
        $region129: #{tpu_custom_call.1} parent=119 // pred_check
          %p850 = pneg %p173
        $region130: #{tpu_custom_call.1} parent=119 // pred_check_branch
          %852 = sbr.rel (%p850) target = $region132
        $region131: #{tpu_custom_call.1} parent=119 // pred_region
          %853 = dma.done [#allocation10], 16
        $region132: #{tpu_custom_call.1} parent=119 // pred_fallthru
          _
        // Predicated region
        $region133: #{tpu_custom_call.1} parent=119 // pred_check
          %p854 = pneg %p215
        $region134: #{tpu_custom_call.1} parent=119 // pred_check_branch
          %856 = sbr.rel (%p854) target = $region136
        $region135: #{tpu_custom_call.1} parent=119 // pred_region
          %857 = dma.done [#allocation13], 16
        $region136: #{tpu_custom_call.1} parent=119 // pred_fallthru
          _
        // Predicated region
        $region137: #{tpu_custom_call.1} parent=119 // pred_check
          %p858 = pneg %p236
        $region138: #{tpu_custom_call.1} parent=119 // pred_check_branch
          %860 = sbr.rel (%p858) target = $region140
        $region139: #{tpu_custom_call.1} parent=119 // pred_region
          %861 = dma.done [#allocation13], 256
        $region140: #{tpu_custom_call.1} parent=119 // pred_fallthru
          _
        // Predicated region
        $region141: #{tpu_custom_call.1} parent=119 // pred_check
          %p862 = pneg %p257
        $region142: #{tpu_custom_call.1} parent=119 // pred_check_branch
          %864 = sbr.rel (%p862) target = $region144
        $region143: #{tpu_custom_call.1} parent=119 // pred_region
          %865 = dma.done [#allocation16], 16
        $region144: #{tpu_custom_call.1} parent=119 // pred_fallthru
          _
        // Predicated region
        $region145: #{tpu_custom_call.1} parent=119 // pred_check
          %p866 = pneg %p299
        $region146: #{tpu_custom_call.1} parent=119 // pred_check_branch
          %868 = sbr.rel (%p866) target = $region148
        $region147: #{tpu_custom_call.1} parent=119 // pred_region
          %869 = dma.done [#allocation16], 16
        $region148: #{tpu_custom_call.1} parent=119 // pred_fallthru
          _
        // Predicated region
        $region149: #{tpu_custom_call.1} parent=119 // pred_check
          %p870 = pneg %p320
        $region150: #{tpu_custom_call.1} parent=119 // pred_check_branch
          %872 = sbr.rel (%p870) target = $region152
        $region151: #{tpu_custom_call.1} parent=119 // pred_region
          %873 = dma.done [#allocation19], 16
        $region152: #{tpu_custom_call.1} parent=119 // pred_fallthru
          _
        // Predicated region
        $region153: #{tpu_custom_call.1} parent=119 // pred_check
          %p874 = pneg %p341
        $region154: #{tpu_custom_call.1} parent=119 // pred_check_branch
          %876 = sbr.rel (%p874) target = $region156
        $region155: #{tpu_custom_call.1} parent=119 // pred_region
          %877 = dma.done [#allocation19], 16
        $region156: #{tpu_custom_call.1} parent=119 // pred_fallthru
          _
        // Predicated region
        $region157: #{tpu_custom_call.1} parent=119 // pred_check
          %p878 = pneg %p383
        $region158: #{tpu_custom_call.1} parent=119 // pred_check_branch
          %880 = sbr.rel (%p878) target = $region160
        $region159: #{tpu_custom_call.1} parent=119 // pred_region
          %881 = dma.done [#allocation22], 16
        $region160: #{tpu_custom_call.1} parent=119 // pred_fallthru
          _
        // Predicated region
        $region161: #{tpu_custom_call.1} parent=119 // pred_check
          %p882 = pneg %p404
        $region162: #{tpu_custom_call.1} parent=119 // pred_check_branch
          %884 = sbr.rel (%p882) target = $region164
        $region163: #{tpu_custom_call.1} parent=119 // pred_region
          %885 = dma.done [#allocation22], 256
        $region164: #{tpu_custom_call.1} parent=119 // pred_fallthru
          _
        // Predicated region
        $region165: #{tpu_custom_call.1} parent=119 // pred_check
          %p886 = pneg %p425
        $region166: #{tpu_custom_call.1} parent=119 // pred_check_branch
          %888 = sbr.rel (%p886) target = $region168
        $region167: #{tpu_custom_call.1} parent=119 // pred_region
          %889 = dma.done [#allocation25], 16
        $region168: #{tpu_custom_call.1} parent=119 // pred_fallthru
          _
        // Predicated region
        $region169: #{tpu_custom_call.1} parent=119 // pred_check
          %p890 = pneg %p530
        $region170: #{tpu_custom_call.1} parent=119 // pred_check_branch
          %892 = sbr.rel (%p890) target = $region172
        $region171: #{tpu_custom_call.1} parent=119 // pred_region
          %893 = dma.done [#allocation25], 256
        $region172: #{tpu_custom_call.1} parent=119 // pred_fallthru
          _
        %p894 = scmp.lt.s32.totalorder %s50, 1
        %s895 = scalar_select %p894, %s50, 1
        %s896 = smul.addr %s895, 8
        %s897 = scalar_lea.vmem %s0, %s896
        %p898 = pneg %p79
        %p899 = pneg %p76
        %p900 = scmp.lt.s32.totalorder %s50, 1
        %s901 = scalar_select %p900, %s50, 1
        %s902 = smul.addr %s901, 8
        %s903 = scalar_lea.vmem %s1, %s902
        %p904 = pneg %p105
        %p905 = pneg %p102
        %p906 = pneg %p131
        %p907 = pneg %p128
        %p908 = pneg %p152
        %p909 = pneg %p149
        %p910 = pneg %p173
        %p911 = pneg %p170
        %p912 = pneg %p194
        %p913 = pneg %p191
        %p914 = pneg %p215
        %p915 = pneg %p212
        %p916 = pneg %p236
        %p917 = pneg %p233
        %p918 = pneg %p257
        %p919 = pneg %p254
        %p920 = pneg %p278
        %p921 = pneg %p275
        %p922 = pneg %p299
        %p923 = pneg %p296
        %p924 = pneg %p320
        %p925 = pneg %p317
        %p926 = pneg %p341
        %p927 = pneg %p338
        %p928 = pneg %p362
        %p929 = pneg %p359
        %p930 = pneg %p383
        %p931 = pneg %p380
        %p932 = pneg %p404
        %p933 = pneg %p401
        %p934 = pneg %p425
        %p935 = pneg %p422
        %p936 = pneg %p446
        %p937 = pneg %p443
        %p938 = pneg %p467
        %p939 = pneg %p464
        %p940 = pneg %p488
        %p941 = pneg %p485
        %p942 = pneg %p509
        %p943 = pneg %p506
        %p944 = pneg %p530
        %p945 = pneg %p527
        %p946 = pneg %p551
        %p947 = pneg %p548
        %p948 = pneg %p572
        %p949 = pneg %p569
        %p950 = pneg %p593
        %p951 = pneg %p590
        %p952 = pneg %p621
        %p953 = pneg %p618
        %s954 = sand.u32 %s608, 1
        %s955 = scalar_lea.sflag [#allocation8], %s954
        %s956 = sand.u32 %s608, 1
        %s957 = smul.addr %s956, 8
        %s958 = scalar_lea.vmem [#allocation27], %s957
        %p959 = scmp.lt.s32.totalorder %s50, 1
        %s960 = scalar_select %p959, %s50, 1
        %s961 = smul.addr %s960, 8
        %s962 = scalar_lea.vmem %s0, %s961
        %p963 = scmp.lt.s32.totalorder %s50, 1
        %s964 = scalar_select %p963, %s50, 1
        %s965 = smul.addr %s964, 8
        %s966 = scalar_lea.vmem %s1, %s965
        %p968 = scmp.eq.s32.totalorder %s51, 0
        // Predicated region
        $region173: #{tpu_custom_call.1} parent=119 // pred_check
          %p969 = pneg %p968
        $region174: #{tpu_custom_call.1} parent=119 // pred_check_branch
          %971 = sbr.rel (%p969) target = $region176
        $region175: #{tpu_custom_call.1} parent=119 // pred_region
          %v972 = vld [vmem:[%s962] sm:$0xff]
          %v973 = vld [vmem:[#allocation9] sm:$0x1]
          %v974 = vld [vmem:[#allocation11] sm:$0x1]
          %vm975 = vcmask 261120
          %v976 = vsel %vm975, %v972, 0.0
          %977 = vadd.xlane.f32.xlu0 %v976
          %v978 = vpop.xlane.xlu0 %977
          %v979 = vrcp.pop 32.0
          %v980 = vmul.f32 %v978, %v979
          %v981 = vsub.f32 %v972, %v980
          %v982 = vmul.f32 %v981, %v981
          %v983 = vsel %vm975, %v982, 0.0
          %984 = vadd.xlane.f32.xlu0 %v983
          %v985 = vpop.xlane.xlu0 %984
          %v986 = vmul.f32 %v985, %v979
          %v987 = vadd.f32 %v986, 1e-05
          %v988 = vrsqrt.pop %v987
          %v989 = vmul.f32 %v981, %v988
          %v991 = vlaneseq
          %v992 = vshrl.u32 %v991, 7
          %v993 = vsub.s32 0, %v992
          %v994 = vrot.slane %v973, %v993
          %v996 = vmul.f32 %v989, %v994
          %v998 = vlaneseq
          %v999 = vshrl.u32 %v998, 7
          %v1000 = vsub.s32 0, %v999
          %v1001 = vrot.slane %v974, %v1000
          %v1003 = vadd.f32 %v996, %v1001
          %v1004 = vpack.c.bf16 %v1003, %v1003
          %v1005 = vld [vmem:[#allocation14] sm:$0xf]
          %v1006 = vld [vmem:[#allocation14 + $0x4] sm:$0xf]
          %v1007 = vld [vmem:[#allocation14 + $0x8] sm:$0xf]
          %v1008 = vld [vmem:[#allocation14 + $0xc] sm:$0xf]
          %v1009 = vld [vmem:[#allocation15] sm:$0x1]
          %v1011 = vlaneseq
          %v1012 = vshrl.u32 %v1011, 7
          %v1013 = vsub.s32 0, %v1012
          %v1014 = vrot.slane %v1009, %v1013
          %v1020 = vunpack.c.l.b16 %v1005
          %v1021 = vunpack.c.l.b16 %v1006
          %v1022 = vunpack.c.l.b16 %v1007
          %v1023 = vunpack.c.l.b16 %v1008
          %v1024 = vpack.c.b16 %v1021, %v1020
          %v1025 = vpack.c.b16 %v1023, %v1022
          %v1029 = vsel %vm975, %v1004, 0
          %1031 = vmatprep.subr.bf16.mxu0 0
          %1032 = vmatpush1.bf16.msra.mxu0 %v1024
          %1033 = vmatprep.subr.bf16.mxu0 0
          %1034 = vmatpush1.bf16.msra.mxu0 %v1025
          %1035 = vmatprep.subr.bf16.mxu0 0
          %1036 = vmatpush1.bf16.msra.mxu0 0
          %1037 = vmatprep.subr.bf16.mxu0 0
          %1038 = vmatpush1.bf16.msra.mxu0 0
          %1039 = vmatprep.subr.bf16.mxu0 0
          %1040 = vmatpush1.bf16.msra.mxu0 0
          %1041 = vmatprep.subr.bf16.mxu0 0
          %1042 = vmatpush1.bf16.msra.mxu0 0
          %1043 = vmatprep.subr.bf16.mxu0 0
          %1044 = vmatpush1.bf16.msra.mxu0 0
          %1045 = vmatprep.subr.bf16.mxu0 0
          %1046 = vmatpush1.bf16.msra.mxu0 0
          %1047 = vmatprep.subr.bf16.mxu0 0
          %1048 = vmatpush1.bf16.msra.mxu0 0
          %1049 = vmatprep.subr.bf16.mxu0 0
          %1050 = vmatpush1.bf16.msra.mxu0 0
          %1051 = vmatprep.subr.bf16.mxu0 0
          %1052 = vmatpush1.bf16.msra.mxu0 0
          %1053 = vmatprep.subr.bf16.mxu0 0
          %1054 = vmatpush1.bf16.msra.mxu0 0
          %1055 = vmatprep.subr.bf16.mxu0 0
          %1056 = vmatpush1.bf16.msra.mxu0 0
          %1057 = vmatprep.subr.bf16.mxu0 0
          %1058 = vmatpush1.bf16.msra.mxu0 0
          %1059 = vmatprep.subr.bf16.mxu0 0
          %1060 = vmatpush1.bf16.msra.mxu0 0
          %1061 = vmatprep.subr.bf16.mxu0 0
          %1062 = vmatpush1.bf16.msra.mxu0 0
          %1063 = vmatprep.mubr.bf16.mxu0 0
          %1064 = vmatmul.mubr.bf16.gmra.mrb[0].mxu0 %v1029
          %v1065 = vpop.f32.mrb[0].mxu0
          %v1066 = vadd.f32 %v1014, %v1065
          %v1067 = vpop.f32.mrb[0].mxu0
          %v1068 = vpop.f32.mrb[0].mxu0
          %v1069 = vpop.f32.mrb[0].mxu0
          %1070 = vdwg.mxu0
          %v1071 = vpack.c.bf16 %v1066, %v1066
          %vm1072 = vcmask 257024
          %1073 = vst.msk [vmem:[#allocation2] sm:$0xf] %vm1072, %v1071
          %v1075 = vunpack.c.l.b16 %v1071
          %v1076 = vpack.c.b16 %v1075, %v1075
          %1077 = vrot.lane.b32.xlu0 %v1076, 96
          %v1078 = vpop.permute.xlu0 %1077
          %1080 = vst.msk [vmem:[#allocation3] sm:$0xf] %vm1072, %v1078
          %v1081 = vld [vmem:[%s966] sm:$0xff]
          %v1082 = vpack.c.bf16 %v1081, %v1081
          %v1083 = vld [vmem:[#allocation23] sm:$0xf]
          %v1084 = vld [vmem:[#allocation23 + $0x4] sm:$0xf]
          %v1085 = vld [vmem:[#allocation23 + $0x8] sm:$0xf]
          %v1086 = vld [vmem:[#allocation23 + $0xc] sm:$0xf]
          %v1087 = vld [vmem:[#allocation24] sm:$0x1]
          %v1089 = vlaneseq
          %v1090 = vshrl.u32 %v1089, 7
          %v1091 = vsub.s32 0, %v1090
          %v1092 = vrot.slane %v1087, %v1091
          %v1098 = vunpack.c.l.b16 %v1083
          %v1099 = vunpack.c.l.b16 %v1084
          %v1100 = vunpack.c.l.b16 %v1085
          %v1101 = vunpack.c.l.b16 %v1086
          %v1102 = vpack.c.b16 %v1099, %v1098
          %v1103 = vpack.c.b16 %v1101, %v1100
          %v1107 = vsel %vm975, %v1082, 0
          %1109 = vmatprep.subr.bf16.mxu0 0
          %1110 = vmatpush1.bf16.msra.mxu0 %v1102
          %1111 = vmatprep.subr.bf16.mxu0 0
          %1112 = vmatpush1.bf16.msra.mxu0 %v1103
          %1113 = vmatprep.subr.bf16.mxu0 0
          %1114 = vmatpush1.bf16.msra.mxu0 0
          %1115 = vmatprep.subr.bf16.mxu0 0
          %1116 = vmatpush1.bf16.msra.mxu0 0
          %1117 = vmatprep.subr.bf16.mxu0 0
          %1118 = vmatpush1.bf16.msra.mxu0 0
          %1119 = vmatprep.subr.bf16.mxu0 0
          %1120 = vmatpush1.bf16.msra.mxu0 0
          %1121 = vmatprep.subr.bf16.mxu0 0
          %1122 = vmatpush1.bf16.msra.mxu0 0
          %1123 = vmatprep.subr.bf16.mxu0 0
          %1124 = vmatpush1.bf16.msra.mxu0 0
          %1125 = vmatprep.subr.bf16.mxu0 0
          %1126 = vmatpush1.bf16.msra.mxu0 0
          %1127 = vmatprep.subr.bf16.mxu0 0
          %1128 = vmatpush1.bf16.msra.mxu0 0
          %1129 = vmatprep.subr.bf16.mxu0 0
          %1130 = vmatpush1.bf16.msra.mxu0 0
          %1131 = vmatprep.subr.bf16.mxu0 0
          %1132 = vmatpush1.bf16.msra.mxu0 0
          %1133 = vmatprep.subr.bf16.mxu0 0
          %1134 = vmatpush1.bf16.msra.mxu0 0
          %1135 = vmatprep.subr.bf16.mxu0 0
          %1136 = vmatpush1.bf16.msra.mxu0 0
          %1137 = vmatprep.subr.bf16.mxu0 0
          %1138 = vmatpush1.bf16.msra.mxu0 0
          %1139 = vmatprep.subr.bf16.mxu0 0
          %1140 = vmatpush1.bf16.msra.mxu0 0
          %1141 = vmatprep.mubr.bf16.mxu0 0
          %1142 = vmatmul.mubr.bf16.gmra.mrb[0].mxu0 %v1107
          %v1143 = vpop.f32.mrb[0].mxu0
          %v1144 = vadd.f32 %v1092, %v1143
          %v1145 = vpop.f32.mrb[0].mxu0
          %v1146 = vpop.f32.mrb[0].mxu0
          %v1147 = vpop.f32.mrb[0].mxu0
          %1148 = vdwg.mxu0
          %v1149 = vpack.c.bf16 %v1144, %v1144
          %1150 = vst.msk [vmem:[#allocation4] sm:$0xf] %vm1072, %v1149
          %v1152 = vunpack.c.l.b16 %v1149
          %v1153 = vpack.c.b16 %v1152, %v1152
          %1154 = vrot.lane.b32.xlu0 %v1153, 96
          %v1155 = vpop.permute.xlu0 %1154
          %1157 = vst.msk [vmem:[#allocation5] sm:$0xf] %vm1072, %v1155
        $region176: #{tpu_custom_call.1} parent=119 // pred_fallthru
          _
        %s1158 = smul.u32 %s51, 8
        %s1159 = scalar_lea.vmem %s962, %s1158
        %v1160 = vld [vmem:[%s1159] sm:$0xff]
        %v1161 = vld [vmem:[#allocation6] sm:$0xff]
        %v1162 = vld [vmem:[#allocation9] sm:$0x1]
        %v1163 = vld [vmem:[#allocation11] sm:$0x1]
        %vm1164 = vcmask 261120
        %v1165 = vsel %vm1164, %v1160, 0.0
        %1166 = vadd.xlane.f32.xlu0 %v1165
        %v1167 = vpop.xlane.xlu0 %1166
        %v1168 = vrcp.pop 32.0
        %v1169 = vmul.f32 %v1167, %v1168
        %v1170 = vsub.f32 %v1160, %v1169
        %v1171 = vmul.f32 %v1170, %v1170
        %v1172 = vsel %vm1164, %v1171, 0.0
        %1173 = vadd.xlane.f32.xlu0 %v1172
        %v1174 = vpop.xlane.xlu0 %1173
        %v1175 = vmul.f32 %v1174, %v1168
        %v1176 = vadd.f32 %v1175, 1e-05
        %v1177 = vrsqrt.pop %v1176
        %v1178 = vmul.f32 %v1170, %v1177
        %v1180 = vlaneseq
        %v1181 = vshrl.u32 %v1180, 7
        %v1182 = vsub.s32 0, %v1181
        %v1183 = vrot.slane %v1162, %v1182
        %v1185 = vmul.f32 %v1178, %v1183
        %v1187 = vlaneseq
        %v1188 = vshrl.u32 %v1187, 7
        %v1189 = vsub.s32 0, %v1188
        %v1190 = vrot.slane %v1163, %v1189
        %v1192 = vadd.f32 %v1185, %v1190
        %v1193 = vpack.c.bf16 %v1192, %v1192
        %v1194 = vld [vmem:[%s5] sm:$0xf]
        %v1195 = vld [vmem:[%s5 + $0x4] sm:$0xf]
        %v1196 = vld [vmem:[%s5 + $0x8] sm:$0xf]
        %v1197 = vld [vmem:[%s5 + $0xc] sm:$0xf]
        %v1198 = vld [vmem:[#allocation12] sm:$0x1]
        %v1200 = vlaneseq
        %v1201 = vshrl.u32 %v1200, 7
        %v1202 = vsub.s32 0, %v1201
        %v1203 = vrot.slane %v1198, %v1202
        %v1209 = vunpack.c.l.b16 %v1194
        %v1210 = vunpack.c.l.b16 %v1195
        %v1211 = vunpack.c.l.b16 %v1196
        %v1212 = vunpack.c.l.b16 %v1197
        %v1213 = vpack.c.b16 %v1210, %v1209
        %v1214 = vpack.c.b16 %v1212, %v1211
        %v1218 = vsel %vm1164, %v1193, 0
        %1220 = vmatprep.subr.bf16.mxu0 0
        %1221 = vmatpush1.bf16.msra.mxu0 %v1213
        %1222 = vmatprep.subr.bf16.mxu0 0
        %1223 = vmatpush1.bf16.msra.mxu0 %v1214
        %1224 = vmatprep.subr.bf16.mxu0 0
        %1225 = vmatpush1.bf16.msra.mxu0 0
        %1226 = vmatprep.subr.bf16.mxu0 0
        %1227 = vmatpush1.bf16.msra.mxu0 0
        %1228 = vmatprep.subr.bf16.mxu0 0
        %1229 = vmatpush1.bf16.msra.mxu0 0
        %1230 = vmatprep.subr.bf16.mxu0 0
        %1231 = vmatpush1.bf16.msra.mxu0 0
        %1232 = vmatprep.subr.bf16.mxu0 0
        %1233 = vmatpush1.bf16.msra.mxu0 0
        %1234 = vmatprep.subr.bf16.mxu0 0
        %1235 = vmatpush1.bf16.msra.mxu0 0
        %1236 = vmatprep.subr.bf16.mxu0 0
        %1237 = vmatpush1.bf16.msra.mxu0 0
        %1238 = vmatprep.subr.bf16.mxu0 0
        %1239 = vmatpush1.bf16.msra.mxu0 0
        %1240 = vmatprep.subr.bf16.mxu0 0
        %1241 = vmatpush1.bf16.msra.mxu0 0
        %1242 = vmatprep.subr.bf16.mxu0 0
        %1243 = vmatpush1.bf16.msra.mxu0 0
        %1244 = vmatprep.subr.bf16.mxu0 0
        %1245 = vmatpush1.bf16.msra.mxu0 0
        %1246 = vmatprep.subr.bf16.mxu0 0
        %1247 = vmatpush1.bf16.msra.mxu0 0
        %1248 = vmatprep.subr.bf16.mxu0 0
        %1249 = vmatpush1.bf16.msra.mxu0 0
        %1250 = vmatprep.subr.bf16.mxu0 0
        %1251 = vmatpush1.bf16.msra.mxu0 0
        %1252 = vmatprep.mubr.bf16.mxu0 0
        %1253 = vmatmul.mubr.bf16.gmra.mrb[0].mxu0 %v1218
        %v1254 = vpop.f32.mrb[0].mxu0
        %v1255 = vadd.f32 %v1203, %v1254
        %v1256 = vpop.f32.mrb[0].mxu0
        %v1257 = vpop.f32.mrb[0].mxu0
        %v1258 = vpop.f32.mrb[0].mxu0
        %1259 = vdwg.mxu0
        %v1260 = vmul.f32 %v1255, 0.35355338
        %v1261 = vpack.c.bf16 %v1260, %v1260
        %v1262 = vld [vmem:[#allocation2] sm:$0xf]
        %v1263 = vld [vmem:[#allocation3] sm:$0xf]
        %v1264 = vld [vmem:[%s9] sm:$0xf]
        %v1265 = vld [vmem:[%s9 + $0x4] sm:$0xf]
        %v1266 = vld [vmem:[%s9 + $0x8] sm:$0xf]
        %v1267 = vld [vmem:[%s9 + $0xc] sm:$0xf]
        %vm1268 = vcmask 64512
        %v1270 = vsel %vm1268, %v1261, 0
        %v1273 = vsel %vm1268, %v1262, 0
        %1275 = vmatprep.subr.bf16.mxu0 0
        %1276 = vmatpush1.bf16.xpose.msra.mxu0 %v1273
        %1277 = vmatprep.subr.bf16.mxu0 0
        %1278 = vmatpush1.bf16.xpose.msra.mxu0 0
        %1279 = vmatprep.subr.bf16.mxu0 0
        %1280 = vmatpush1.bf16.xpose.msra.mxu0 0
        %1281 = vmatprep.subr.bf16.mxu0 0
        %1282 = vmatpush1.bf16.xpose.msra.mxu0 0
        %1283 = vmatprep.subr.bf16.mxu0 0
        %1284 = vmatpush1.bf16.xpose.msra.mxu0 0
        %1285 = vmatprep.subr.bf16.mxu0 0
        %1286 = vmatpush1.bf16.xpose.msra.mxu0 0
        %1287 = vmatprep.subr.bf16.mxu0 0
        %1288 = vmatpush1.bf16.xpose.msra.mxu0 0
        %1289 = vmatprep.subr.bf16.mxu0 0
        %1290 = vmatpush1.bf16.xpose.msra.mxu0 0
        %1291 = vmatprep.subr.bf16.mxu0 0
        %1292 = vmatpush1.bf16.xpose.msra.mxu0 0
        %1293 = vmatprep.subr.bf16.mxu0 0
        %1294 = vmatpush1.bf16.xpose.msra.mxu0 0
        %1295 = vmatprep.subr.bf16.mxu0 0
        %1296 = vmatpush1.bf16.xpose.msra.mxu0 0
        %1297 = vmatprep.subr.bf16.mxu0 0
        %1298 = vmatpush1.bf16.xpose.msra.mxu0 0
        %1299 = vmatprep.subr.bf16.mxu0 0
        %1300 = vmatpush1.bf16.xpose.msra.mxu0 0
        %1301 = vmatprep.subr.bf16.mxu0 0
        %1302 = vmatpush1.bf16.xpose.msra.mxu0 0
        %1303 = vmatprep.subr.bf16.mxu0 0
        %1304 = vmatpush1.bf16.xpose.msra.mxu0 0
        %1305 = vmatprep.subr.bf16.mxu0 0
        %1306 = vmatpush1.bf16.xpose.msra.mxu0 0
        %1307 = vmatprep.mubr.bf16.mxu0 0
        %1308 = vmatmul.mubr.bf16.gmra.mrb[0].mxu0 %v1270
        %v1309 = vpop.f32.mrb[0].mxu0
        %v1310 = vadd.f32 %v1161, %v1309
        %v1311 = vpop.f32.mrb[0].mxu0
        %v1312 = vpop.f32.mrb[0].mxu0
        %v1313 = vpop.f32.mrb[0].mxu0
        %1314 = vdwg.mxu0
        %v1315 = vsel %vm1268, %v1310, -inf
        %1316 = vmax.xlane.f32.xlu0 %v1315
        %v1317 = vpop.xlane.xlu0 %1316
        %v1318 = vsub.f32 %v1310, %v1317
        %v1319 = vmul.f32 %v1318, 1.442695
        %v1320 = vpow.pop %v1319
        %v1321 = vsel %vm1268, %v1320, 0.0
        %1322 = vadd.xlane.f32.xlu0 %v1321
        %v1323 = vpop.xlane.xlu0 %1322
        %v1324 = vrcp.pop %v1323
        %v1325 = vmul.f32 %v1320, %v1324
        %v1326 = vpack.c.bf16 %v1325, %v1325
        %v1328 = vsel %vm1268, %v1326, 0
        %vm1330 = vcmask 1043456
        %v1332 = vsel %vm1330, %v1263, 0
        %1334 = vmatprep.subr.bf16.mxu0 0
        %1335 = vmatpush1.bf16.msra.mxu0 %v1332
        %1336 = vmatprep.subr.bf16.mxu0 0
        %1337 = vmatpush1.bf16.msra.mxu0 0
        %1338 = vmatprep.subr.bf16.mxu0 0
        %1339 = vmatpush1.bf16.msra.mxu0 0
        %1340 = vmatprep.subr.bf16.mxu0 0
        %1341 = vmatpush1.bf16.msra.mxu0 0
        %1342 = vmatprep.subr.bf16.mxu0 0
        %1343 = vmatpush1.bf16.msra.mxu0 0
        %1344 = vmatprep.subr.bf16.mxu0 0
        %1345 = vmatpush1.bf16.msra.mxu0 0
        %1346 = vmatprep.subr.bf16.mxu0 0
        %1347 = vmatpush1.bf16.msra.mxu0 0
        %1348 = vmatprep.subr.bf16.mxu0 0
        %1349 = vmatpush1.bf16.msra.mxu0 0
        %1350 = vmatprep.subr.bf16.mxu0 0
        %1351 = vmatpush1.bf16.msra.mxu0 0
        %1352 = vmatprep.subr.bf16.mxu0 0
        %1353 = vmatpush1.bf16.msra.mxu0 0
        %1354 = vmatprep.subr.bf16.mxu0 0
        %1355 = vmatpush1.bf16.msra.mxu0 0
        %1356 = vmatprep.subr.bf16.mxu0 0
        %1357 = vmatpush1.bf16.msra.mxu0 0
        %1358 = vmatprep.subr.bf16.mxu0 0
        %1359 = vmatpush1.bf16.msra.mxu0 0
        %1360 = vmatprep.subr.bf16.mxu0 0
        %1361 = vmatpush1.bf16.msra.mxu0 0
        %1362 = vmatprep.subr.bf16.mxu0 0
        %1363 = vmatpush1.bf16.msra.mxu0 0
        %1364 = vmatprep.subr.bf16.mxu0 0
        %1365 = vmatpush1.bf16.msra.mxu0 0
        %1366 = vmatprep.mubr.bf16.mxu0 0
        %1367 = vmatmul.mubr.bf16.gmra.mrb[0].mxu0 %v1328
        %v1368 = vpop.f32.mrb[0].mxu0
        %v1369 = vadd.f32 0.0, %v1368
        %v1370 = vpop.f32.mrb[0].mxu0
        %v1371 = vpop.f32.mrb[0].mxu0
        %v1372 = vpop.f32.mrb[0].mxu0
        %1373 = vdwg.mxu0
        %v1374 = vpack.c.bf16 %v1369, %v1369
        %1376 = vrot.lane.b32.xlu0 %v1261, 120
        %v1377 = vpop.permute.xlu0 %1376
        %v1379 = vunpack.c.l.b16 %v1262
        %v1380 = vpack.c.b16 %v1379, %v1379
        %1381 = vrot.lane.b32.xlu0 %v1380, 120
        %v1382 = vpop.permute.xlu0 %1381
        %v1384 = vsel %vm1268, %v1377, 0
        %v1387 = vsel %vm1268, %v1382, 0
        %1389 = vmatprep.subr.bf16.mxu0 0
        %1390 = vmatpush1.bf16.xpose.msra.mxu0 %v1387
        %1391 = vmatprep.subr.bf16.mxu0 0
        %1392 = vmatpush1.bf16.xpose.msra.mxu0 0
        %1393 = vmatprep.subr.bf16.mxu0 0
        %1394 = vmatpush1.bf16.xpose.msra.mxu0 0
        %1395 = vmatprep.subr.bf16.mxu0 0
        %1396 = vmatpush1.bf16.xpose.msra.mxu0 0
        %1397 = vmatprep.subr.bf16.mxu0 0
        %1398 = vmatpush1.bf16.xpose.msra.mxu0 0
        %1399 = vmatprep.subr.bf16.mxu0 0
        %1400 = vmatpush1.bf16.xpose.msra.mxu0 0
        %1401 = vmatprep.subr.bf16.mxu0 0
        %1402 = vmatpush1.bf16.xpose.msra.mxu0 0
        %1403 = vmatprep.subr.bf16.mxu0 0
        %1404 = vmatpush1.bf16.xpose.msra.mxu0 0
        %1405 = vmatprep.subr.bf16.mxu0 0
        %1406 = vmatpush1.bf16.xpose.msra.mxu0 0
        %1407 = vmatprep.subr.bf16.mxu0 0
        %1408 = vmatpush1.bf16.xpose.msra.mxu0 0
        %1409 = vmatprep.subr.bf16.mxu0 0
        %1410 = vmatpush1.bf16.xpose.msra.mxu0 0
        %1411 = vmatprep.subr.bf16.mxu0 0
        %1412 = vmatpush1.bf16.xpose.msra.mxu0 0
        %1413 = vmatprep.subr.bf16.mxu0 0
        %1414 = vmatpush1.bf16.xpose.msra.mxu0 0
        %1415 = vmatprep.subr.bf16.mxu0 0
        %1416 = vmatpush1.bf16.xpose.msra.mxu0 0
        %1417 = vmatprep.subr.bf16.mxu0 0
        %1418 = vmatpush1.bf16.xpose.msra.mxu0 0
        %1419 = vmatprep.subr.bf16.mxu0 0
        %1420 = vmatpush1.bf16.xpose.msra.mxu0 0
        %1421 = vmatprep.mubr.bf16.mxu0 0
        %1422 = vmatmul.mubr.bf16.gmra.mrb[0].mxu0 %v1384
        %v1423 = vpop.f32.mrb[0].mxu0
        %v1424 = vadd.f32 %v1161, %v1423
        %v1425 = vpop.f32.mrb[0].mxu0
        %v1426 = vpop.f32.mrb[0].mxu0
        %v1427 = vpop.f32.mrb[0].mxu0
        %1428 = vdwg.mxu0
        %v1429 = vsel %vm1268, %v1424, -inf
        %1430 = vmax.xlane.f32.xlu0 %v1429
        %v1431 = vpop.xlane.xlu0 %1430
        %v1432 = vsub.f32 %v1424, %v1431
        %v1433 = vmul.f32 %v1432, 1.442695
        %v1434 = vpow.pop %v1433
        %v1435 = vsel %vm1268, %v1434, 0.0
        %1436 = vadd.xlane.f32.xlu0 %v1435
        %v1437 = vpop.xlane.xlu0 %1436
        %v1438 = vrcp.pop %v1437
        %v1439 = vmul.f32 %v1434, %v1438
        %v1440 = vpack.c.bf16 %v1439, %v1439
        %v1442 = vunpack.c.l.b16 %v1263
        %v1443 = vpack.c.b16 %v1442, %v1442
        %1444 = vrot.lane.b32.xlu0 %v1443, 120
        %v1445 = vpop.permute.xlu0 %1444
        %v1447 = vsel %vm1268, %v1440, 0
        %v1450 = vsel %vm1330, %v1445, 0
        %1452 = vmatprep.subr.bf16.mxu0 0
        %1453 = vmatpush1.bf16.msra.mxu0 %v1450
        %1454 = vmatprep.subr.bf16.mxu0 0
        %1455 = vmatpush1.bf16.msra.mxu0 0
        %1456 = vmatprep.subr.bf16.mxu0 0
        %1457 = vmatpush1.bf16.msra.mxu0 0
        %1458 = vmatprep.subr.bf16.mxu0 0
        %1459 = vmatpush1.bf16.msra.mxu0 0
        %1460 = vmatprep.subr.bf16.mxu0 0
        %1461 = vmatpush1.bf16.msra.mxu0 0
        %1462 = vmatprep.subr.bf16.mxu0 0
        %1463 = vmatpush1.bf16.msra.mxu0 0
        %1464 = vmatprep.subr.bf16.mxu0 0
        %1465 = vmatpush1.bf16.msra.mxu0 0
        %1466 = vmatprep.subr.bf16.mxu0 0
        %1467 = vmatpush1.bf16.msra.mxu0 0
        %1468 = vmatprep.subr.bf16.mxu0 0
        %1469 = vmatpush1.bf16.msra.mxu0 0
        %1470 = vmatprep.subr.bf16.mxu0 0
        %1471 = vmatpush1.bf16.msra.mxu0 0
        %1472 = vmatprep.subr.bf16.mxu0 0
        %1473 = vmatpush1.bf16.msra.mxu0 0
        %1474 = vmatprep.subr.bf16.mxu0 0
        %1475 = vmatpush1.bf16.msra.mxu0 0
        %1476 = vmatprep.subr.bf16.mxu0 0
        %1477 = vmatpush1.bf16.msra.mxu0 0
        %1478 = vmatprep.subr.bf16.mxu0 0
        %1479 = vmatpush1.bf16.msra.mxu0 0
        %1480 = vmatprep.subr.bf16.mxu0 0
        %1481 = vmatpush1.bf16.msra.mxu0 0
        %1482 = vmatprep.subr.bf16.mxu0 0
        %1483 = vmatpush1.bf16.msra.mxu0 0
        %1484 = vmatprep.mubr.bf16.mxu0 0
        %1485 = vmatmul.mubr.bf16.gmra.mrb[0].mxu0 %v1447
        %v1486 = vpop.f32.mrb[0].mxu0
        %v1487 = vadd.f32 0.0, %v1486
        %v1488 = vpop.f32.mrb[0].mxu0
        %v1489 = vpop.f32.mrb[0].mxu0
        %v1490 = vpop.f32.mrb[0].mxu0
        %1491 = vdwg.mxu0
        %v1492 = vpack.c.bf16 %v1487, %v1487
        %v1494 = vsel %vm1268, %v1492, 0
        %v1497 = vsel %vm1330, %v1265, 0
        %1499 = vmatprep.subr.bf16.mxu0 0
        %1500 = vmatpush1.bf16.msra.mxu0 %v1497
        %1501 = vmatprep.subr.bf16.mxu0 0
        %1502 = vmatpush1.bf16.msra.mxu0 0
        %1503 = vmatprep.subr.bf16.mxu0 0
        %1504 = vmatpush1.bf16.msra.mxu0 0
        %1505 = vmatprep.subr.bf16.mxu0 0
        %1506 = vmatpush1.bf16.msra.mxu0 0
        %1507 = vmatprep.subr.bf16.mxu0 0
        %1508 = vmatpush1.bf16.msra.mxu0 0
        %1509 = vmatprep.subr.bf16.mxu0 0
        %1510 = vmatpush1.bf16.msra.mxu0 0
        %1511 = vmatprep.subr.bf16.mxu0 0
        %1512 = vmatpush1.bf16.msra.mxu0 0
        %1513 = vmatprep.subr.bf16.mxu0 0
        %1514 = vmatpush1.bf16.msra.mxu0 0
        %1515 = vmatprep.subr.bf16.mxu0 0
        %1516 = vmatpush1.bf16.msra.mxu0 0
        %1517 = vmatprep.subr.bf16.mxu0 0
        %1518 = vmatpush1.bf16.msra.mxu0 0
        %1519 = vmatprep.subr.bf16.mxu0 0
        %1520 = vmatpush1.bf16.msra.mxu0 0
        %1521 = vmatprep.subr.bf16.mxu0 0
        %1522 = vmatpush1.bf16.msra.mxu0 0
        %1523 = vmatprep.subr.bf16.mxu0 0
        %1524 = vmatpush1.bf16.msra.mxu0 0
        %1525 = vmatprep.subr.bf16.mxu0 0
        %1526 = vmatpush1.bf16.msra.mxu0 0
        %1527 = vmatprep.subr.bf16.mxu0 0
        %1528 = vmatpush1.bf16.msra.mxu0 0
        %1529 = vmatprep.subr.bf16.mxu0 0
        %1530 = vmatpush1.bf16.msra.mxu0 0
        %1531 = vmatprep.mubr.bf16.mxu0 0
        %1532 = vmatmul.mubr.bf16.gmra.mrb[0].mxu0 %v1494
        %v1533 = vpop.f32.mrb[0].mxu0
        %v1534 = vadd.f32 0.0, %v1533
        %v1535 = vpop.f32.mrb[0].mxu0
        %v1536 = vpop.f32.mrb[0].mxu0
        %v1537 = vpop.f32.mrb[0].mxu0
        %1538 = vdwg.mxu0
        %v1540 = vsel %vm1268, %v1374, 0
        %v1543 = vsel %vm1330, %v1264, 0
        %1545 = vmatprep.subr.bf16.mxu0 0
        %1546 = vmatpush1.bf16.msra.mxu0 %v1543
        %1547 = vmatprep.subr.bf16.mxu0 0
        %1548 = vmatpush1.bf16.msra.mxu0 0
        %1549 = vmatprep.subr.bf16.mxu0 0
        %1550 = vmatpush1.bf16.msra.mxu0 0
        %1551 = vmatprep.subr.bf16.mxu0 0
        %1552 = vmatpush1.bf16.msra.mxu0 0
        %1553 = vmatprep.subr.bf16.mxu0 0
        %1554 = vmatpush1.bf16.msra.mxu0 0
        %1555 = vmatprep.subr.bf16.mxu0 0
        %1556 = vmatpush1.bf16.msra.mxu0 0
        %1557 = vmatprep.subr.bf16.mxu0 0
        %1558 = vmatpush1.bf16.msra.mxu0 0
        %1559 = vmatprep.subr.bf16.mxu0 0
        %1560 = vmatpush1.bf16.msra.mxu0 0
        %1561 = vmatprep.subr.bf16.mxu0 0
        %1562 = vmatpush1.bf16.msra.mxu0 0
        %1563 = vmatprep.subr.bf16.mxu0 0
        %1564 = vmatpush1.bf16.msra.mxu0 0
        %1565 = vmatprep.subr.bf16.mxu0 0
        %1566 = vmatpush1.bf16.msra.mxu0 0
        %1567 = vmatprep.subr.bf16.mxu0 0
        %1568 = vmatpush1.bf16.msra.mxu0 0
        %1569 = vmatprep.subr.bf16.mxu0 0
        %1570 = vmatpush1.bf16.msra.mxu0 0
        %1571 = vmatprep.subr.bf16.mxu0 0
        %1572 = vmatpush1.bf16.msra.mxu0 0
        %1573 = vmatprep.subr.bf16.mxu0 0
        %1574 = vmatpush1.bf16.msra.mxu0 0
        %1575 = vmatprep.subr.bf16.mxu0 0
        %1576 = vmatpush1.bf16.msra.mxu0 0
        %1577 = vmatprep.mubr.bf16.mxu0 0
        %1578 = vmatmul.mubr.bf16.gmra.mrb[0].mxu0 %v1540
        %v1579 = vpop.f32.mrb[0].mxu0
        %v1580 = vadd.f32 %v1534, %v1579
        %v1581 = vpop.f32.mrb[0].mxu0
        %v1582 = vpop.f32.mrb[0].mxu0
        %v1583 = vpop.f32.mrb[0].mxu0
        %1584 = vdwg.mxu0
        %1585 = vrot.lane.b32.xlu0 %v1261, 112
        %v1586 = vpop.permute.xlu0 %1585
        %1587 = vrot.lane.b32.xlu0 %v1380, 112
        %v1588 = vpop.permute.xlu0 %1587
        %v1590 = vsel %vm1268, %v1586, 0
        %v1593 = vsel %vm1268, %v1588, 0
        %1595 = vmatprep.subr.bf16.mxu0 0
        %1596 = vmatpush1.bf16.xpose.msra.mxu0 %v1593
        %1597 = vmatprep.subr.bf16.mxu0 0
        %1598 = vmatpush1.bf16.xpose.msra.mxu0 0
        %1599 = vmatprep.subr.bf16.mxu0 0
        %1600 = vmatpush1.bf16.xpose.msra.mxu0 0
        %1601 = vmatprep.subr.bf16.mxu0 0
        %1602 = vmatpush1.bf16.xpose.msra.mxu0 0
        %1603 = vmatprep.subr.bf16.mxu0 0
        %1604 = vmatpush1.bf16.xpose.msra.mxu0 0
        %1605 = vmatprep.subr.bf16.mxu0 0
        %1606 = vmatpush1.bf16.xpose.msra.mxu0 0
        %1607 = vmatprep.subr.bf16.mxu0 0
        %1608 = vmatpush1.bf16.xpose.msra.mxu0 0
        %1609 = vmatprep.subr.bf16.mxu0 0
        %1610 = vmatpush1.bf16.xpose.msra.mxu0 0
        %1611 = vmatprep.subr.bf16.mxu0 0
        %1612 = vmatpush1.bf16.xpose.msra.mxu0 0
        %1613 = vmatprep.subr.bf16.mxu0 0
        %1614 = vmatpush1.bf16.xpose.msra.mxu0 0
        %1615 = vmatprep.subr.bf16.mxu0 0
        %1616 = vmatpush1.bf16.xpose.msra.mxu0 0
        %1617 = vmatprep.subr.bf16.mxu0 0
        %1618 = vmatpush1.bf16.xpose.msra.mxu0 0
        %1619 = vmatprep.subr.bf16.mxu0 0
        %1620 = vmatpush1.bf16.xpose.msra.mxu0 0
        %1621 = vmatprep.subr.bf16.mxu0 0
        %1622 = vmatpush1.bf16.xpose.msra.mxu0 0
        %1623 = vmatprep.subr.bf16.mxu0 0
        %1624 = vmatpush1.bf16.xpose.msra.mxu0 0
        %1625 = vmatprep.subr.bf16.mxu0 0
        %1626 = vmatpush1.bf16.xpose.msra.mxu0 0
        %1627 = vmatprep.mubr.bf16.mxu0 0
        %1628 = vmatmul.mubr.bf16.gmra.mrb[0].mxu0 %v1590
        %v1629 = vpop.f32.mrb[0].mxu0
        %v1630 = vadd.f32 %v1161, %v1629
        %v1631 = vpop.f32.mrb[0].mxu0
        %v1632 = vpop.f32.mrb[0].mxu0
        %v1633 = vpop.f32.mrb[0].mxu0
        %1634 = vdwg.mxu0
        %v1635 = vsel %vm1268, %v1630, -inf
        %1636 = vmax.xlane.f32.xlu0 %v1635
        %v1637 = vpop.xlane.xlu0 %1636
        %v1638 = vsub.f32 %v1630, %v1637
        %v1639 = vmul.f32 %v1638, 1.442695
        %v1640 = vpow.pop %v1639
        %v1641 = vsel %vm1268, %v1640, 0.0
        %1642 = vadd.xlane.f32.xlu0 %v1641
        %v1643 = vpop.xlane.xlu0 %1642
        %v1644 = vrcp.pop %v1643
        %v1645 = vmul.f32 %v1640, %v1644
        %v1646 = vpack.c.bf16 %v1645, %v1645
        %1647 = vrot.lane.b32.xlu0 %v1443, 112
        %v1648 = vpop.permute.xlu0 %1647
        %v1650 = vsel %vm1268, %v1646, 0
        %v1653 = vsel %vm1330, %v1648, 0
        %1655 = vmatprep.subr.bf16.mxu0 0
        %1656 = vmatpush1.bf16.msra.mxu0 %v1653
        %1657 = vmatprep.subr.bf16.mxu0 0
        %1658 = vmatpush1.bf16.msra.mxu0 0
        %1659 = vmatprep.subr.bf16.mxu0 0
        %1660 = vmatpush1.bf16.msra.mxu0 0
        %1661 = vmatprep.subr.bf16.mxu0 0
        %1662 = vmatpush1.bf16.msra.mxu0 0
        %1663 = vmatprep.subr.bf16.mxu0 0
        %1664 = vmatpush1.bf16.msra.mxu0 0
        %1665 = vmatprep.subr.bf16.mxu0 0
        %1666 = vmatpush1.bf16.msra.mxu0 0
        %1667 = vmatprep.subr.bf16.mxu0 0
        %1668 = vmatpush1.bf16.msra.mxu0 0
        %1669 = vmatprep.subr.bf16.mxu0 0
        %1670 = vmatpush1.bf16.msra.mxu0 0
        %1671 = vmatprep.subr.bf16.mxu0 0
        %1672 = vmatpush1.bf16.msra.mxu0 0
        %1673 = vmatprep.subr.bf16.mxu0 0
        %1674 = vmatpush1.bf16.msra.mxu0 0
        %1675 = vmatprep.subr.bf16.mxu0 0
        %1676 = vmatpush1.bf16.msra.mxu0 0
        %1677 = vmatprep.subr.bf16.mxu0 0
        %1678 = vmatpush1.bf16.msra.mxu0 0
        %1679 = vmatprep.subr.bf16.mxu0 0
        %1680 = vmatpush1.bf16.msra.mxu0 0
        %1681 = vmatprep.subr.bf16.mxu0 0
        %1682 = vmatpush1.bf16.msra.mxu0 0
        %1683 = vmatprep.subr.bf16.mxu0 0
        %1684 = vmatpush1.bf16.msra.mxu0 0
        %1685 = vmatprep.subr.bf16.mxu0 0
        %1686 = vmatpush1.bf16.msra.mxu0 0
        %1687 = vmatprep.mubr.bf16.mxu0 0
        %1688 = vmatmul.mubr.bf16.gmra.mrb[0].mxu0 %v1650
        %v1689 = vpop.f32.mrb[0].mxu0
        %v1690 = vadd.f32 0.0, %v1689
        %v1691 = vpop.f32.mrb[0].mxu0
        %v1692 = vpop.f32.mrb[0].mxu0
        %v1693 = vpop.f32.mrb[0].mxu0
        %1694 = vdwg.mxu0
        %v1695 = vpack.c.bf16 %v1690, %v1690
        %v1697 = vsel %vm1268, %v1695, 0
        %v1700 = vsel %vm1330, %v1266, 0
        %1702 = vmatprep.subr.bf16.mxu0 0
        %1703 = vmatpush1.bf16.msra.mxu0 %v1700
        %1704 = vmatprep.subr.bf16.mxu0 0
        %1705 = vmatpush1.bf16.msra.mxu0 0
        %1706 = vmatprep.subr.bf16.mxu0 0
        %1707 = vmatpush1.bf16.msra.mxu0 0
        %1708 = vmatprep.subr.bf16.mxu0 0
        %1709 = vmatpush1.bf16.msra.mxu0 0
        %1710 = vmatprep.subr.bf16.mxu0 0
        %1711 = vmatpush1.bf16.msra.mxu0 0
        %1712 = vmatprep.subr.bf16.mxu0 0
        %1713 = vmatpush1.bf16.msra.mxu0 0
        %1714 = vmatprep.subr.bf16.mxu0 0
        %1715 = vmatpush1.bf16.msra.mxu0 0
        %1716 = vmatprep.subr.bf16.mxu0 0
        %1717 = vmatpush1.bf16.msra.mxu0 0
        %1718 = vmatprep.subr.bf16.mxu0 0
        %1719 = vmatpush1.bf16.msra.mxu0 0
        %1720 = vmatprep.subr.bf16.mxu0 0
        %1721 = vmatpush1.bf16.msra.mxu0 0
        %1722 = vmatprep.subr.bf16.mxu0 0
        %1723 = vmatpush1.bf16.msra.mxu0 0
        %1724 = vmatprep.subr.bf16.mxu0 0
        %1725 = vmatpush1.bf16.msra.mxu0 0
        %1726 = vmatprep.subr.bf16.mxu0 0
        %1727 = vmatpush1.bf16.msra.mxu0 0
        %1728 = vmatprep.subr.bf16.mxu0 0
        %1729 = vmatpush1.bf16.msra.mxu0 0
        %1730 = vmatprep.subr.bf16.mxu0 0
        %1731 = vmatpush1.bf16.msra.mxu0 0
        %1732 = vmatprep.subr.bf16.mxu0 0
        %1733 = vmatpush1.bf16.msra.mxu0 0
        %1734 = vmatprep.mubr.bf16.mxu0 0
        %1735 = vmatmul.mubr.bf16.gmra.mrb[0].mxu0 %v1697
        %v1736 = vpop.f32.mrb[0].mxu0
        %v1737 = vadd.f32 0.0, %v1736
        %v1738 = vpop.f32.mrb[0].mxu0
        %v1739 = vpop.f32.mrb[0].mxu0
        %v1740 = vpop.f32.mrb[0].mxu0
        %1741 = vdwg.mxu0
        %v1742 = vadd.f32 %v1580, %v1737
        %1743 = vrot.lane.b32.xlu0 %v1261, 104
        %v1744 = vpop.permute.xlu0 %1743
        %1745 = vrot.lane.b32.xlu0 %v1380, 104
        %v1746 = vpop.permute.xlu0 %1745
        %v1748 = vsel %vm1268, %v1744, 0
        %v1751 = vsel %vm1268, %v1746, 0
        %1753 = vmatprep.subr.bf16.mxu0 0
        %1754 = vmatpush1.bf16.xpose.msra.mxu0 %v1751
        %1755 = vmatprep.subr.bf16.mxu0 0
        %1756 = vmatpush1.bf16.xpose.msra.mxu0 0
        %1757 = vmatprep.subr.bf16.mxu0 0
        %1758 = vmatpush1.bf16.xpose.msra.mxu0 0
        %1759 = vmatprep.subr.bf16.mxu0 0
        %1760 = vmatpush1.bf16.xpose.msra.mxu0 0
        %1761 = vmatprep.subr.bf16.mxu0 0
        %1762 = vmatpush1.bf16.xpose.msra.mxu0 0
        %1763 = vmatprep.subr.bf16.mxu0 0
        %1764 = vmatpush1.bf16.xpose.msra.mxu0 0
        %1765 = vmatprep.subr.bf16.mxu0 0
        %1766 = vmatpush1.bf16.xpose.msra.mxu0 0
        %1767 = vmatprep.subr.bf16.mxu0 0
        %1768 = vmatpush1.bf16.xpose.msra.mxu0 0
        %1769 = vmatprep.subr.bf16.mxu0 0
        %1770 = vmatpush1.bf16.xpose.msra.mxu0 0
        %1771 = vmatprep.subr.bf16.mxu0 0
        %1772 = vmatpush1.bf16.xpose.msra.mxu0 0
        %1773 = vmatprep.subr.bf16.mxu0 0
        %1774 = vmatpush1.bf16.xpose.msra.mxu0 0
        %1775 = vmatprep.subr.bf16.mxu0 0
        %1776 = vmatpush1.bf16.xpose.msra.mxu0 0
        %1777 = vmatprep.subr.bf16.mxu0 0
        %1778 = vmatpush1.bf16.xpose.msra.mxu0 0
        %1779 = vmatprep.subr.bf16.mxu0 0
        %1780 = vmatpush1.bf16.xpose.msra.mxu0 0
        %1781 = vmatprep.subr.bf16.mxu0 0
        %1782 = vmatpush1.bf16.xpose.msra.mxu0 0
        %1783 = vmatprep.subr.bf16.mxu0 0
        %1784 = vmatpush1.bf16.xpose.msra.mxu0 0
        %1785 = vmatprep.mubr.bf16.mxu0 0
        %1786 = vmatmul.mubr.bf16.gmra.mrb[0].mxu0 %v1748
        %v1787 = vpop.f32.mrb[0].mxu0
        %v1788 = vadd.f32 %v1161, %v1787
        %v1789 = vpop.f32.mrb[0].mxu0
        %v1790 = vpop.f32.mrb[0].mxu0
        %v1791 = vpop.f32.mrb[0].mxu0
        %1792 = vdwg.mxu0
        %v1793 = vsel %vm1268, %v1788, -inf
        %1794 = vmax.xlane.f32.xlu0 %v1793
        %v1795 = vpop.xlane.xlu0 %1794
        %v1796 = vsub.f32 %v1788, %v1795
        %v1797 = vmul.f32 %v1796, 1.442695
        %v1798 = vpow.pop %v1797
        %v1799 = vsel %vm1268, %v1798, 0.0
        %1800 = vadd.xlane.f32.xlu0 %v1799
        %v1801 = vpop.xlane.xlu0 %1800
        %v1802 = vrcp.pop %v1801
        %v1803 = vmul.f32 %v1798, %v1802
        %v1804 = vpack.c.bf16 %v1803, %v1803
        %1805 = vrot.lane.b32.xlu0 %v1443, 104
        %v1806 = vpop.permute.xlu0 %1805
        %v1808 = vsel %vm1268, %v1804, 0
        %v1811 = vsel %vm1330, %v1806, 0
        %1813 = vmatprep.subr.bf16.mxu0 0
        %1814 = vmatpush1.bf16.msra.mxu0 %v1811
        %1815 = vmatprep.subr.bf16.mxu0 0
        %1816 = vmatpush1.bf16.msra.mxu0 0
        %1817 = vmatprep.subr.bf16.mxu0 0
        %1818 = vmatpush1.bf16.msra.mxu0 0
        %1819 = vmatprep.subr.bf16.mxu0 0
        %1820 = vmatpush1.bf16.msra.mxu0 0
        %1821 = vmatprep.subr.bf16.mxu0 0
        %1822 = vmatpush1.bf16.msra.mxu0 0
        %1823 = vmatprep.subr.bf16.mxu0 0
        %1824 = vmatpush1.bf16.msra.mxu0 0
        %1825 = vmatprep.subr.bf16.mxu0 0
        %1826 = vmatpush1.bf16.msra.mxu0 0
        %1827 = vmatprep.subr.bf16.mxu0 0
        %1828 = vmatpush1.bf16.msra.mxu0 0
        %1829 = vmatprep.subr.bf16.mxu0 0
        %1830 = vmatpush1.bf16.msra.mxu0 0
        %1831 = vmatprep.subr.bf16.mxu0 0
        %1832 = vmatpush1.bf16.msra.mxu0 0
        %1833 = vmatprep.subr.bf16.mxu0 0
        %1834 = vmatpush1.bf16.msra.mxu0 0
        %1835 = vmatprep.subr.bf16.mxu0 0
        %1836 = vmatpush1.bf16.msra.mxu0 0
        %1837 = vmatprep.subr.bf16.mxu0 0
        %1838 = vmatpush1.bf16.msra.mxu0 0
        %1839 = vmatprep.subr.bf16.mxu0 0
        %1840 = vmatpush1.bf16.msra.mxu0 0
        %1841 = vmatprep.subr.bf16.mxu0 0
        %1842 = vmatpush1.bf16.msra.mxu0 0
        %1843 = vmatprep.subr.bf16.mxu0 0
        %1844 = vmatpush1.bf16.msra.mxu0 0
        %1845 = vmatprep.mubr.bf16.mxu0 0
        %1846 = vmatmul.mubr.bf16.gmra.mrb[0].mxu0 %v1808
        %v1847 = vpop.f32.mrb[0].mxu0
        %v1848 = vadd.f32 0.0, %v1847
        %v1849 = vpop.f32.mrb[0].mxu0
        %v1850 = vpop.f32.mrb[0].mxu0
        %v1851 = vpop.f32.mrb[0].mxu0
        %1852 = vdwg.mxu0
        %v1853 = vpack.c.bf16 %v1848, %v1848
        %v1855 = vsel %vm1268, %v1853, 0
        %v1858 = vsel %vm1330, %v1267, 0
        %1860 = vmatprep.subr.bf16.mxu0 0
        %1861 = vmatpush1.bf16.msra.mxu0 %v1858
        %1862 = vmatprep.subr.bf16.mxu0 0
        %1863 = vmatpush1.bf16.msra.mxu0 0
        %1864 = vmatprep.subr.bf16.mxu0 0
        %1865 = vmatpush1.bf16.msra.mxu0 0
        %1866 = vmatprep.subr.bf16.mxu0 0
        %1867 = vmatpush1.bf16.msra.mxu0 0
        %1868 = vmatprep.subr.bf16.mxu0 0
        %1869 = vmatpush1.bf16.msra.mxu0 0
        %1870 = vmatprep.subr.bf16.mxu0 0
        %1871 = vmatpush1.bf16.msra.mxu0 0
        %1872 = vmatprep.subr.bf16.mxu0 0
        %1873 = vmatpush1.bf16.msra.mxu0 0
        %1874 = vmatprep.subr.bf16.mxu0 0
        %1875 = vmatpush1.bf16.msra.mxu0 0
        %1876 = vmatprep.subr.bf16.mxu0 0
        %1877 = vmatpush1.bf16.msra.mxu0 0
        %1878 = vmatprep.subr.bf16.mxu0 0
        %1879 = vmatpush1.bf16.msra.mxu0 0
        %1880 = vmatprep.subr.bf16.mxu0 0
        %1881 = vmatpush1.bf16.msra.mxu0 0
        %1882 = vmatprep.subr.bf16.mxu0 0
        %1883 = vmatpush1.bf16.msra.mxu0 0
        %1884 = vmatprep.subr.bf16.mxu0 0
        %1885 = vmatpush1.bf16.msra.mxu0 0
        %1886 = vmatprep.subr.bf16.mxu0 0
        %1887 = vmatpush1.bf16.msra.mxu0 0
        %1888 = vmatprep.subr.bf16.mxu0 0
        %1889 = vmatpush1.bf16.msra.mxu0 0
        %1890 = vmatprep.subr.bf16.mxu0 0
        %1891 = vmatpush1.bf16.msra.mxu0 0
        %1892 = vmatprep.mubr.bf16.mxu0 0
        %1893 = vmatmul.mubr.bf16.gmra.mrb[0].mxu0 %v1855
        %v1894 = vpop.f32.mrb[0].mxu0
        %v1895 = vadd.f32 0.0, %v1894
        %v1896 = vpop.f32.mrb[0].mxu0
        %v1897 = vpop.f32.mrb[0].mxu0
        %v1898 = vpop.f32.mrb[0].mxu0
        %1899 = vdwg.mxu0
        %v1900 = vadd.f32 %v1742, %v1895
        %v1901 = vld [vmem:[#allocation17] sm:$0x1]
        %v1903 = vlaneseq
        %v1904 = vshrl.u32 %v1903, 7
        %v1905 = vsub.s32 0, %v1904
        %v1906 = vrot.slane %v1901, %v1905
        %v1908 = vadd.f32 %v1900, %v1906
        %v1909 = vadd.f32 %v1160, %v1908
        %v1910 = vld [vmem:[#allocation18] sm:$0x1]
        %v1911 = vld [vmem:[#allocation20] sm:$0x1]
        %v1912 = vsel %vm1164, %v1909, 0.0
        %1913 = vadd.xlane.f32.xlu0 %v1912
        %v1914 = vpop.xlane.xlu0 %1913
        %v1915 = vmul.f32 %v1914, %v1168
        %v1916 = vsub.f32 %v1909, %v1915
        %v1917 = vmul.f32 %v1916, %v1916
        %v1918 = vsel %vm1164, %v1917, 0.0
        %1919 = vadd.xlane.f32.xlu0 %v1918
        %v1920 = vpop.xlane.xlu0 %1919
        %v1921 = vmul.f32 %v1920, %v1168
        %v1922 = vadd.f32 %v1921, 1e-05
        %v1923 = vrsqrt.pop %v1922
        %v1924 = vmul.f32 %v1916, %v1923
        %v1926 = vlaneseq
        %v1927 = vshrl.u32 %v1926, 7
        %v1928 = vsub.s32 0, %v1927
        %v1929 = vrot.slane %v1910, %v1928
        %v1931 = vmul.f32 %v1924, %v1929
        %v1933 = vlaneseq
        %v1934 = vshrl.u32 %v1933, 7
        %v1935 = vsub.s32 0, %v1934
        %v1936 = vrot.slane %v1911, %v1935
        %v1938 = vadd.f32 %v1931, %v1936
        %v1939 = vpack.c.bf16 %v1938, %v1938
        %v1940 = vld [vmem:[%s13] sm:$0xf]
        %v1941 = vld [vmem:[%s13 + $0x4] sm:$0xf]
        %v1942 = vld [vmem:[%s13 + $0x8] sm:$0xf]
        %v1943 = vld [vmem:[%s13 + $0xc] sm:$0xf]
        %v1944 = vld [vmem:[#allocation21] sm:$0x1]
        %v1946 = vlaneseq
        %v1947 = vshrl.u32 %v1946, 7
        %v1948 = vsub.s32 0, %v1947
        %v1949 = vrot.slane %v1944, %v1948
        %v1955 = vunpack.c.l.b16 %v1940
        %v1956 = vunpack.c.l.b16 %v1941
        %v1957 = vunpack.c.l.b16 %v1942
        %v1958 = vunpack.c.l.b16 %v1943
        %v1959 = vpack.c.b16 %v1956, %v1955
        %v1960 = vpack.c.b16 %v1958, %v1957
        %v1964 = vsel %vm1164, %v1939, 0
        %1966 = vmatprep.subr.bf16.mxu0 0
        %1967 = vmatpush1.bf16.msra.mxu0 %v1959
        %1968 = vmatprep.subr.bf16.mxu0 0
        %1969 = vmatpush1.bf16.msra.mxu0 %v1960
        %1970 = vmatprep.subr.bf16.mxu0 0
        %1971 = vmatpush1.bf16.msra.mxu0 0
        %1972 = vmatprep.subr.bf16.mxu0 0
        %1973 = vmatpush1.bf16.msra.mxu0 0
        %1974 = vmatprep.subr.bf16.mxu0 0
        %1975 = vmatpush1.bf16.msra.mxu0 0
        %1976 = vmatprep.subr.bf16.mxu0 0
        %1977 = vmatpush1.bf16.msra.mxu0 0
        %1978 = vmatprep.subr.bf16.mxu0 0
        %1979 = vmatpush1.bf16.msra.mxu0 0
        %1980 = vmatprep.subr.bf16.mxu0 0
        %1981 = vmatpush1.bf16.msra.mxu0 0
        %1982 = vmatprep.subr.bf16.mxu0 0
        %1983 = vmatpush1.bf16.msra.mxu0 0
        %1984 = vmatprep.subr.bf16.mxu0 0
        %1985 = vmatpush1.bf16.msra.mxu0 0
        %1986 = vmatprep.subr.bf16.mxu0 0
        %1987 = vmatpush1.bf16.msra.mxu0 0
        %1988 = vmatprep.subr.bf16.mxu0 0
        %1989 = vmatpush1.bf16.msra.mxu0 0
        %1990 = vmatprep.subr.bf16.mxu0 0
        %1991 = vmatpush1.bf16.msra.mxu0 0
        %1992 = vmatprep.subr.bf16.mxu0 0
        %1993 = vmatpush1.bf16.msra.mxu0 0
        %1994 = vmatprep.subr.bf16.mxu0 0
        %1995 = vmatpush1.bf16.msra.mxu0 0
        %1996 = vmatprep.subr.bf16.mxu0 0
        %1997 = vmatpush1.bf16.msra.mxu0 0
        %1998 = vmatprep.mubr.bf16.mxu0 0
        %1999 = vmatmul.mubr.bf16.gmra.mrb[0].mxu0 %v1964
        %v2000 = vpop.f32.mrb[0].mxu0
        %v2001 = vadd.f32 %v1949, %v2000
        %v2002 = vpop.f32.mrb[0].mxu0
        %v2003 = vpop.f32.mrb[0].mxu0
        %v2004 = vpop.f32.mrb[0].mxu0
        %2005 = vdwg.mxu0
        %v2006 = vmul.f32 %v2001, 0.35355338
        %v2007 = vpack.c.bf16 %v2006, %v2006
        %v2008 = vld [vmem:[#allocation4] sm:$0xf]
        %v2009 = vld [vmem:[#allocation5] sm:$0xf]
        %v2010 = vld [vmem:[%s17] sm:$0xf]
        %v2011 = vld [vmem:[%s17 + $0x4] sm:$0xf]
        %v2012 = vld [vmem:[%s17 + $0x8] sm:$0xf]
        %v2013 = vld [vmem:[%s17 + $0xc] sm:$0xf]
        %v2015 = vsel %vm1268, %v2007, 0
        %v2018 = vsel %vm1268, %v2008, 0
        %2020 = vmatprep.subr.bf16.mxu0 0
        %2021 = vmatpush1.bf16.xpose.msra.mxu0 %v2018
        %2022 = vmatprep.subr.bf16.mxu0 0
        %2023 = vmatpush1.bf16.xpose.msra.mxu0 0
        %2024 = vmatprep.subr.bf16.mxu0 0
        %2025 = vmatpush1.bf16.xpose.msra.mxu0 0
        %2026 = vmatprep.subr.bf16.mxu0 0
        %2027 = vmatpush1.bf16.xpose.msra.mxu0 0
        %2028 = vmatprep.subr.bf16.mxu0 0
        %2029 = vmatpush1.bf16.xpose.msra.mxu0 0
        %2030 = vmatprep.subr.bf16.mxu0 0
        %2031 = vmatpush1.bf16.xpose.msra.mxu0 0
        %2032 = vmatprep.subr.bf16.mxu0 0
        %2033 = vmatpush1.bf16.xpose.msra.mxu0 0
        %2034 = vmatprep.subr.bf16.mxu0 0
        %2035 = vmatpush1.bf16.xpose.msra.mxu0 0
        %2036 = vmatprep.subr.bf16.mxu0 0
        %2037 = vmatpush1.bf16.xpose.msra.mxu0 0
        %2038 = vmatprep.subr.bf16.mxu0 0
        %2039 = vmatpush1.bf16.xpose.msra.mxu0 0
        %2040 = vmatprep.subr.bf16.mxu0 0
        %2041 = vmatpush1.bf16.xpose.msra.mxu0 0
        %2042 = vmatprep.subr.bf16.mxu0 0
        %2043 = vmatpush1.bf16.xpose.msra.mxu0 0
        %2044 = vmatprep.subr.bf16.mxu0 0
        %2045 = vmatpush1.bf16.xpose.msra.mxu0 0
        %2046 = vmatprep.subr.bf16.mxu0 0
        %2047 = vmatpush1.bf16.xpose.msra.mxu0 0
        %2048 = vmatprep.subr.bf16.mxu0 0
        %2049 = vmatpush1.bf16.xpose.msra.mxu0 0
        %2050 = vmatprep.subr.bf16.mxu0 0
        %2051 = vmatpush1.bf16.xpose.msra.mxu0 0
        %2052 = vmatprep.mubr.bf16.mxu0 0
        %2053 = vmatmul.mubr.bf16.gmra.mrb[0].mxu0 %v2015
        %v2054 = vpop.f32.mrb[0].mxu0
        %v2055 = vadd.f32 0.0, %v2054
        %v2056 = vpop.f32.mrb[0].mxu0
        %v2057 = vpop.f32.mrb[0].mxu0
        %v2058 = vpop.f32.mrb[0].mxu0
        %2059 = vdwg.mxu0
        %v2060 = vsel %vm1268, %v2055, -inf
        %2061 = vmax.xlane.f32.xlu0 %v2060
        %v2062 = vpop.xlane.xlu0 %2061
        %v2063 = vsub.f32 %v2055, %v2062
        %v2064 = vmul.f32 %v2063, 1.442695
        %v2065 = vpow.pop %v2064
        %v2066 = vsel %vm1268, %v2065, 0.0
        %2067 = vadd.xlane.f32.xlu0 %v2066
        %v2068 = vpop.xlane.xlu0 %2067
        %v2069 = vrcp.pop %v2068
        %v2070 = vmul.f32 %v2065, %v2069
        %v2071 = vpack.c.bf16 %v2070, %v2070
        %v2073 = vsel %vm1268, %v2071, 0
        %v2076 = vsel %vm1330, %v2009, 0
        %2078 = vmatprep.subr.bf16.mxu0 0
        %2079 = vmatpush1.bf16.msra.mxu0 %v2076
        %2080 = vmatprep.subr.bf16.mxu0 0
        %2081 = vmatpush1.bf16.msra.mxu0 0
        %2082 = vmatprep.subr.bf16.mxu0 0
        %2083 = vmatpush1.bf16.msra.mxu0 0
        %2084 = vmatprep.subr.bf16.mxu0 0
        %2085 = vmatpush1.bf16.msra.mxu0 0
        %2086 = vmatprep.subr.bf16.mxu0 0
        %2087 = vmatpush1.bf16.msra.mxu0 0
        %2088 = vmatprep.subr.bf16.mxu0 0
        %2089 = vmatpush1.bf16.msra.mxu0 0
        %2090 = vmatprep.subr.bf16.mxu0 0
        %2091 = vmatpush1.bf16.msra.mxu0 0
        %2092 = vmatprep.subr.bf16.mxu0 0
        %2093 = vmatpush1.bf16.msra.mxu0 0
        %2094 = vmatprep.subr.bf16.mxu0 0
        %2095 = vmatpush1.bf16.msra.mxu0 0
        %2096 = vmatprep.subr.bf16.mxu0 0
        %2097 = vmatpush1.bf16.msra.mxu0 0
        %2098 = vmatprep.subr.bf16.mxu0 0
        %2099 = vmatpush1.bf16.msra.mxu0 0
        %2100 = vmatprep.subr.bf16.mxu0 0
        %2101 = vmatpush1.bf16.msra.mxu0 0
        %2102 = vmatprep.subr.bf16.mxu0 0
        %2103 = vmatpush1.bf16.msra.mxu0 0
        %2104 = vmatprep.subr.bf16.mxu0 0
        %2105 = vmatpush1.bf16.msra.mxu0 0
        %2106 = vmatprep.subr.bf16.mxu0 0
        %2107 = vmatpush1.bf16.msra.mxu0 0
        %2108 = vmatprep.subr.bf16.mxu0 0
        %2109 = vmatpush1.bf16.msra.mxu0 0
        %2110 = vmatprep.mubr.bf16.mxu0 0
        %2111 = vmatmul.mubr.bf16.gmra.mrb[0].mxu0 %v2073
        %v2112 = vpop.f32.mrb[0].mxu0
        %v2113 = vadd.f32 0.0, %v2112
        %v2114 = vpop.f32.mrb[0].mxu0
        %v2115 = vpop.f32.mrb[0].mxu0
        %v2116 = vpop.f32.mrb[0].mxu0
        %2117 = vdwg.mxu0
        %v2118 = vpack.c.bf16 %v2113, %v2113
        %2120 = vrot.lane.b32.xlu0 %v2007, 120
        %v2121 = vpop.permute.xlu0 %2120
        %v2123 = vunpack.c.l.b16 %v2008
        %v2124 = vpack.c.b16 %v2123, %v2123
        %2125 = vrot.lane.b32.xlu0 %v2124, 120
        %v2126 = vpop.permute.xlu0 %2125
        %v2128 = vsel %vm1268, %v2121, 0
        %v2131 = vsel %vm1268, %v2126, 0
        %2133 = vmatprep.subr.bf16.mxu0 0
        %2134 = vmatpush1.bf16.xpose.msra.mxu0 %v2131
        %2135 = vmatprep.subr.bf16.mxu0 0
        %2136 = vmatpush1.bf16.xpose.msra.mxu0 0
        %2137 = vmatprep.subr.bf16.mxu0 0
        %2138 = vmatpush1.bf16.xpose.msra.mxu0 0
        %2139 = vmatprep.subr.bf16.mxu0 0
        %2140 = vmatpush1.bf16.xpose.msra.mxu0 0
        %2141 = vmatprep.subr.bf16.mxu0 0
        %2142 = vmatpush1.bf16.xpose.msra.mxu0 0
        %2143 = vmatprep.subr.bf16.mxu0 0
        %2144 = vmatpush1.bf16.xpose.msra.mxu0 0
        %2145 = vmatprep.subr.bf16.mxu0 0
        %2146 = vmatpush1.bf16.xpose.msra.mxu0 0
        %2147 = vmatprep.subr.bf16.mxu0 0
        %2148 = vmatpush1.bf16.xpose.msra.mxu0 0
        %2149 = vmatprep.subr.bf16.mxu0 0
        %2150 = vmatpush1.bf16.xpose.msra.mxu0 0
        %2151 = vmatprep.subr.bf16.mxu0 0
        %2152 = vmatpush1.bf16.xpose.msra.mxu0 0
        %2153 = vmatprep.subr.bf16.mxu0 0
        %2154 = vmatpush1.bf16.xpose.msra.mxu0 0
        %2155 = vmatprep.subr.bf16.mxu0 0
        %2156 = vmatpush1.bf16.xpose.msra.mxu0 0
        %2157 = vmatprep.subr.bf16.mxu0 0
        %2158 = vmatpush1.bf16.xpose.msra.mxu0 0
        %2159 = vmatprep.subr.bf16.mxu0 0
        %2160 = vmatpush1.bf16.xpose.msra.mxu0 0
        %2161 = vmatprep.subr.bf16.mxu0 0
        %2162 = vmatpush1.bf16.xpose.msra.mxu0 0
        %2163 = vmatprep.subr.bf16.mxu0 0
        %2164 = vmatpush1.bf16.xpose.msra.mxu0 0
        %2165 = vmatprep.mubr.bf16.mxu0 0
        %2166 = vmatmul.mubr.bf16.gmra.mrb[0].mxu0 %v2128
        %v2167 = vpop.f32.mrb[0].mxu0
        %v2168 = vadd.f32 0.0, %v2167
        %v2169 = vpop.f32.mrb[0].mxu0
        %v2170 = vpop.f32.mrb[0].mxu0
        %v2171 = vpop.f32.mrb[0].mxu0
        %2172 = vdwg.mxu0
        %v2173 = vsel %vm1268, %v2168, -inf
        %2174 = vmax.xlane.f32.xlu0 %v2173
        %v2175 = vpop.xlane.xlu0 %2174
        %v2176 = vsub.f32 %v2168, %v2175
        %v2177 = vmul.f32 %v2176, 1.442695
        %v2178 = vpow.pop %v2177
        %v2179 = vsel %vm1268, %v2178, 0.0
        %2180 = vadd.xlane.f32.xlu0 %v2179
        %v2181 = vpop.xlane.xlu0 %2180
        %v2182 = vrcp.pop %v2181
        %v2183 = vmul.f32 %v2178, %v2182
        %v2184 = vpack.c.bf16 %v2183, %v2183
        %v2186 = vunpack.c.l.b16 %v2009
        %v2187 = vpack.c.b16 %v2186, %v2186
        %2188 = vrot.lane.b32.xlu0 %v2187, 120
        %v2189 = vpop.permute.xlu0 %2188
        %v2191 = vsel %vm1268, %v2184, 0
        %v2194 = vsel %vm1330, %v2189, 0
        %2196 = vmatprep.subr.bf16.mxu0 0
        %2197 = vmatpush1.bf16.msra.mxu0 %v2194
        %2198 = vmatprep.subr.bf16.mxu0 0
        %2199 = vmatpush1.bf16.msra.mxu0 0
        %2200 = vmatprep.subr.bf16.mxu0 0
        %2201 = vmatpush1.bf16.msra.mxu0 0
        %2202 = vmatprep.subr.bf16.mxu0 0
        %2203 = vmatpush1.bf16.msra.mxu0 0
        %2204 = vmatprep.subr.bf16.mxu0 0
        %2205 = vmatpush1.bf16.msra.mxu0 0
        %2206 = vmatprep.subr.bf16.mxu0 0
        %2207 = vmatpush1.bf16.msra.mxu0 0
        %2208 = vmatprep.subr.bf16.mxu0 0
        %2209 = vmatpush1.bf16.msra.mxu0 0
        %2210 = vmatprep.subr.bf16.mxu0 0
        %2211 = vmatpush1.bf16.msra.mxu0 0
        %2212 = vmatprep.subr.bf16.mxu0 0
        %2213 = vmatpush1.bf16.msra.mxu0 0
        %2214 = vmatprep.subr.bf16.mxu0 0
        %2215 = vmatpush1.bf16.msra.mxu0 0
        %2216 = vmatprep.subr.bf16.mxu0 0
        %2217 = vmatpush1.bf16.msra.mxu0 0
        %2218 = vmatprep.subr.bf16.mxu0 0
        %2219 = vmatpush1.bf16.msra.mxu0 0
        %2220 = vmatprep.subr.bf16.mxu0 0
        %2221 = vmatpush1.bf16.msra.mxu0 0
        %2222 = vmatprep.subr.bf16.mxu0 0
        %2223 = vmatpush1.bf16.msra.mxu0 0
        %2224 = vmatprep.subr.bf16.mxu0 0
        %2225 = vmatpush1.bf16.msra.mxu0 0
        %2226 = vmatprep.subr.bf16.mxu0 0
        %2227 = vmatpush1.bf16.msra.mxu0 0
        %2228 = vmatprep.mubr.bf16.mxu0 0
        %2229 = vmatmul.mubr.bf16.gmra.mrb[0].mxu0 %v2191
        %v2230 = vpop.f32.mrb[0].mxu0
        %v2231 = vadd.f32 0.0, %v2230
        %v2232 = vpop.f32.mrb[0].mxu0
        %v2233 = vpop.f32.mrb[0].mxu0
        %v2234 = vpop.f32.mrb[0].mxu0
        %2235 = vdwg.mxu0
        %v2236 = vpack.c.bf16 %v2231, %v2231
        %v2238 = vsel %vm1268, %v2236, 0
        %v2241 = vsel %vm1330, %v2011, 0
        %2243 = vmatprep.subr.bf16.mxu0 0
        %2244 = vmatpush1.bf16.msra.mxu0 %v2241
        %2245 = vmatprep.subr.bf16.mxu0 0
        %2246 = vmatpush1.bf16.msra.mxu0 0
        %2247 = vmatprep.subr.bf16.mxu0 0
        %2248 = vmatpush1.bf16.msra.mxu0 0
        %2249 = vmatprep.subr.bf16.mxu0 0
        %2250 = vmatpush1.bf16.msra.mxu0 0
        %2251 = vmatprep.subr.bf16.mxu0 0
        %2252 = vmatpush1.bf16.msra.mxu0 0
        %2253 = vmatprep.subr.bf16.mxu0 0
        %2254 = vmatpush1.bf16.msra.mxu0 0
        %2255 = vmatprep.subr.bf16.mxu0 0
        %2256 = vmatpush1.bf16.msra.mxu0 0
        %2257 = vmatprep.subr.bf16.mxu0 0
        %2258 = vmatpush1.bf16.msra.mxu0 0
        %2259 = vmatprep.subr.bf16.mxu0 0
        %2260 = vmatpush1.bf16.msra.mxu0 0
        %2261 = vmatprep.subr.bf16.mxu0 0
        %2262 = vmatpush1.bf16.msra.mxu0 0
        %2263 = vmatprep.subr.bf16.mxu0 0
        %2264 = vmatpush1.bf16.msra.mxu0 0
        %2265 = vmatprep.subr.bf16.mxu0 0
        %2266 = vmatpush1.bf16.msra.mxu0 0
        %2267 = vmatprep.subr.bf16.mxu0 0
        %2268 = vmatpush1.bf16.msra.mxu0 0
        %2269 = vmatprep.subr.bf16.mxu0 0
        %2270 = vmatpush1.bf16.msra.mxu0 0
        %2271 = vmatprep.subr.bf16.mxu0 0
        %2272 = vmatpush1.bf16.msra.mxu0 0
        %2273 = vmatprep.subr.bf16.mxu0 0
        %2274 = vmatpush1.bf16.msra.mxu0 0
        %2275 = vmatprep.mubr.bf16.mxu0 0
        %2276 = vmatmul.mubr.bf16.gmra.mrb[0].mxu0 %v2238
        %v2277 = vpop.f32.mrb[0].mxu0
        %v2278 = vadd.f32 0.0, %v2277
        %v2279 = vpop.f32.mrb[0].mxu0
        %v2280 = vpop.f32.mrb[0].mxu0
        %v2281 = vpop.f32.mrb[0].mxu0
        %2282 = vdwg.mxu0
        %v2284 = vsel %vm1268, %v2118, 0
        %v2287 = vsel %vm1330, %v2010, 0
        %2289 = vmatprep.subr.bf16.mxu0 0
        %2290 = vmatpush1.bf16.msra.mxu0 %v2287
        %2291 = vmatprep.subr.bf16.mxu0 0
        %2292 = vmatpush1.bf16.msra.mxu0 0
        %2293 = vmatprep.subr.bf16.mxu0 0
        %2294 = vmatpush1.bf16.msra.mxu0 0
        %2295 = vmatprep.subr.bf16.mxu0 0
        %2296 = vmatpush1.bf16.msra.mxu0 0
        %2297 = vmatprep.subr.bf16.mxu0 0
        %2298 = vmatpush1.bf16.msra.mxu0 0
        %2299 = vmatprep.subr.bf16.mxu0 0
        %2300 = vmatpush1.bf16.msra.mxu0 0
        %2301 = vmatprep.subr.bf16.mxu0 0
        %2302 = vmatpush1.bf16.msra.mxu0 0
        %2303 = vmatprep.subr.bf16.mxu0 0
        %2304 = vmatpush1.bf16.msra.mxu0 0
        %2305 = vmatprep.subr.bf16.mxu0 0
        %2306 = vmatpush1.bf16.msra.mxu0 0
        %2307 = vmatprep.subr.bf16.mxu0 0
        %2308 = vmatpush1.bf16.msra.mxu0 0
        %2309 = vmatprep.subr.bf16.mxu0 0
        %2310 = vmatpush1.bf16.msra.mxu0 0
        %2311 = vmatprep.subr.bf16.mxu0 0
        %2312 = vmatpush1.bf16.msra.mxu0 0
        %2313 = vmatprep.subr.bf16.mxu0 0
        %2314 = vmatpush1.bf16.msra.mxu0 0
        %2315 = vmatprep.subr.bf16.mxu0 0
        %2316 = vmatpush1.bf16.msra.mxu0 0
        %2317 = vmatprep.subr.bf16.mxu0 0
        %2318 = vmatpush1.bf16.msra.mxu0 0
        %2319 = vmatprep.subr.bf16.mxu0 0
        %2320 = vmatpush1.bf16.msra.mxu0 0
        %2321 = vmatprep.mubr.bf16.mxu0 0
        %2322 = vmatmul.mubr.bf16.gmra.mrb[0].mxu0 %v2284
        %v2323 = vpop.f32.mrb[0].mxu0
        %v2324 = vadd.f32 %v2278, %v2323
        %v2325 = vpop.f32.mrb[0].mxu0
        %v2326 = vpop.f32.mrb[0].mxu0
        %v2327 = vpop.f32.mrb[0].mxu0
        %2328 = vdwg.mxu0
        %2329 = vrot.lane.b32.xlu0 %v2007, 112
        %v2330 = vpop.permute.xlu0 %2329
        %2331 = vrot.lane.b32.xlu0 %v2124, 112
        %v2332 = vpop.permute.xlu0 %2331
        %v2334 = vsel %vm1268, %v2330, 0
        %v2337 = vsel %vm1268, %v2332, 0
        %2339 = vmatprep.subr.bf16.mxu0 0
        %2340 = vmatpush1.bf16.xpose.msra.mxu0 %v2337
        %2341 = vmatprep.subr.bf16.mxu0 0
        %2342 = vmatpush1.bf16.xpose.msra.mxu0 0
        %2343 = vmatprep.subr.bf16.mxu0 0
        %2344 = vmatpush1.bf16.xpose.msra.mxu0 0
        %2345 = vmatprep.subr.bf16.mxu0 0
        %2346 = vmatpush1.bf16.xpose.msra.mxu0 0
        %2347 = vmatprep.subr.bf16.mxu0 0
        %2348 = vmatpush1.bf16.xpose.msra.mxu0 0
        %2349 = vmatprep.subr.bf16.mxu0 0
        %2350 = vmatpush1.bf16.xpose.msra.mxu0 0
        %2351 = vmatprep.subr.bf16.mxu0 0
        %2352 = vmatpush1.bf16.xpose.msra.mxu0 0
        %2353 = vmatprep.subr.bf16.mxu0 0
        %2354 = vmatpush1.bf16.xpose.msra.mxu0 0
        %2355 = vmatprep.subr.bf16.mxu0 0
        %2356 = vmatpush1.bf16.xpose.msra.mxu0 0
        %2357 = vmatprep.subr.bf16.mxu0 0
        %2358 = vmatpush1.bf16.xpose.msra.mxu0 0
        %2359 = vmatprep.subr.bf16.mxu0 0
        %2360 = vmatpush1.bf16.xpose.msra.mxu0 0
        %2361 = vmatprep.subr.bf16.mxu0 0
        %2362 = vmatpush1.bf16.xpose.msra.mxu0 0
        %2363 = vmatprep.subr.bf16.mxu0 0
        %2364 = vmatpush1.bf16.xpose.msra.mxu0 0
        %2365 = vmatprep.subr.bf16.mxu0 0
        %2366 = vmatpush1.bf16.xpose.msra.mxu0 0
        %2367 = vmatprep.subr.bf16.mxu0 0
        %2368 = vmatpush1.bf16.xpose.msra.mxu0 0
        %2369 = vmatprep.subr.bf16.mxu0 0
        %2370 = vmatpush1.bf16.xpose.msra.mxu0 0
        %2371 = vmatprep.mubr.bf16.mxu0 0
        %2372 = vmatmul.mubr.bf16.gmra.mrb[0].mxu0 %v2334
        %v2373 = vpop.f32.mrb[0].mxu0
        %v2374 = vadd.f32 0.0, %v2373
        %v2375 = vpop.f32.mrb[0].mxu0
        %v2376 = vpop.f32.mrb[0].mxu0
        %v2377 = vpop.f32.mrb[0].mxu0
        %2378 = vdwg.mxu0
        %v2379 = vsel %vm1268, %v2374, -inf
        %2380 = vmax.xlane.f32.xlu0 %v2379
        %v2381 = vpop.xlane.xlu0 %2380
        %v2382 = vsub.f32 %v2374, %v2381
        %v2383 = vmul.f32 %v2382, 1.442695
        %v2384 = vpow.pop %v2383
        %v2385 = vsel %vm1268, %v2384, 0.0
        %2386 = vadd.xlane.f32.xlu0 %v2385
        %v2387 = vpop.xlane.xlu0 %2386
        %v2388 = vrcp.pop %v2387
        %v2389 = vmul.f32 %v2384, %v2388
        %v2390 = vpack.c.bf16 %v2389, %v2389
        %2391 = vrot.lane.b32.xlu0 %v2187, 112
        %v2392 = vpop.permute.xlu0 %2391
        %v2394 = vsel %vm1268, %v2390, 0
        %v2397 = vsel %vm1330, %v2392, 0
        %2399 = vmatprep.subr.bf16.mxu0 0
        %2400 = vmatpush1.bf16.msra.mxu0 %v2397
        %2401 = vmatprep.subr.bf16.mxu0 0
        %2402 = vmatpush1.bf16.msra.mxu0 0
        %2403 = vmatprep.subr.bf16.mxu0 0
        %2404 = vmatpush1.bf16.msra.mxu0 0
        %2405 = vmatprep.subr.bf16.mxu0 0
        %2406 = vmatpush1.bf16.msra.mxu0 0
        %2407 = vmatprep.subr.bf16.mxu0 0
        %2408 = vmatpush1.bf16.msra.mxu0 0
        %2409 = vmatprep.subr.bf16.mxu0 0
        %2410 = vmatpush1.bf16.msra.mxu0 0
        %2411 = vmatprep.subr.bf16.mxu0 0
        %2412 = vmatpush1.bf16.msra.mxu0 0
        %2413 = vmatprep.subr.bf16.mxu0 0
        %2414 = vmatpush1.bf16.msra.mxu0 0
        %2415 = vmatprep.subr.bf16.mxu0 0
        %2416 = vmatpush1.bf16.msra.mxu0 0
        %2417 = vmatprep.subr.bf16.mxu0 0
        %2418 = vmatpush1.bf16.msra.mxu0 0
        %2419 = vmatprep.subr.bf16.mxu0 0
        %2420 = vmatpush1.bf16.msra.mxu0 0
        %2421 = vmatprep.subr.bf16.mxu0 0
        %2422 = vmatpush1.bf16.msra.mxu0 0
        %2423 = vmatprep.subr.bf16.mxu0 0
        %2424 = vmatpush1.bf16.msra.mxu0 0
        %2425 = vmatprep.subr.bf16.mxu0 0
        %2426 = vmatpush1.bf16.msra.mxu0 0
        %2427 = vmatprep.subr.bf16.mxu0 0
        %2428 = vmatpush1.bf16.msra.mxu0 0
        %2429 = vmatprep.subr.bf16.mxu0 0
        %2430 = vmatpush1.bf16.msra.mxu0 0
        %2431 = vmatprep.mubr.bf16.mxu0 0
        %2432 = vmatmul.mubr.bf16.gmra.mrb[0].mxu0 %v2394
        %v2433 = vpop.f32.mrb[0].mxu0
        %v2434 = vadd.f32 0.0, %v2433
        %v2435 = vpop.f32.mrb[0].mxu0
        %v2436 = vpop.f32.mrb[0].mxu0
        %v2437 = vpop.f32.mrb[0].mxu0
        %2438 = vdwg.mxu0
        %v2439 = vpack.c.bf16 %v2434, %v2434
        %v2441 = vsel %vm1268, %v2439, 0
        %v2444 = vsel %vm1330, %v2012, 0
        %2446 = vmatprep.subr.bf16.mxu0 0
        %2447 = vmatpush1.bf16.msra.mxu0 %v2444
        %2448 = vmatprep.subr.bf16.mxu0 0
        %2449 = vmatpush1.bf16.msra.mxu0 0
        %2450 = vmatprep.subr.bf16.mxu0 0
        %2451 = vmatpush1.bf16.msra.mxu0 0
        %2452 = vmatprep.subr.bf16.mxu0 0
        %2453 = vmatpush1.bf16.msra.mxu0 0
        %2454 = vmatprep.subr.bf16.mxu0 0
        %2455 = vmatpush1.bf16.msra.mxu0 0
        %2456 = vmatprep.subr.bf16.mxu0 0
        %2457 = vmatpush1.bf16.msra.mxu0 0
        %2458 = vmatprep.subr.bf16.mxu0 0
        %2459 = vmatpush1.bf16.msra.mxu0 0
        %2460 = vmatprep.subr.bf16.mxu0 0
        %2461 = vmatpush1.bf16.msra.mxu0 0
        %2462 = vmatprep.subr.bf16.mxu0 0
        %2463 = vmatpush1.bf16.msra.mxu0 0
        %2464 = vmatprep.subr.bf16.mxu0 0
        %2465 = vmatpush1.bf16.msra.mxu0 0
        %2466 = vmatprep.subr.bf16.mxu0 0
        %2467 = vmatpush1.bf16.msra.mxu0 0
        %2468 = vmatprep.subr.bf16.mxu0 0
        %2469 = vmatpush1.bf16.msra.mxu0 0
        %2470 = vmatprep.subr.bf16.mxu0 0
        %2471 = vmatpush1.bf16.msra.mxu0 0
        %2472 = vmatprep.subr.bf16.mxu0 0
        %2473 = vmatpush1.bf16.msra.mxu0 0
        %2474 = vmatprep.subr.bf16.mxu0 0
        %2475 = vmatpush1.bf16.msra.mxu0 0
        %2476 = vmatprep.subr.bf16.mxu0 0
        %2477 = vmatpush1.bf16.msra.mxu0 0
        %2478 = vmatprep.mubr.bf16.mxu0 0
        %2479 = vmatmul.mubr.bf16.gmra.mrb[0].mxu0 %v2441
        %v2480 = vpop.f32.mrb[0].mxu0
        %v2481 = vadd.f32 0.0, %v2480
        %v2482 = vpop.f32.mrb[0].mxu0
        %v2483 = vpop.f32.mrb[0].mxu0
        %v2484 = vpop.f32.mrb[0].mxu0
        %2485 = vdwg.mxu0
        %v2486 = vadd.f32 %v2324, %v2481
        %2487 = vrot.lane.b32.xlu0 %v2007, 104
        %v2488 = vpop.permute.xlu0 %2487
        %2489 = vrot.lane.b32.xlu0 %v2124, 104
        %v2490 = vpop.permute.xlu0 %2489
        %v2492 = vsel %vm1268, %v2488, 0
        %v2495 = vsel %vm1268, %v2490, 0
        %2497 = vmatprep.subr.bf16.mxu0 0
        %2498 = vmatpush1.bf16.xpose.msra.mxu0 %v2495
        %2499 = vmatprep.subr.bf16.mxu0 0
        %2500 = vmatpush1.bf16.xpose.msra.mxu0 0
        %2501 = vmatprep.subr.bf16.mxu0 0
        %2502 = vmatpush1.bf16.xpose.msra.mxu0 0
        %2503 = vmatprep.subr.bf16.mxu0 0
        %2504 = vmatpush1.bf16.xpose.msra.mxu0 0
        %2505 = vmatprep.subr.bf16.mxu0 0
        %2506 = vmatpush1.bf16.xpose.msra.mxu0 0
        %2507 = vmatprep.subr.bf16.mxu0 0
        %2508 = vmatpush1.bf16.xpose.msra.mxu0 0
        %2509 = vmatprep.subr.bf16.mxu0 0
        %2510 = vmatpush1.bf16.xpose.msra.mxu0 0
        %2511 = vmatprep.subr.bf16.mxu0 0
        %2512 = vmatpush1.bf16.xpose.msra.mxu0 0
        %2513 = vmatprep.subr.bf16.mxu0 0
        %2514 = vmatpush1.bf16.xpose.msra.mxu0 0
        %2515 = vmatprep.subr.bf16.mxu0 0
        %2516 = vmatpush1.bf16.xpose.msra.mxu0 0
        %2517 = vmatprep.subr.bf16.mxu0 0
        %2518 = vmatpush1.bf16.xpose.msra.mxu0 0
        %2519 = vmatprep.subr.bf16.mxu0 0
        %2520 = vmatpush1.bf16.xpose.msra.mxu0 0
        %2521 = vmatprep.subr.bf16.mxu0 0
        %2522 = vmatpush1.bf16.xpose.msra.mxu0 0
        %2523 = vmatprep.subr.bf16.mxu0 0
        %2524 = vmatpush1.bf16.xpose.msra.mxu0 0
        %2525 = vmatprep.subr.bf16.mxu0 0
        %2526 = vmatpush1.bf16.xpose.msra.mxu0 0
        %2527 = vmatprep.subr.bf16.mxu0 0
        %2528 = vmatpush1.bf16.xpose.msra.mxu0 0
        %2529 = vmatprep.mubr.bf16.mxu0 0
        %2530 = vmatmul.mubr.bf16.gmra.mrb[0].mxu0 %v2492
        %v2531 = vpop.f32.mrb[0].mxu0
        %v2532 = vadd.f32 0.0, %v2531
        %v2533 = vpop.f32.mrb[0].mxu0
        %v2534 = vpop.f32.mrb[0].mxu0
        %v2535 = vpop.f32.mrb[0].mxu0
        %2536 = vdwg.mxu0
        %v2537 = vsel %vm1268, %v2532, -inf
        %2538 = vmax.xlane.f32.xlu0 %v2537
        %v2539 = vpop.xlane.xlu0 %2538
        %v2540 = vsub.f32 %v2532, %v2539
        %v2541 = vmul.f32 %v2540, 1.442695
        %v2542 = vpow.pop %v2541
        %v2543 = vsel %vm1268, %v2542, 0.0
        %2544 = vadd.xlane.f32.xlu0 %v2543
        %v2545 = vpop.xlane.xlu0 %2544
        %v2546 = vrcp.pop %v2545
        %v2547 = vmul.f32 %v2542, %v2546
        %v2548 = vpack.c.bf16 %v2547, %v2547
        %2549 = vrot.lane.b32.xlu0 %v2187, 104
        %v2550 = vpop.permute.xlu0 %2549
        %v2552 = vsel %vm1268, %v2548, 0
        %v2555 = vsel %vm1330, %v2550, 0
        %2557 = vmatprep.subr.bf16.mxu0 0
        %2558 = vmatpush1.bf16.msra.mxu0 %v2555
        %2559 = vmatprep.subr.bf16.mxu0 0
        %2560 = vmatpush1.bf16.msra.mxu0 0
        %2561 = vmatprep.subr.bf16.mxu0 0
        %2562 = vmatpush1.bf16.msra.mxu0 0
        %2563 = vmatprep.subr.bf16.mxu0 0
        %2564 = vmatpush1.bf16.msra.mxu0 0
        %2565 = vmatprep.subr.bf16.mxu0 0
        %2566 = vmatpush1.bf16.msra.mxu0 0
        %2567 = vmatprep.subr.bf16.mxu0 0
        %2568 = vmatpush1.bf16.msra.mxu0 0
        %2569 = vmatprep.subr.bf16.mxu0 0
        %2570 = vmatpush1.bf16.msra.mxu0 0
        %2571 = vmatprep.subr.bf16.mxu0 0
        %2572 = vmatpush1.bf16.msra.mxu0 0
        %2573 = vmatprep.subr.bf16.mxu0 0
        %2574 = vmatpush1.bf16.msra.mxu0 0
        %2575 = vmatprep.subr.bf16.mxu0 0
        %2576 = vmatpush1.bf16.msra.mxu0 0
        %2577 = vmatprep.subr.bf16.mxu0 0
        %2578 = vmatpush1.bf16.msra.mxu0 0
        %2579 = vmatprep.subr.bf16.mxu0 0
        %2580 = vmatpush1.bf16.msra.mxu0 0
        %2581 = vmatprep.subr.bf16.mxu0 0
        %2582 = vmatpush1.bf16.msra.mxu0 0
        %2583 = vmatprep.subr.bf16.mxu0 0
        %2584 = vmatpush1.bf16.msra.mxu0 0
        %2585 = vmatprep.subr.bf16.mxu0 0
        %2586 = vmatpush1.bf16.msra.mxu0 0
        %2587 = vmatprep.subr.bf16.mxu0 0
        %2588 = vmatpush1.bf16.msra.mxu0 0
        %2589 = vmatprep.mubr.bf16.mxu0 0
        %2590 = vmatmul.mubr.bf16.gmra.mrb[0].mxu0 %v2552
        %v2591 = vpop.f32.mrb[0].mxu0
        %v2592 = vadd.f32 0.0, %v2591
        %v2593 = vpop.f32.mrb[0].mxu0
        %v2594 = vpop.f32.mrb[0].mxu0
        %v2595 = vpop.f32.mrb[0].mxu0
        %2596 = vdwg.mxu0
        %v2597 = vpack.c.bf16 %v2592, %v2592
        %v2599 = vsel %vm1268, %v2597, 0
        %v2602 = vsel %vm1330, %v2013, 0
        %2604 = vmatprep.subr.bf16.mxu0 0
        %2605 = vmatpush1.bf16.msra.mxu0 %v2602
        %2606 = vmatprep.subr.bf16.mxu0 0
        %2607 = vmatpush1.bf16.msra.mxu0 0
        %2608 = vmatprep.subr.bf16.mxu0 0
        %2609 = vmatpush1.bf16.msra.mxu0 0
        %2610 = vmatprep.subr.bf16.mxu0 0
        %2611 = vmatpush1.bf16.msra.mxu0 0
        %2612 = vmatprep.subr.bf16.mxu0 0
        %2613 = vmatpush1.bf16.msra.mxu0 0
        %2614 = vmatprep.subr.bf16.mxu0 0
        %2615 = vmatpush1.bf16.msra.mxu0 0
        %2616 = vmatprep.subr.bf16.mxu0 0
        %2617 = vmatpush1.bf16.msra.mxu0 0
        %2618 = vmatprep.subr.bf16.mxu0 0
        %2619 = vmatpush1.bf16.msra.mxu0 0
        %2620 = vmatprep.subr.bf16.mxu0 0
        %2621 = vmatpush1.bf16.msra.mxu0 0
        %2622 = vmatprep.subr.bf16.mxu0 0
        %2623 = vmatpush1.bf16.msra.mxu0 0
        %2624 = vmatprep.subr.bf16.mxu0 0
        %2625 = vmatpush1.bf16.msra.mxu0 0
        %2626 = vmatprep.subr.bf16.mxu0 0
        %2627 = vmatpush1.bf16.msra.mxu0 0
        %2628 = vmatprep.subr.bf16.mxu0 0
        %2629 = vmatpush1.bf16.msra.mxu0 0
        %2630 = vmatprep.subr.bf16.mxu0 0
        %2631 = vmatpush1.bf16.msra.mxu0 0
        %2632 = vmatprep.subr.bf16.mxu0 0
        %2633 = vmatpush1.bf16.msra.mxu0 0
        %2634 = vmatprep.subr.bf16.mxu0 0
        %2635 = vmatpush1.bf16.msra.mxu0 0
        %2636 = vmatprep.mubr.bf16.mxu0 0
        %2637 = vmatmul.mubr.bf16.gmra.mrb[0].mxu0 %v2599
        %v2638 = vpop.f32.mrb[0].mxu0
        %v2639 = vadd.f32 0.0, %v2638
        %v2640 = vpop.f32.mrb[0].mxu0
        %v2641 = vpop.f32.mrb[0].mxu0
        %v2642 = vpop.f32.mrb[0].mxu0
        %2643 = vdwg.mxu0
        %v2644 = vadd.f32 %v2486, %v2639
        %v2645 = vld [vmem:[%s18] sm:$0x1]
        %v2647 = vlaneseq
        %v2648 = vshrl.u32 %v2647, 7
        %v2649 = vsub.s32 0, %v2648
        %v2650 = vrot.slane %v2645, %v2649
        %v2652 = vadd.f32 %v2644, %v2650
        %v2653 = vadd.f32 %v1909, %v2652
        %v2654 = vld [vmem:[%s19] sm:$0x1]
        %v2655 = vld [vmem:[%s20] sm:$0x1]
        %v2656 = vsel %vm1164, %v2653, 0.0
        %2657 = vadd.xlane.f32.xlu0 %v2656
        %v2658 = vpop.xlane.xlu0 %2657
        %v2659 = vmul.f32 %v2658, %v1168
        %v2660 = vsub.f32 %v2653, %v2659
        %v2661 = vmul.f32 %v2660, %v2660
        %v2662 = vsel %vm1164, %v2661, 0.0
        %2663 = vadd.xlane.f32.xlu0 %v2662
        %v2664 = vpop.xlane.xlu0 %2663
        %v2665 = vmul.f32 %v2664, %v1168
        %v2666 = vadd.f32 %v2665, 1e-05
        %v2667 = vrsqrt.pop %v2666
        %v2668 = vmul.f32 %v2660, %v2667
        %v2670 = vlaneseq
        %v2671 = vshrl.u32 %v2670, 7
        %v2672 = vsub.s32 0, %v2671
        %v2673 = vrot.slane %v2654, %v2672
        %v2675 = vmul.f32 %v2668, %v2673
        %v2677 = vlaneseq
        %v2678 = vshrl.u32 %v2677, 7
        %v2679 = vsub.s32 0, %v2678
        %v2680 = vrot.slane %v2655, %v2679
        %v2682 = vadd.f32 %v2675, %v2680
        %v2683 = vpack.c.bf16 %v2682, %v2682
        %v2684 = vld [vmem:[#allocation26] sm:$0xf]
        %v2685 = vld [vmem:[#allocation26 + $0x4] sm:$0xf]
        %v2686 = vld [vmem:[#allocation26 + $0x8] sm:$0xf]
        %v2687 = vld [vmem:[#allocation26 + $0xc] sm:$0xf]
        %v2688 = vld [vmem:[%s22] sm:$0x1]
        %v2690 = vlaneseq
        %v2691 = vshrl.u32 %v2690, 7
        %v2692 = vsub.s32 0, %v2691
        %v2693 = vrot.slane %v2688, %v2692
        %v2699 = vunpack.c.l.b16 %v2684
        %v2700 = vunpack.c.l.b16 %v2685
        %v2701 = vunpack.c.l.b16 %v2686
        %v2702 = vunpack.c.l.b16 %v2687
        %v2703 = vpack.c.b16 %v2700, %v2699
        %v2704 = vpack.c.b16 %v2702, %v2701
        %v2708 = vsel %vm1164, %v2683, 0
        %2710 = vmatprep.subr.bf16.mxu0 0
        %2711 = vmatpush1.bf16.msra.mxu0 %v2703
        %2712 = vmatprep.subr.bf16.mxu0 0
        %2713 = vmatpush1.bf16.msra.mxu0 %v2704
        %2714 = vmatprep.subr.bf16.mxu0 0
        %2715 = vmatpush1.bf16.msra.mxu0 0
        %2716 = vmatprep.subr.bf16.mxu0 0
        %2717 = vmatpush1.bf16.msra.mxu0 0
        %2718 = vmatprep.subr.bf16.mxu0 0
        %2719 = vmatpush1.bf16.msra.mxu0 0
        %2720 = vmatprep.subr.bf16.mxu0 0
        %2721 = vmatpush1.bf16.msra.mxu0 0
        %2722 = vmatprep.subr.bf16.mxu0 0
        %2723 = vmatpush1.bf16.msra.mxu0 0
        %2724 = vmatprep.subr.bf16.mxu0 0
        %2725 = vmatpush1.bf16.msra.mxu0 0
        %2726 = vmatprep.subr.bf16.mxu0 0
        %2727 = vmatpush1.bf16.msra.mxu0 0
        %2728 = vmatprep.subr.bf16.mxu0 0
        %2729 = vmatpush1.bf16.msra.mxu0 0
        %2730 = vmatprep.subr.bf16.mxu0 0
        %2731 = vmatpush1.bf16.msra.mxu0 0
        %2732 = vmatprep.subr.bf16.mxu0 0
        %2733 = vmatpush1.bf16.msra.mxu0 0
        %2734 = vmatprep.subr.bf16.mxu0 0
        %2735 = vmatpush1.bf16.msra.mxu0 0
        %2736 = vmatprep.subr.bf16.mxu0 0
        %2737 = vmatpush1.bf16.msra.mxu0 0
        %2738 = vmatprep.subr.bf16.mxu0 0
        %2739 = vmatpush1.bf16.msra.mxu0 0
        %2740 = vmatprep.subr.bf16.mxu0 0
        %2741 = vmatpush1.bf16.msra.mxu0 0
        %2742 = vmatprep.mubr.bf16.mxu0 0
        %2743 = vmatmul.mubr.bf16.gmra.mrb[0].mxu0 %v2708
        %v2744 = vpop.f32.mrb[0].mxu0
        %v2745 = vadd.f32 %v2693, %v2744
        %v2746 = vpop.f32.mrb[0].mxu0
        %v2747 = vpop.f32.mrb[0].mxu0
        %v2748 = vpop.f32.mrb[0].mxu0
        %2749 = vdwg.mxu0
        %v2750 = vmax.f32 %v2745, 0.0
        %v2751 = vpack.c.bf16 %v2750, %v2750
        %v2752 = vld [vmem:[%s23] sm:$0xf]
        %v2753 = vld [vmem:[%s23 + $0x4] sm:$0xf]
        %v2754 = vld [vmem:[%s23 + $0x8] sm:$0xf]
        %v2755 = vld [vmem:[%s23 + $0xc] sm:$0xf]
        %v2756 = vld [vmem:[%s23 + $0x10] sm:$0xf]
        %v2757 = vld [vmem:[%s23 + $0x14] sm:$0xf]
        %v2758 = vld [vmem:[%s23 + $0x18] sm:$0xf]
        %v2759 = vld [vmem:[%s23 + $0x1c] sm:$0xf]
        %v2760 = vld [vmem:[%s24] sm:$0x1]
        %v2762 = vlaneseq
        %v2763 = vshrl.u32 %v2762, 7
        %v2764 = vsub.s32 0, %v2763
        %v2765 = vrot.slane %v2760, %v2764
        %v2775 = vunpack.c.l.b16 %v2752
        %v2776 = vunpack.c.l.b16 %v2753
        %v2777 = vunpack.c.l.b16 %v2754
        %v2778 = vunpack.c.l.b16 %v2755
        %v2779 = vunpack.c.l.b16 %v2756
        %v2780 = vunpack.c.l.b16 %v2757
        %v2781 = vunpack.c.l.b16 %v2758
        %v2782 = vunpack.c.l.b16 %v2759
        %v2783 = vpack.c.b16 %v2776, %v2775
        %v2784 = vpack.c.b16 %v2778, %v2777
        %v2785 = vpack.c.b16 %v2780, %v2779
        %v2786 = vpack.c.b16 %v2782, %v2781
        %vm2791 = vcmask 523264
        %v2793 = vsel %vm2791, %v2751, 0
        %2795 = vmatprep.subr.bf16.mxu0 0
        %2796 = vmatpush1.bf16.msra.mxu0 %v2783
        %2797 = vmatprep.subr.bf16.mxu0 0
        %2798 = vmatpush1.bf16.msra.mxu0 %v2784
        %2799 = vmatprep.subr.bf16.mxu0 0
        %2800 = vmatpush1.bf16.msra.mxu0 %v2785
        %2801 = vmatprep.subr.bf16.mxu0 0
        %2802 = vmatpush1.bf16.msra.mxu0 %v2786
        %2803 = vmatprep.subr.bf16.mxu0 0
        %2804 = vmatpush1.bf16.msra.mxu0 0
        %2805 = vmatprep.subr.bf16.mxu0 0
        %2806 = vmatpush1.bf16.msra.mxu0 0
        %2807 = vmatprep.subr.bf16.mxu0 0
        %2808 = vmatpush1.bf16.msra.mxu0 0
        %2809 = vmatprep.subr.bf16.mxu0 0
        %2810 = vmatpush1.bf16.msra.mxu0 0
        %2811 = vmatprep.subr.bf16.mxu0 0
        %2812 = vmatpush1.bf16.msra.mxu0 0
        %2813 = vmatprep.subr.bf16.mxu0 0
        %2814 = vmatpush1.bf16.msra.mxu0 0
        %2815 = vmatprep.subr.bf16.mxu0 0
        %2816 = vmatpush1.bf16.msra.mxu0 0
        %2817 = vmatprep.subr.bf16.mxu0 0
        %2818 = vmatpush1.bf16.msra.mxu0 0
        %2819 = vmatprep.subr.bf16.mxu0 0
        %2820 = vmatpush1.bf16.msra.mxu0 0
        %2821 = vmatprep.subr.bf16.mxu0 0
        %2822 = vmatpush1.bf16.msra.mxu0 0
        %2823 = vmatprep.subr.bf16.mxu0 0
        %2824 = vmatpush1.bf16.msra.mxu0 0
        %2825 = vmatprep.subr.bf16.mxu0 0
        %2826 = vmatpush1.bf16.msra.mxu0 0
        %2827 = vmatprep.mubr.bf16.mxu0 0
        %2828 = vmatmul.mubr.bf16.gmra.mrb[0].mxu0 %v2793
        %v2829 = vpop.f32.mrb[0].mxu0
        %v2830 = vadd.f32 %v2765, %v2829
        %v2831 = vpop.f32.mrb[0].mxu0
        %v2832 = vpop.f32.mrb[0].mxu0
        %v2833 = vpop.f32.mrb[0].mxu0
        %2834 = vdwg.mxu0
        %v2835 = vadd.f32 %v2653, %v2830
        %2836 = vst.msk [vmem:[%s958] sm:$0xff] %vm1164, %v2835
        %s2837 = sand.u32 %s608, 1
        %s2838 = scalar_lea.sflag [#allocation8], %s2837
        %s2839 = sand.u32 %s608, 1
        %s2840 = smul.addr %s2839, 8
        %s2841 = scalar_lea.vmem [#allocation27], %s2840
        // Predicated region
        $region177: #{tpu_custom_call.1} parent=119 // pred_check
          %p2842 = pneg %p618
        $region178: #{tpu_custom_call.1} parent=119 // pred_check_branch
          %2844 = sbr.rel (%p2842) target = $region180
        $region179: #{tpu_custom_call.1} parent=119 // pred_region
          %s2846 = ssub.s32 128, 128
          %2847 = vsyncadd %s2838, %s2846
          %s2848 = sadd.s32 %s51, %s50
          %s2849 = smul.addr %s2848, 128
          %s2850 = scalar_lea.hbm %s25, %s2849
          %s2852 = sshll.u32 %s2841, 4
          %s2853 = int_to_ptr.vmem [resolvable:$true] %s2852
          %2855 = dma.vmem_to_hbm [thread:$0]  %s2853, 128, %s2850, %s2838
        $region180: #{tpu_custom_call.1} parent=119 // pred_fallthru
          _
      $region120: #{tpu_custom_call.1} parent=5 // pred_fallthru
        _
      %p2856 = scmp.le.s32.totalorder 2, %s41
      // Predicated region
      $region181: #{tpu_custom_call.1} parent=5 // pred_check
        %p2857 = pneg %p2856
      $region182: #{tpu_custom_call.1} parent=5 // pred_check_branch
        %2859 = sbr.rel (%p2857) target = $region184
      $region183: #{tpu_custom_call.1} parent=5 // pred_region
        %s2860 = ssub.s32 %s41, 2
        // Predicated region
        $region185: #{tpu_custom_call.1} parent=183 // pred_check
          %p2861 = pneg %p624
        $region186: #{tpu_custom_call.1} parent=183 // pred_check_branch
          %2863 = sbr.rel (%p2861) target = $region188
        $region187: #{tpu_custom_call.1} parent=183 // pred_region
          %s2864 = sand.u32 %s609, 1
          %s2865 = scalar_lea.sflag [#allocation8], %s2864
          %s2866 = sand.u32 %s609, 1
          %s2867 = smul.addr %s2866, 8
          %s2868 = scalar_lea.vmem [#allocation27], %s2867
          %2869 = dma.done %s2865, 128
        $region188: #{tpu_custom_call.1} parent=183 // pred_fallthru
          _
      $region184: #{tpu_custom_call.1} parent=5 // pred_fallthru
        _
    $region6: #{tpu_custom_call.1} parent=1 // loop_footer
      %s45 = sadd.s32 1, %s41
    $region7: #{tpu_custom_call.1} parent=1 // loop_footer_branch
      %40 = sbr.rel target = $region3
    $region8: #{tpu_custom_call.1} parent=1 // loop_exit
      _
    %2870 = vsyncpa [#allocation7], 1
    %s2871 = scalar_lea.sflag [#allocation7], 1
    %2872 = vsyncpa %s2871, 1
    %2873 = vsyncpa [#allocation10], 1
    %2874 = vsyncpa [#allocation13], 1
    %2875 = vsyncpa [#allocation16], 1
    %2876 = vsyncpa [#allocation19], 1
    %2877 = vsyncpa [#allocation22], 1
    %2878 = vsyncpa [#allocation25], 1
    %2879 = vsyncpa [#allocation8], 1
    %s2880 = scalar_lea.sflag [#allocation8], 1
    %2881 = vsyncpa %s2880, 1

</llo_original>
